<compile_context>
chip_gen: v6e
topology: v6e:2x2x1
jax: 0.10.0
libtpu: 0.0.40
codegen_flags: <defaults>
</compile_context>

<pallas_src>
import math
import numpy as np
import jax
import jax.numpy as jnp
from jax.experimental import pallas as pl
from jax.experimental.pallas import tpu as pltpu

# ---------------- configuration (small but faithful to the module) ----------------
DIM = 32                      # dim
NUM_HEADS = 4                 # num_heads
HEAD_DIM = DIM // NUM_HEADS   # head_dim (default dim // num_heads)
ATTN_DIM = NUM_HEADS * HEAD_DIM
WIN = 4                       # window_size
SHIFT = 2                     # shift_size (shifted-window branch exercised)
H = W = 8                     # input_resolution
B = 2                         # batch
MLP_RATIO = 4.0
MLP_HIDDEN = int(DIM * MLP_RATIO)
N = WIN * WIN                 # window_area (tokens per window)
NUM_WIN = (H // WIN) * (W // WIN)
TOKENS = H * W                # tokens per image
BT = B * TOKENS               # tokens per batched kernel step (128)
SCALE = HEAD_DIM ** (-0.5)
EPS = 1e-5                    # nn.LayerNorm default
NEG_INF = -1e9                # cross-window / cross-image mask (exp underflows to 0)
QKVP = 2 * ATTN_DIM + NUM_HEADS * DIM   # fused [Q | K | Vp] width = 64 + 128 = 192


# ---------------- numpy helpers (buffers built at init, exactly as PyTorch) -------
def get_relative_position_index(win_h: int, win_w: int) -> np.ndarray:
    coords = np.stack(np.meshgrid(np.arange(win_h), np.arange(win_w), indexing="ij"))
    coords_flatten = coords.reshape(2, -1)
    rel = coords_flatten[:, :, None] - coords_flatten[:, None, :]
    rel = rel.transpose(1, 2, 0).copy()
    rel[:, :, 0] += win_h - 1
    rel[:, :, 1] += win_w - 1
    rel[:, :, 0] *= 2 * win_w - 1
    return rel.sum(-1)  # (N, N)


def window_partition_np(x: np.ndarray) -> np.ndarray:
    Bx, Hx, Wx, C = x.shape
    x = x.reshape(Bx, Hx // WIN, WIN, Wx // WIN, WIN, C)
    x = x.transpose(0, 1, 3, 2, 4, 5)
    return x.reshape(-1, WIN, WIN, C)


def build_attn_mask() -> np.ndarray:
    """Reference shift mask, (NUM_WIN, N, N) — used by the pure-JAX reference."""
    img_mask = np.zeros((1, H, W, 1), dtype=np.float32)
    h_slices = (slice(0, -WIN), slice(-WIN, -SHIFT), slice(-SHIFT, None))
    w_slices = (slice(0, -WIN), slice(-WIN, -SHIFT), slice(-SHIFT, None))
    cnt = 0
    for hs in h_slices:
        for ws in w_slices:
            img_mask[:, hs, ws, :] = cnt
            cnt += 1
    mask_windows = window_partition_np(img_mask).reshape(-1, N)
    attn_mask = mask_windows[:, None, :] - mask_windows[:, :, None]
    attn_mask = np.where(attn_mask != 0, np.float32(-100.0), np.float32(0.0))
    return attn_mask.astype(np.float32)  # (NUM_WIN, N, N)


def build_dense_pair_tables():
    """Static per-image pairwise tables in ORIGINAL token order.

    pair_rel_idx[i, j] : index into the relative-position-bias table for the
                         within-window positions of tokens i, j.
    pair_add[i, j]     : shift-mask value (0 / -100) when i, j share a shifted
                         window, NEG_INF otherwise.
    Dense attention with this bias is exactly equivalent to roll + window
    partition + per-window masked attention + window reverse + roll back.
    """
    rel_index = get_relative_position_index(WIN, WIN)           # (N, N)
    region = np.zeros((H, W), dtype=np.int32)                   # region ids on shifted grid
    if SHIFT:
        h_slices = (slice(0, -WIN), slice(-WIN, -SHIFT), slice(-SHIFT, None))
        w_slices = (slice(0, -WIN), slice(-WIN, -SHIFT), slice(-SHIFT, None))
        cnt = 0
        for hs in h_slices:
            for ws in w_slices:
                region[hs, ws] = cnt
                cnt += 1
    win_id = np.zeros((TOKENS,), np.int32)
    pos_id = np.zeros((TOKENS,), np.int32)
    reg_id = np.zeros((TOKENS,), np.int32)
    for t in range(TOKENS):
        h, w = t // W, t % W
        hs, ws = (h - SHIFT) % H, (w - SHIFT) % W                # position after roll(-SHIFT)
        win_id[t] = (hs // WIN) * (W // WIN) + (ws // WIN)
        pos_id[t] = (hs % WIN) * WIN + (ws % WIN)
        reg_id[t] = region[hs, ws]
    pair_rel_idx = rel_index[pos_id[:, None], pos_id[None, :]].astype(np.int32)   # (TOKENS, TOKENS)
    same_win = win_id[:, None] == win_id[None, :]
    same_reg = reg_id[:, None] == reg_id[None, :]
    pair_add = np.where(same_win,
                        np.where(same_reg, np.float32(0.0), np.float32(-100.0)),
                        np.float32(NEG_INF)).astype(np.float32)
    return pair_rel_idx, pair_add


# ---------------- jnp glue (used only by the pure-JAX reference) -------------------
def window_partition(x):
    Bx, Hx, Wx, C = x.shape
    x = x.reshape(Bx, Hx // WIN, WIN, Wx // WIN, WIN, C)
    x = x.transpose(0, 1, 3, 2, 4, 5)
    return x.reshape(-1, WIN, WIN, C)


def window_reverse(windows, Hx, Wx):
    C = windows.shape[-1]
    x = windows.reshape(-1, Hx // WIN, Wx // WIN, WIN, WIN, C)
    x = x.transpose(0, 1, 3, 2, 4, 5)
    return x.reshape(-1, Hx, Wx, C)


# ---------------- fused Pallas kernel ----------------------------------------------
def _swin_block_kernel(x_ref, bias_ref, wa_ref, w1_ref, w2_ref, vecs_ref, o_ref):
    """Full SwinTransformerBlock forward, all B images batched into one (BT, C) slab."""
    x = x_ref[...].astype(jnp.float32)                        # (BT, C) = (128, 32)

    # packed bias vectors (LN affines are already folded into wa/w1 at init)
    b_a    = vecs_ref[0:1, :]                                 # (1, QKVP)
    bb1    = vecs_ref[1:2, :MLP_HIDDEN]                       # (1, MLP_HIDDEN)
    bb2    = vecs_ref[2:3, :DIM]                              # (1, C)
    b_proj = vecs_ref[3:4, :DIM]                              # (1, C)

    # ---- LayerNorm (norm1); affine folded into wa / b_a ----
    mu = jnp.mean(x, axis=-1, keepdims=True)
    var = jnp.mean((x - mu) ** 2, axis=-1, keepdims=True)
    z1 = (x - mu) * jax.lax.rsqrt(var + EPS)

    # ---- fused [Q | K | Vp] projection: one (128,32)@(32,192) MXU matmul ----
    # Vp_h = (xn @ W_v_h + b_v_h) @ W_proj_h folded at init -> per head (BT, C) slice.
    qkvp = jnp.dot(z1, wa_ref[...], preferred_element_type=jnp.float32) + b_a

    # ---- dense masked multi-head attention over all BT tokens (block-diag bias) ----
    attn = b_proj                                             # (1, C) broadcast init
    for h in range(NUM_HEADS):                                # static unroll (4 heads)
        q = qkvp[:, h * HEAD_DIM:(h + 1) * HEAD_DIM] * SCALE
        k = qkvp[:, ATTN_DIM + h * HEAD_DIM:ATTN_DIM + (h + 1) * HEAD_DIM]
        s = jax.lax.dot_general(q, k, (((1,), (1,)), ((), ())),
                                preferred_element_type=jnp.float32)          # (BT, BT)
        s = s + bias_ref[h]
        # explicit softmax: max/exp on VPU/EUP, approx reciprocal on EUP slot
        m = jnp.max(s, axis=-1, keepdims=True)
        e = jnp.exp(s - m)
        p = e * pl.reciprocal(jnp.sum(e, axis=-1, keepdims=True), approx=True)
        vp = qkvp[:, 2 * ATTN_DIM + h * DIM:2 * ATTN_DIM + (h + 1) * DIM]    # (BT, C)
        attn = attn + jnp.dot(p, vp, preferred_element_type=jnp.float32)     # K=BT, N=C

    # ---- residual 1 + LayerNorm (norm2, affine folded) + MLP (fc1->GELU->fc2) + res 2 ----
    y = x + attn
    mu2 = jnp.mean(y, axis=-1, keepdims=True)
    var2 = jnp.mean((y - mu2) ** 2, axis=-1, keepdims=True)
    z2 = (y - mu2) * jax.lax.rsqrt(var2 + EPS)
    h1 = jnp.dot(z2, w1_ref[...], preferred_element_type=jnp.float32) + bb1
    h1 = 0.5 * h1 * (1.0 + jax.lax.erf(h1 * (1.0 / math.sqrt(2.0))))         # exact GELU
    h2 = jnp.dot(h1, w2_ref[...], preferred_element_type=jnp.float32) + bb2

    o_ref[...] = (y + h2).astype(o_ref.dtype)


# ---------------- wrapper -----------------------------------------------------------
@jax.jit
def swin_block_forward(x, kp):
    Bx, Hx, Wx, C = x.shape
    T = Bx * Hx * Wx
    x_tok = x.reshape(T, C)

    spec2 = lambda s: pl.BlockSpec(s, lambda i: (0, 0))
    spec3 = lambda s: pl.BlockSpec(s, lambda i: (0, 0, 0))

    out = pl.pallas_call(
        _swin_block_kernel,
        out_shape=jax.ShapeDtypeStruct((T, C), x.dtype),
        grid=(1,),                                            # single batched step
        in_specs=[
            spec2((T, C)),                                    # x (all images, token-major)
            spec3((NUM_HEADS, T, T)),                         # block-diagonal dense bias
            spec2((C, QKVP)),                                 # folded [Wq|Wk|Wvp] (LN1 folded)
            spec2((C, MLP_HIDDEN)),                           # fc1 weight (LN2 folded)
            spec2((MLP_HIDDEN, C)),                           # fc2 weight
            spec2((4, QKVP)),                                 # packed bias vectors
        ],
        out_specs=spec2((T, C)),
        compiler_params=pltpu.CompilerParams(dimension_semantics=("arbitrary",)),
    )(x_tok, kp["bias"], kp["wa"], kp["w1"], kp["w2"], kp["vecs"])

    return out.reshape(Bx, Hx, Wx, C)


# ---------------- deterministic parameter init --------------------------------------
def init_params(key):
    keys = jax.random.split(key, 12)

    def lin(k, fan_in, shape):
        bound = 1.0 / math.sqrt(fan_in)
        return jax.random.uniform(k, shape, jnp.float32, -bound, bound)

    pair_rel_idx, pair_add = build_dense_pair_tables()
    p = {
        # LayerNorm affine (perturbed from ones/zeros so the affine path is exercised)
        "g1": 1.0 + 0.1 * jax.random.normal(keys[0], (1, DIM), jnp.float32),
        "b1": 0.05 * jax.random.normal(keys[1], (1, DIM), jnp.float32),
        "g2": 1.0 + 0.1 * jax.random.normal(keys[2], (1, DIM), jnp.float32),
        "b2": 0.05 * jax.random.normal(keys[3], (1, DIM), jnp.float32),
        # attention
        "w_qkv": lin(keys[4], DIM, (DIM, 3 * ATTN_DIM)),
        "b_qkv": lin(keys[5], DIM, (1, 3 * ATTN_DIM)),
        "w_proj": lin(keys[6], ATTN_DIM, (ATTN_DIM, DIM)),
        "b_proj": lin(keys[7], ATTN_DIM, (1, DIM)),
        # mlp
        "w1": lin(keys[8], DIM, (DIM, MLP_HIDDEN)),
        "bb1": lin(keys[9], DIM, (1, MLP_HIDDEN)),
        "w2": lin(keys[10], MLP_HIDDEN, (MLP_HIDDEN, DIM)),
        "bb2": lin(keys[11], MLP_HIDDEN, (1, DIM)),
        # buffers / rel-pos bias table
        "rel_table": 0.02 * jax.random.normal(
            jax.random.PRNGKey(42), ((2 * WIN - 1) * (2 * WIN - 1), NUM_HEADS), jnp.float32),
        "rel_index": jnp.asarray(get_relative_position_index(WIN, WIN), jnp.int32),
        "attn_mask": jnp.asarray(build_attn_mask()),
        # precomputed dense-attention tables (static buffers)
        "pair_rel_idx": jnp.asarray(pair_rel_idx),
        "pair_add": jnp.asarray(pair_add),
    }
    return p


def fold_params(p):
    """One-time (init-time) fold of module params into the kernel's 5 dense inputs.

    - LN1 affine (g1,b1) folded into the fused [Wq|Wk|Wvp] weight + bias.
    - Per-head W_v @ W_proj (and b_v @ W_proj) folded into Wvp (32, 128).
    - LN2 affine (g2,b2) folded into fc1 weight + bias.
    - All tiny bias vectors packed into one (4, 192) array.
    - Dense block-diagonal (heads, B*T, B*T) attention bias built once (rel-pos bias +
      shift mask on the diagonal image blocks, NEG_INF everywhere else).
    Mathematically identical to the unfused forward up to f32 reassociation.
    """
    g1, b1 = p["g1"][0], p["b1"][0]
    g2, b2 = p["g2"][0], p["b2"][0]
    W_qkv, b_qkv = p["w_qkv"], p["b_qkv"][0]
    W_proj, b_proj = p["w_proj"], p["b_proj"][0]

    W_q = W_qkv[:, :ATTN_DIM]
    W_k = W_qkv[:, ATTN_DIM:2 * ATTN_DIM]
    W_v = W_qkv[:, 2 * ATTN_DIM:]
    b_q = b_qkv[:ATTN_DIM]
    b_k = b_qkv[ATTN_DIM:2 * ATTN_DIM]
    b_v = b_qkv[2 * ATTN_DIM:]

    w_vp_blocks, b_vp_blocks = [], []
    for h in range(NUM_HEADS):
        Wp_h = W_proj[h * HEAD_DIM:(h + 1) * HEAD_DIM, :]                    # (HEAD_DIM, C)
        w_vp_blocks.append(W_v[:, h * HEAD_DIM:(h + 1) * HEAD_DIM] @ Wp_h)   # (C, C)
        b_vp_blocks.append(b_v[h * HEAD_DIM:(h + 1) * HEAD_DIM] @ Wp_h)      # (C,)
    W_vp = jnp.concatenate(w_vp_blocks, axis=1)                              # (C, NUM_HEADS*C)
    b_vp = jnp.concatenate(b_vp_blocks, axis=0)

    W_a0 = jnp.concatenate([W_q, W_k, W_vp], axis=1)                         # (C, QKVP)
    b_a0 = jnp.concatenate([b_q, b_k, b_vp], axis=0)
    W_a = g1[:, None] * W_a0
    b_a = b1 @ W_a0 + b_a0

    W1 = g2[:, None] * p["w1"]
    bb1 = b2 @ p["w1"] + p["bb1"][0]

    vecs = jnp.zeros((4, QKVP), jnp.float32)
    vecs = vecs.at[0, :].set(b_a)
    vecs = vecs.at[1, :MLP_HIDDEN].set(bb1)
    vecs = vecs.at[2, :DIM].set(p["bb2"][0])
    vecs = vecs.at[3, :DIM].set(b_proj)

    # dense block-diagonal bias (hoisted fully out of the per-call path)
    rel_bias = jnp.take(p["rel_table"].T, p["pair_rel_idx"], axis=1)         # (heads, T, T)
    img_bias = rel_bias + p["pair_add"][None]
    bias = jnp.full((NUM_HEADS, BT, BT), NEG_INF, jnp.float32)
    for b in range(B):
        bias = bias.at[:, b * TOKENS:(b + 1) * TOKENS,
                       b * TOKENS:(b + 1) * TOKENS].set(img_bias)

    return {"wa": W_a, "w1": W1, "w2": p["w2"], "vecs": vecs, "bias": bias}


# ---------------- pure-JAX reference (mirrors the PyTorch forward) -------------------
def reference_forward(x, p):
    Bx, Hx, Wx, C = x.shape

    def ln(v, g, b):
        mu = jnp.mean(v, axis=-1, keepdims=True)
        var = jnp.mean((v - mu) ** 2, axis=-1, keepdims=True)
        return (v - mu) / jnp.sqrt(var + EPS) * g[0] + b[0]

    xn = ln(x, p["g1"], p["b1"])
    shifted = jnp.roll(xn, shift=(-SHIFT, -SHIFT), axis=(1, 2))
    xw = window_partition(shifted).reshape(-1, N, C)
    qkv = xw @ p["w_qkv"] + p["b_qkv"][0]
    qkv = qkv.reshape(-1, N, 3, NUM_HEADS, HEAD_DIM).transpose(2, 0, 3, 1, 4)
    q, k, v = qkv[0], qkv[1], qkv[2]
    attn = (q * SCALE) @ jnp.swapaxes(k, -1, -2)
    rel = p["rel_table"][p["rel_index"].reshape(-1)].reshape(N, N, NUM_HEADS).transpose(2, 0, 1)
    attn = attn + rel[None]
    attn = attn.reshape(-1, NUM_WIN, NUM_HEADS, N, N) + p["attn_mask"][None, :, None]
    attn = attn.reshape(-1, NUM_HEADS, N, N)
    attn = jax.nn.softmax(attn, axis=-1)
    o = attn @ v
    o = jnp.swapaxes(o, 1, 2).reshape(-1, N, ATTN_DIM)
    o = o @ p["w_proj"] + p["b_proj"][0]
    o = o.reshape(-1, WIN, WIN, C)
    o = window_reverse(o, Hx, Wx)
    o = jnp.roll(o, shift=(SHIFT, SHIFT), axis=(1, 2))
    y = x + o
    yn = ln(y, p["g2"], p["b2"])
    h1 = yn @ p["w1"] + p["bb1"][0]
    h1 = 0.5 * h1 * (1.0 + jax.lax.erf(h1 / math.sqrt(2.0)))
    h2 = h1 @ p["w2"] + p["bb2"][0]
    return y + h2


# ---------------- main ----------------------------------------------------------------
if __name__ == "__main__":
    key = jax.random.PRNGKey(0)
    k_x, k_p = jax.random.split(key)
    x = jax.random.normal(k_x, (B, H, W, DIM), jnp.float32)
    params = init_params(k_p)
    kernel_params = fold_params(params)       # one-time fold (LN/W_v·W_proj/bias build)

    out = swin_block_forward(x, kernel_params)
    out = jax.block_until_ready(out)

    ref = jax.block_until_ready(reference_forward(x, params))
    assert out.shape == (B, H, W, DIM)
    # 2e-3 budget retained deliberately: the W_v·W_proj / LN folds and the approx
    # reciprocal change f32 rounding order (observed drift << 1e-3).
    assert jnp.allclose(out, ref, atol=2e-3, rtol=2e-3), float(jnp.max(jnp.abs(out - ref)))

    print("KERNEL_OK")
</pallas_src>

<mosaic_0001>
module attributes {stable_mosaic.version = 11 : i64} {
  func.func @_swin_block_kernel(%arg0: i32, %arg1: memref<128x32xf32, #tpu.memory_space<vmem>>, %arg2: memref<4x128x128xf32, #tpu.memory_space<vmem>>, %arg3: memref<32x192xf32, #tpu.memory_space<vmem>>, %arg4: memref<32x128xf32, #tpu.memory_space<vmem>>, %arg5: memref<128x32xf32, #tpu.memory_space<vmem>>, %arg6: memref<4x192xf32, #tpu.memory_space<vmem>>, %arg7: memref<128x32xf32, #tpu.memory_space<vmem>>) attributes {dimension_semantics = [#tpu.dimension_semantics<arbitrary>], iteration_bounds = array<i64: 1>, scalar_prefetch = 0 : i64, scratch_operands = 0 : i64, tpu.core_type = #tpu.core_type<tc>, window_params = [{pipeline_mode = #tpu.pipeline_mode<synchronous>, transform_indices = @transform_0, window_bounds = array<i64: 128, 32>}, {pipeline_mode = #tpu.pipeline_mode<synchronous>, transform_indices = @transform_1, window_bounds = array<i64: 4, 128, 128>}, {pipeline_mode = #tpu.pipeline_mode<synchronous>, transform_indices = @transform_2, window_bounds = array<i64: 32, 192>}, {pipeline_mode = #tpu.pipeline_mode<synchronous>, transform_indices = @transform_3, window_bounds = array<i64: 32, 128>}, {pipeline_mode = #tpu.pipeline_mode<synchronous>, transform_indices = @transform_4, window_bounds = array<i64: 128, 32>}, {pipeline_mode = #tpu.pipeline_mode<synchronous>, transform_indices = @transform_5, window_bounds = array<i64: 4, 192>}, {pipeline_mode = #tpu.pipeline_mode<synchronous>, transform_indices = @transform_6, window_bounds = array<i64: 128, 32>}]} {
    %c0 = arith.constant 0 : index
    %c0_0 = arith.constant 0 : index
    %0 = vector.load %arg1[%c0, %c0_0] : memref<128x32xf32, #tpu.memory_space<vmem>>, vector<128x32xf32>
    %c0_1 = arith.constant 0 : index
    %c0_2 = arith.constant 0 : index
    %1 = vector.load %arg6[%c0_1, %c0_2] : memref<4x192xf32, #tpu.memory_space<vmem>>, vector<1x192xf32>
    %c1 = arith.constant 1 : index
    %c0_3 = arith.constant 0 : index
    %2 = vector.load %arg6[%c1, %c0_3] : memref<4x192xf32, #tpu.memory_space<vmem>>, vector<1x128xf32>
    %c2 = arith.constant 2 : index
    %c0_4 = arith.constant 0 : index
    %3 = vector.load %arg6[%c2, %c0_4] : memref<4x192xf32, #tpu.memory_space<vmem>>, vector<1x32xf32>
    %c3 = arith.constant 3 : index
    %c0_5 = arith.constant 0 : index
    %4 = vector.load %arg6[%c3, %c0_5] : memref<4x192xf32, #tpu.memory_space<vmem>>, vector<1x32xf32>
    %cst = arith.constant dense<0.000000e+00> : vector<128xf32>
    %5 = vector.multi_reduction <add>, %0, %cst [1] : vector<128x32xf32> to vector<128xf32>
    %6 = vector.shape_cast %5 : vector<128xf32> to vector<128x1xf32>
    %cst_6 = arith.constant 3.200000e+01 : f32
    %7 = vector.broadcast %cst_6 : f32 to vector<128x1xf32>
    %8 = arith.divf %6, %7 : vector<128x1xf32>
    %9 = vector.broadcast %8 : vector<128x1xf32> to vector<128x32xf32>
    %10 = arith.subf %0, %9 : vector<128x32xf32>
    %11 = arith.mulf %10, %10 : vector<128x32xf32>
    %cst_7 = arith.constant dense<0.000000e+00> : vector<128xf32>
    %12 = vector.multi_reduction <add>, %11, %cst_7 [1] : vector<128x32xf32> to vector<128xf32>
    %13 = vector.shape_cast %12 : vector<128xf32> to vector<128x1xf32>
    %cst_8 = arith.constant 3.200000e+01 : f32
    %14 = vector.broadcast %cst_8 : f32 to vector<128x1xf32>
    %15 = arith.divf %13, %14 : vector<128x1xf32>
    %16 = vector.broadcast %8 : vector<128x1xf32> to vector<128x32xf32>
    %17 = arith.subf %0, %16 : vector<128x32xf32>
    %cst_9 = arith.constant 9.99999974E-6 : f32
    %18 = vector.broadcast %cst_9 : f32 to vector<128x1xf32>
    %19 = arith.addf %15, %18 : vector<128x1xf32>
    %20 = math.rsqrt %19 : vector<128x1xf32>
    %21 = vector.broadcast %20 : vector<128x1xf32> to vector<128x32xf32>
    %22 = arith.mulf %17, %21 : vector<128x32xf32>
    %c0_10 = arith.constant 0 : index
    %c0_11 = arith.constant 0 : index
    %23 = vector.load %arg3[%c0_10, %c0_11] : memref<32x192xf32, #tpu.memory_space<vmem>>, vector<32x192xf32>
    %cst_12 = arith.constant dense<0.000000e+00> : vector<128x192xf32>
    %24 = tpu.matmul %22, %23, %cst_12 {dimension_numbers = #tpu.dot_dimension_numbers<[1], [0], [0], [1], [0, 0, 1, 1], [], []>} : vector<128x32xf32>, vector<32x192xf32>, vector<128x192xf32> -> vector<128x192xf32>
    %25 = vector.broadcast %1 : vector<1x192xf32> to vector<128x192xf32>
    %26 = arith.addf %24, %25 : vector<128x192xf32>
    %27 = vector.extract_strided_slice %26 {offsets = [0, 0], sizes = [128, 8], strides = [1, 1]} : vector<128x192xf32> to vector<128x8xf32>
    %cst_13 = arith.constant 0.353553385 : f32
    %28 = vector.broadcast %cst_13 : f32 to vector<128x8xf32>
    %29 = arith.mulf %27, %28 : vector<128x8xf32>
    %30 = vector.extract_strided_slice %26 {offsets = [0, 32], sizes = [128, 8], strides = [1, 1]} : vector<128x192xf32> to vector<128x8xf32>
    %cst_14 = arith.constant dense<0.000000e+00> : vector<128x128xf32>
    %31 = tpu.matmul %29, %30, %cst_14 {dimension_numbers = #tpu.dot_dimension_numbers<[1], [1], [0], [0], [0, 0, 1, 0], [], []>} : vector<128x8xf32>, vector<128x8xf32>, vector<128x128xf32> -> vector<128x128xf32>
    %c0_15 = arith.constant 0 : index
    %c0_16 = arith.constant 0 : index
    %c0_17 = arith.constant 0 : index
    %32 = vector.load %arg2[%c0_15, %c0_16, %c0_17] : memref<4x128x128xf32, #tpu.memory_space<vmem>>, vector<1x128x128xf32>
    %33 = vector.shape_cast %32 : vector<1x128x128xf32> to vector<128x128xf32>
    %34 = arith.addf %31, %33 : vector<128x128xf32>
    %cst_18 = arith.constant dense<0xFF800000> : vector<128xf32>
    %35 = vector.multi_reduction <maximumf>, %34, %cst_18 [1] : vector<128x128xf32> to vector<128xf32>
    %36 = vector.shape_cast %35 : vector<128xf32> to vector<128x1xf32>
    %37 = vector.broadcast %36 : vector<128x1xf32> to vector<128x128xf32>
    %38 = arith.subf %34, %37 : vector<128x128xf32>
    %39 = math.exp %38 : vector<128x128xf32>
    %cst_19 = arith.constant dense<0.000000e+00> : vector<128xf32>
    %40 = vector.multi_reduction <add>, %39, %cst_19 [1] : vector<128x128xf32> to vector<128xf32>
    %41 = vector.shape_cast %40 : vector<128xf32> to vector<128x1xf32>
    %42 = tpu.reciprocal %41 {approx = true} : vector<128x1xf32> -> vector<128x1xf32>
    %43 = vector.broadcast %42 : vector<128x1xf32> to vector<128x128xf32>
    %44 = arith.mulf %39, %43 : vector<128x128xf32>
    %45 = vector.extract_strided_slice %26 {offsets = [0, 64], sizes = [128, 32], strides = [1, 1]} : vector<128x192xf32> to vector<128x32xf32>
    %cst_20 = arith.constant dense<0.000000e+00> : vector<128x32xf32>
    %46 = tpu.matmul %44, %45, %cst_20 {dimension_numbers = #tpu.dot_dimension_numbers<[1], [0], [0], [1], [0, 0, 1, 1], [], []>} : vector<128x128xf32>, vector<128x32xf32>, vector<128x32xf32> -> vector<128x32xf32>
    %47 = vector.broadcast %4 : vector<1x32xf32> to vector<128x32xf32>
    %48 = arith.addf %47, %46 : vector<128x32xf32>
    %49 = vector.extract_strided_slice %26 {offsets = [0, 8], sizes = [128, 8], strides = [1, 1]} : vector<128x192xf32> to vector<128x8xf32>
    %cst_21 = arith.constant 0.353553385 : f32
    %50 = vector.broadcast %cst_21 : f32 to vector<128x8xf32>
    %51 = arith.mulf %49, %50 : vector<128x8xf32>
    %52 = vector.extract_strided_slice %26 {offsets = [0, 40], sizes = [128, 8], strides = [1, 1]} : vector<128x192xf32> to vector<128x8xf32>
    %cst_22 = arith.constant dense<0.000000e+00> : vector<128x128xf32>
    %53 = tpu.matmul %51, %52, %cst_22 {dimension_numbers = #tpu.dot_dimension_numbers<[1], [1], [0], [0], [0, 0, 1, 0], [], []>} : vector<128x8xf32>, vector<128x8xf32>, vector<128x128xf32> -> vector<128x128xf32>
    %c1_23 = arith.constant 1 : index
    %c0_24 = arith.constant 0 : index
    %c0_25 = arith.constant 0 : index
    %54 = vector.load %arg2[%c1_23, %c0_24, %c0_25] : memref<4x128x128xf32, #tpu.memory_space<vmem>>, vector<1x128x128xf32>
    %55 = vector.shape_cast %54 : vector<1x128x128xf32> to vector<128x128xf32>
    %56 = arith.addf %53, %55 : vector<128x128xf32>
    %cst_26 = arith.constant dense<0xFF800000> : vector<128xf32>
    %57 = vector.multi_reduction <maximumf>, %56, %cst_26 [1] : vector<128x128xf32> to vector<128xf32>
    %58 = vector.shape_cast %57 : vector<128xf32> to vector<128x1xf32>
    %59 = vector.broadcast %58 : vector<128x1xf32> to vector<128x128xf32>
    %60 = arith.subf %56, %59 : vector<128x128xf32>
    %61 = math.exp %60 : vector<128x128xf32>
    %cst_27 = arith.constant dense<0.000000e+00> : vector<128xf32>
    %62 = vector.multi_reduction <add>, %61, %cst_27 [1] : vector<128x128xf32> to vector<128xf32>
    %63 = vector.shape_cast %62 : vector<128xf32> to vector<128x1xf32>
    %64 = tpu.reciprocal %63 {approx = true} : vector<128x1xf32> -> vector<128x1xf32>
    %65 = vector.broadcast %64 : vector<128x1xf32> to vector<128x128xf32>
    %66 = arith.mulf %61, %65 : vector<128x128xf32>
    %67 = vector.extract_strided_slice %26 {offsets = [0, 96], sizes = [128, 32], strides = [1, 1]} : vector<128x192xf32> to vector<128x32xf32>
    %cst_28 = arith.constant dense<0.000000e+00> : vector<128x32xf32>
    %68 = tpu.matmul %66, %67, %cst_28 {dimension_numbers = #tpu.dot_dimension_numbers<[1], [0], [0], [1], [0, 0, 1, 1], [], []>} : vector<128x128xf32>, vector<128x32xf32>, vector<128x32xf32> -> vector<128x32xf32>
    %69 = arith.addf %48, %68 : vector<128x32xf32>
    %70 = vector.extract_strided_slice %26 {offsets = [0, 16], sizes = [128, 8], strides = [1, 1]} : vector<128x192xf32> to vector<128x8xf32>
    %cst_29 = arith.constant 0.353553385 : f32
    %71 = vector.broadcast %cst_29 : f32 to vector<128x8xf32>
    %72 = arith.mulf %70, %71 : vector<128x8xf32>
    %73 = vector.extract_strided_slice %26 {offsets = [0, 48], sizes = [128, 8], strides = [1, 1]} : vector<128x192xf32> to vector<128x8xf32>
    %cst_30 = arith.constant dense<0.000000e+00> : vector<128x128xf32>
    %74 = tpu.matmul %72, %73, %cst_30 {dimension_numbers = #tpu.dot_dimension_numbers<[1], [1], [0], [0], [0, 0, 1, 0], [], []>} : vector<128x8xf32>, vector<128x8xf32>, vector<128x128xf32> -> vector<128x128xf32>
    %c2_31 = arith.constant 2 : index
    %c0_32 = arith.constant 0 : index
    %c0_33 = arith.constant 0 : index
    %75 = vector.load %arg2[%c2_31, %c0_32, %c0_33] : memref<4x128x128xf32, #tpu.memory_space<vmem>>, vector<1x128x128xf32>
    %76 = vector.shape_cast %75 : vector<1x128x128xf32> to vector<128x128xf32>
    %77 = arith.addf %74, %76 : vector<128x128xf32>
    %cst_34 = arith.constant dense<0xFF800000> : vector<128xf32>
    %78 = vector.multi_reduction <maximumf>, %77, %cst_34 [1] : vector<128x128xf32> to vector<128xf32>
    %79 = vector.shape_cast %78 : vector<128xf32> to vector<128x1xf32>
    %80 = vector.broadcast %79 : vector<128x1xf32> to vector<128x128xf32>
    %81 = arith.subf %77, %80 : vector<128x128xf32>
    %82 = math.exp %81 : vector<128x128xf32>
    %cst_35 = arith.constant dense<0.000000e+00> : vector<128xf32>
    %83 = vector.multi_reduction <add>, %82, %cst_35 [1] : vector<128x128xf32> to vector<128xf32>
    %84 = vector.shape_cast %83 : vector<128xf32> to vector<128x1xf32>
    %85 = tpu.reciprocal %84 {approx = true} : vector<128x1xf32> -> vector<128x1xf32>
    %86 = vector.broadcast %85 : vector<128x1xf32> to vector<128x128xf32>
    %87 = arith.mulf %82, %86 : vector<128x128xf32>
    %88 = vector.extract_strided_slice %26 {offsets = [0, 128], sizes = [128, 32], strides = [1, 1]} : vector<128x192xf32> to vector<128x32xf32>
    %cst_36 = arith.constant dense<0.000000e+00> : vector<128x32xf32>
    %89 = tpu.matmul %87, %88, %cst_36 {dimension_numbers = #tpu.dot_dimension_numbers<[1], [0], [0], [1], [0, 0, 1, 1], [], []>} : vector<128x128xf32>, vector<128x32xf32>, vector<128x32xf32> -> vector<128x32xf32>
    %90 = arith.addf %69, %89 : vector<128x32xf32>
    %91 = vector.extract_strided_slice %26 {offsets = [0, 24], sizes = [128, 8], strides = [1, 1]} : vector<128x192xf32> to vector<128x8xf32>
    %cst_37 = arith.constant 0.353553385 : f32
    %92 = vector.broadcast %cst_37 : f32 to vector<128x8xf32>
    %93 = arith.mulf %91, %92 : vector<128x8xf32>
    %94 = vector.extract_strided_slice %26 {offsets = [0, 56], sizes = [128, 8], strides = [1, 1]} : vector<128x192xf32> to vector<128x8xf32>
    %cst_38 = arith.constant dense<0.000000e+00> : vector<128x128xf32>
    %95 = tpu.matmul %93, %94, %cst_38 {dimension_numbers = #tpu.dot_dimension_numbers<[1], [1], [0], [0], [0, 0, 1, 0], [], []>} : vector<128x8xf32>, vector<128x8xf32>, vector<128x128xf32> -> vector<128x128xf32>
    %c3_39 = arith.constant 3 : index
    %c0_40 = arith.constant 0 : index
    %c0_41 = arith.constant 0 : index
    %96 = vector.load %arg2[%c3_39, %c0_40, %c0_41] : memref<4x128x128xf32, #tpu.memory_space<vmem>>, vector<1x128x128xf32>
    %97 = vector.shape_cast %96 : vector<1x128x128xf32> to vector<128x128xf32>
    %98 = arith.addf %95, %97 : vector<128x128xf32>
    %cst_42 = arith.constant dense<0xFF800000> : vector<128xf32>
    %99 = vector.multi_reduction <maximumf>, %98, %cst_42 [1] : vector<128x128xf32> to vector<128xf32>
    %100 = vector.shape_cast %99 : vector<128xf32> to vector<128x1xf32>
    %101 = vector.broadcast %100 : vector<128x1xf32> to vector<128x128xf32>
    %102 = arith.subf %98, %101 : vector<128x128xf32>
    %103 = math.exp %102 : vector<128x128xf32>
    %cst_43 = arith.constant dense<0.000000e+00> : vector<128xf32>
    %104 = vector.multi_reduction <add>, %103, %cst_43 [1] : vector<128x128xf32> to vector<128xf32>
    %105 = vector.shape_cast %104 : vector<128xf32> to vector<128x1xf32>
    %106 = tpu.reciprocal %105 {approx = true} : vector<128x1xf32> -> vector<128x1xf32>
    %107 = vector.broadcast %106 : vector<128x1xf32> to vector<128x128xf32>
    %108 = arith.mulf %103, %107 : vector<128x128xf32>
    %109 = vector.extract_strided_slice %26 {offsets = [0, 160], sizes = [128, 32], strides = [1, 1]} : vector<128x192xf32> to vector<128x32xf32>
    %cst_44 = arith.constant dense<0.000000e+00> : vector<128x32xf32>
    %110 = tpu.matmul %108, %109, %cst_44 {dimension_numbers = #tpu.dot_dimension_numbers<[1], [0], [0], [1], [0, 0, 1, 1], [], []>} : vector<128x128xf32>, vector<128x32xf32>, vector<128x32xf32> -> vector<128x32xf32>
    %111 = arith.addf %90, %110 : vector<128x32xf32>
    %112 = arith.addf %0, %111 : vector<128x32xf32>
    %cst_45 = arith.constant dense<0.000000e+00> : vector<128xf32>
    %113 = vector.multi_reduction <add>, %112, %cst_45 [1] : vector<128x32xf32> to vector<128xf32>
    %114 = vector.shape_cast %113 : vector<128xf32> to vector<128x1xf32>
    %cst_46 = arith.constant 3.200000e+01 : f32
    %115 = vector.broadcast %cst_46 : f32 to vector<128x1xf32>
    %116 = arith.divf %114, %115 : vector<128x1xf32>
    %117 = vector.broadcast %116 : vector<128x1xf32> to vector<128x32xf32>
    %118 = arith.subf %112, %117 : vector<128x32xf32>
    %119 = arith.mulf %118, %118 : vector<128x32xf32>
    %cst_47 = arith.constant dense<0.000000e+00> : vector<128xf32>
    %120 = vector.multi_reduction <add>, %119, %cst_47 [1] : vector<128x32xf32> to vector<128xf32>
    %121 = vector.shape_cast %120 : vector<128xf32> to vector<128x1xf32>
    %cst_48 = arith.constant 3.200000e+01 : f32
    %122 = vector.broadcast %cst_48 : f32 to vector<128x1xf32>
    %123 = arith.divf %121, %122 : vector<128x1xf32>
    %124 = vector.broadcast %116 : vector<128x1xf32> to vector<128x32xf32>
    %125 = arith.subf %112, %124 : vector<128x32xf32>
    %cst_49 = arith.constant 9.99999974E-6 : f32
    %126 = vector.broadcast %cst_49 : f32 to vector<128x1xf32>
    %127 = arith.addf %123, %126 : vector<128x1xf32>
    %128 = math.rsqrt %127 : vector<128x1xf32>
    %129 = vector.broadcast %128 : vector<128x1xf32> to vector<128x32xf32>
    %130 = arith.mulf %125, %129 : vector<128x32xf32>
    %c0_50 = arith.constant 0 : index
    %c0_51 = arith.constant 0 : index
    %131 = vector.load %arg4[%c0_50, %c0_51] : memref<32x128xf32, #tpu.memory_space<vmem>>, vector<32x128xf32>
    %cst_52 = arith.constant dense<0.000000e+00> : vector<128x128xf32>
    %132 = tpu.matmul %130, %131, %cst_52 {dimension_numbers = #tpu.dot_dimension_numbers<[1], [0], [0], [1], [0, 0, 1, 1], [], []>} : vector<128x32xf32>, vector<32x128xf32>, vector<128x128xf32> -> vector<128x128xf32>
    %133 = vector.broadcast %2 : vector<1x128xf32> to vector<128x128xf32>
    %134 = arith.addf %132, %133 : vector<128x128xf32>
    %cst_53 = arith.constant 5.000000e-01 : f32
    %135 = vector.broadcast %cst_53 : f32 to vector<128x128xf32>
    %136 = arith.mulf %135, %134 : vector<128x128xf32>
    %cst_54 = arith.constant 0.707106769 : f32
    %137 = vector.broadcast %cst_54 : f32 to vector<128x128xf32>
    %138 = arith.mulf %134, %137 : vector<128x128xf32>
    %139 = math.erf %138 : vector<128x128xf32>
    %cst_55 = arith.constant 1.000000e+00 : f32
    %140 = vector.broadcast %cst_55 : f32 to vector<128x128xf32>
    %141 = arith.addf %140, %139 : vector<128x128xf32>
    %142 = arith.mulf %136, %141 : vector<128x128xf32>
    %c0_56 = arith.constant 0 : index
    %c0_57 = arith.constant 0 : index
    %143 = vector.load %arg5[%c0_56, %c0_57] : memref<128x32xf32, #tpu.memory_space<vmem>>, vector<128x32xf32>
    %cst_58 = arith.constant dense<0.000000e+00> : vector<128x32xf32>
    %144 = tpu.matmul %142, %143, %cst_58 {dimension_numbers = #tpu.dot_dimension_numbers<[1], [0], [0], [1], [0, 0, 1, 1], [], []>} : vector<128x128xf32>, vector<128x32xf32>, vector<128x32xf32> -> vector<128x32xf32>
    %145 = vector.broadcast %3 : vector<1x32xf32> to vector<128x32xf32>
    %146 = arith.addf %144, %145 : vector<128x32xf32>
    %147 = arith.addf %112, %146 : vector<128x32xf32>
    %c0_59 = arith.constant 0 : index
    %c0_60 = arith.constant 0 : index
    %148 = vector.load %arg7[%c0_59, %c0_60] : memref<128x32xf32, #tpu.memory_space<vmem>>, vector<128x32xf32>
    tpu.vector_store %arg7[%c0_59, %c0_60], %147 {strides = array<i32>} : memref<128x32xf32, #tpu.memory_space<vmem>>, vector<128x32xf32>,
    return
  }
  func.func @transform_0(%arg0: i32) -> (i32, i32) {
    %c0_i32 = arith.constant 0 : i32
    %c0_i32_0 = arith.constant 0 : i32
    %c0_i32_1 = arith.constant 0 : i32
    return %c0_i32, %c0_i32_0 : i32, i32
  }
  func.func @transform_1(%arg0: i32) -> (i32, i32, i32) {
    %c0_i32 = arith.constant 0 : i32
    %c0_i32_0 = arith.constant 0 : i32
    %c0_i32_1 = arith.constant 0 : i32
    %c0_i32_2 = arith.constant 0 : i32
    return %c0_i32, %c0_i32_0, %c0_i32_1 : i32, i32, i32
  }
  func.func @transform_2(%arg0: i32) -> (i32, i32) {
    %c0_i32 = arith.constant 0 : i32
    %c0_i32_0 = arith.constant 0 : i32
    %c0_i32_1 = arith.constant 0 : i32
    return %c0_i32, %c0_i32_0 : i32, i32
  }
  func.func @transform_3(%arg0: i32) -> (i32, i32) {
    %c0_i32 = arith.constant 0 : i32
    %c0_i32_0 = arith.constant 0 : i32
    %c0_i32_1 = arith.constant 0 : i32
    return %c0_i32, %c0_i32_0 : i32, i32
  }
  func.func @transform_4(%arg0: i32) -> (i32, i32) {
    %c0_i32 = arith.constant 0 : i32
    %c0_i32_0 = arith.constant 0 : i32
    %c0_i32_1 = arith.constant 0 : i32
    return %c0_i32, %c0_i32_0 : i32, i32
  }
  func.func @transform_5(%arg0: i32) -> (i32, i32) {
    %c0_i32 = arith.constant 0 : i32
    %c0_i32_0 = arith.constant 0 : i32
    %c0_i32_1 = arith.constant 0 : i32
    return %c0_i32, %c0_i32_0 : i32, i32
  }
  func.func @transform_6(%arg0: i32) -> (i32, i32) {
    %c0_i32 = arith.constant 0 : i32
    %c0_i32_0 = arith.constant 0 : i32
    %c0_i32_1 = arith.constant 0 : i32
    return %c0_i32, %c0_i32_0 : i32, i32
  }
}

</mosaic_0001>

<llo_original>
// kernel: swin_block_forward.1
$region0: #{swin_block_forward.1}
  #allocation0 [shape = 'u32[]', space=smem, size = 0x4, offset = 0x4, fixed_abs, tag = 'smem constant byte address 0x4 - core index']
  #allocation1 [shape = 'u32[144,128]{1,0:T(1,128)}', space=vmem, size = 0x12000, scoped, tag = 'internal scratch']
  %s0 = inlined_call_operand.vmem [shape: f32[128,32], index: 0, kind: input, shape index: {}]
  %s1 = inlined_call_operand.hbm [shape: f32[4,128,128], index: 1, kind: input, shape index: {}]
  %s2 = inlined_call_operand.hbm [shape: f32[32,192], index: 2, kind: input, shape index: {}]
  %s3 = inlined_call_operand.vmem [shape: f32[32,128], index: 3, kind: input, shape index: {}]
  %s4 = inlined_call_operand.vmem [shape: f32[128,32], index: 4, kind: input, shape index: {}]
  %s5 = inlined_call_operand.hbm [shape: f32[4,192], index: 5, kind: input, shape index: {}]
  %s6 = inlined_call_operand.hbm [shape: f32[128,32], index: 6, kind: output, shape index: {}]
  %s7 = sld [smem:[#allocation0]]
  $region46: #{swin_block_forward.1} parent=0
    _
  %s9 = ssub.s32 1, %s7
  %s10 = scalar_select 0, %s9, %s7
  $region1: #{swin_block_forward.1} parent=0
    #allocation2 [shape = 'u8[262144]{0}', space=vmem, size = 0x40000, scoped, tag = 'input window, operand 1, single buffered']
    #allocation3 [shape = 's32[1]{0}', space=sflag, size = 0x4, scoped, tag = 'scoped memory for swin_block_forward.1']
    #allocation4 [shape = 's32[1]{0}', space=sflag, size = 0x4, scoped, tag = 'scoped memory for swin_block_forward.1']
    #allocation5 [shape = 'u8[32768]{0}', space=vmem, size = 0x8000, scoped, tag = 'input window, operand 2, single buffered']
    #allocation6 [shape = 's32[1]{0}', space=sflag, size = 0x4, scoped, tag = 'scoped memory for swin_block_forward.1']
    #allocation7 [shape = 'u8[4096]{0}', space=vmem, size = 0x1000, scoped, tag = 'input window, operand 5, single buffered']
    #allocation8 [shape = 'u8[65536]{0}', space=vmem, size = 0x10000, scoped, tag = 'output window, operand 0, single buffered']
    %11 = vsyncpa [#allocation3], 0
    %12 = vsyncpa [#allocation6], 0
    %13 = vsyncpa [#allocation4], 0
    // Predicated region
    $region2: #{swin_block_forward.1} parent=1 // pred_check
      _
    $region3: #{swin_block_forward.1} parent=1 // pred_check_branch
      %15 = sbr.rel (0) target = $region5
    $region4: #{swin_block_forward.1} parent=1 // pred_region
      _
    $region5: #{swin_block_forward.1} parent=1 // pred_fallthru
      _
    // Predicated region
    $region6: #{swin_block_forward.1} parent=1 // pred_check
      _
    $region7: #{swin_block_forward.1} parent=1 // pred_check_branch
      %17 = sbr.rel (0) target = $region9
    $region8: #{swin_block_forward.1} parent=1 // pred_region
      %s19 = ssub.s32 8192, 8192
      %20 = vsyncadd [#allocation3], %s19
      %s21 = sshll.u32 [#allocation2], 4
      %s22 = int_to_ptr.vmem [resolvable:$true] %s21
      %27 = dma.hbm_to_vmem [thread:$0]  %s1, 8192, %s22, [#allocation3], 128, 128, 8
    $region9: #{swin_block_forward.1} parent=1 // pred_fallthru
      _
    // Predicated region
    $region10: #{swin_block_forward.1} parent=1 // pred_check
      _
    $region11: #{swin_block_forward.1} parent=1 // pred_check_branch
      %29 = sbr.rel (0) target = $region13
    $region12: #{swin_block_forward.1} parent=1 // pred_region
      %s31 = ssub.s32 1024, 1024
      %32 = vsyncadd [#allocation6], %s31
      %s33 = sshll.u32 [#allocation5], 4
      %s34 = int_to_ptr.vmem [resolvable:$true] %s33
      %39 = dma.hbm_to_vmem [thread:$0]  %s2, 1024, %s34, [#allocation6], 256, 256, 16
    $region13: #{swin_block_forward.1} parent=1 // pred_fallthru
      _
    // Predicated region
    $region14: #{swin_block_forward.1} parent=1 // pred_check
      _
    $region15: #{swin_block_forward.1} parent=1 // pred_check_branch
      %41 = sbr.rel (0) target = $region17
    $region16: #{swin_block_forward.1} parent=1 // pred_region
      _
    $region17: #{swin_block_forward.1} parent=1 // pred_fallthru
      _
    // Predicated region
    $region18: #{swin_block_forward.1} parent=1 // pred_check
      _
    $region19: #{swin_block_forward.1} parent=1 // pred_check_branch
      %43 = sbr.rel (0) target = $region21
    $region20: #{swin_block_forward.1} parent=1 // pred_region
      _
    $region21: #{swin_block_forward.1} parent=1 // pred_fallthru
      _
    // Predicated region
    $region22: #{swin_block_forward.1} parent=1 // pred_check
      _
    $region23: #{swin_block_forward.1} parent=1 // pred_check_branch
      %45 = sbr.rel (0) target = $region25
    $region24: #{swin_block_forward.1} parent=1 // pred_region
      %s47 = ssub.s32 128, 128
      %48 = vsyncadd [#allocation6], %s47
      %s50 = sshll.u32 [#allocation7], 4
      %s51 = int_to_ptr.vmem [resolvable:$true] %s50
      %53 = dma.hbm_to_vmem [thread:$0]  %s5, 128, %s51, [#allocation6]
    $region25: #{swin_block_forward.1} parent=1 // pred_fallthru
      _
    // Predicated region
    $region26: #{swin_block_forward.1} parent=1 // pred_check
      _
    $region27: #{swin_block_forward.1} parent=1 // pred_check_branch
      %55 = sbr.rel (0) target = $region29
    $region28: #{swin_block_forward.1} parent=1 // pred_region
      %56 = dma.done [#allocation3], 8192
    $region29: #{swin_block_forward.1} parent=1 // pred_fallthru
      _
    // Predicated region
    $region30: #{swin_block_forward.1} parent=1 // pred_check
      _
    $region31: #{swin_block_forward.1} parent=1 // pred_check_branch
      %58 = sbr.rel (0) target = $region33
    $region32: #{swin_block_forward.1} parent=1 // pred_region
      %59 = dma.done [#allocation6], 1024
    $region33: #{swin_block_forward.1} parent=1 // pred_fallthru
      _
    // Predicated region
    $region34: #{swin_block_forward.1} parent=1 // pred_check
      _
    $region35: #{swin_block_forward.1} parent=1 // pred_check_branch
      %61 = sbr.rel (0) target = $region37
    $region36: #{swin_block_forward.1} parent=1 // pred_region
      %62 = dma.done [#allocation6], 128
    $region37: #{swin_block_forward.1} parent=1 // pred_fallthru
      _
    %v63 = vld [vmem:[%s0] sm:$0xff]
    %v64 = vld [vmem:[%s0 + $0x8] sm:$0xff]
    %v65 = vld [vmem:[%s0 + $0x10] sm:$0xff]
    %v66 = vld [vmem:[%s0 + $0x18] sm:$0xff]
    %v67 = vld [vmem:[%s0 + $0x20] sm:$0xff]
    %v68 = vld [vmem:[%s0 + $0x28] sm:$0xff]
    %v69 = vld [vmem:[%s0 + $0x30] sm:$0xff]
    %v70 = vld [vmem:[%s0 + $0x38] sm:$0xff]
    %v71 = vld [vmem:[%s0 + $0x40] sm:$0xff]
    %v72 = vld [vmem:[%s0 + $0x48] sm:$0xff]
    %v73 = vld [vmem:[%s0 + $0x50] sm:$0xff]
    %v74 = vld [vmem:[%s0 + $0x58] sm:$0xff]
    %v75 = vld [vmem:[%s0 + $0x60] sm:$0xff]
    %v76 = vld [vmem:[%s0 + $0x68] sm:$0xff]
    %v77 = vld [vmem:[%s0 + $0x70] sm:$0xff]
    %v78 = vld [vmem:[%s0 + $0x78] sm:$0xff]
    %v79 = vld [vmem:[#allocation7] ss:$4 sm:$0x3]
    %v80 = vld [vmem:[#allocation7 + $0x1] sm:$0x1]
    %v81 = vld [vmem:[#allocation7 + $0x2] sm:$0x1]
    %v82 = vld [vmem:[#allocation7 + $0x3] sm:$0x1]
    %vm83 = vcmask 261120
    %v84 = vsel %vm83, %v63, 0.0
    %85 = vadd.xlane.f32.xlu0 %v84
    %v86 = vpop.xlane.xlu0 %85
    %v87 = vsel %vm83, %v64, 0.0
    %88 = vadd.xlane.f32.xlu0 %v87
    %v89 = vpop.xlane.xlu0 %88
    %v90 = vsel %vm83, %v65, 0.0
    %91 = vadd.xlane.f32.xlu0 %v90
    %v92 = vpop.xlane.xlu0 %91
    %v93 = vsel %vm83, %v66, 0.0
    %94 = vadd.xlane.f32.xlu0 %v93
    %v95 = vpop.xlane.xlu0 %94
    %v96 = vsel %vm83, %v67, 0.0
    %97 = vadd.xlane.f32.xlu0 %v96
    %v98 = vpop.xlane.xlu0 %97
    %v99 = vsel %vm83, %v68, 0.0
    %100 = vadd.xlane.f32.xlu0 %v99
    %v101 = vpop.xlane.xlu0 %100
    %v102 = vsel %vm83, %v69, 0.0
    %103 = vadd.xlane.f32.xlu0 %v102
    %v104 = vpop.xlane.xlu0 %103
    %v105 = vsel %vm83, %v70, 0.0
    %106 = vadd.xlane.f32.xlu0 %v105
    %v107 = vpop.xlane.xlu0 %106
    %v108 = vsel %vm83, %v71, 0.0
    %109 = vadd.xlane.f32.xlu0 %v108
    %v110 = vpop.xlane.xlu0 %109
    %v111 = vsel %vm83, %v72, 0.0
    %112 = vadd.xlane.f32.xlu0 %v111
    %v113 = vpop.xlane.xlu0 %112
    %v114 = vsel %vm83, %v73, 0.0
    %115 = vadd.xlane.f32.xlu0 %v114
    %v116 = vpop.xlane.xlu0 %115
    %v117 = vsel %vm83, %v74, 0.0
    %118 = vadd.xlane.f32.xlu0 %v117
    %v119 = vpop.xlane.xlu0 %118
    %v120 = vsel %vm83, %v75, 0.0
    %121 = vadd.xlane.f32.xlu0 %v120
    %v122 = vpop.xlane.xlu0 %121
    %v123 = vsel %vm83, %v76, 0.0
    %124 = vadd.xlane.f32.xlu0 %v123
    %v125 = vpop.xlane.xlu0 %124
    %v126 = vsel %vm83, %v77, 0.0
    %127 = vadd.xlane.f32.xlu0 %v126
    %v128 = vpop.xlane.xlu0 %127
    %v129 = vsel %vm83, %v78, 0.0
    %130 = vadd.xlane.f32.xlu0 %v129
    %v131 = vpop.xlane.xlu0 %130
    %v132 = vrcp.pop 32.0
    %v133 = vmul.f32 %v86, %v132
    %v134 = vmul.f32 %v89, %v132
    %v135 = vmul.f32 %v92, %v132
    %v136 = vmul.f32 %v95, %v132
    %v137 = vmul.f32 %v98, %v132
    %v138 = vmul.f32 %v101, %v132
    %v139 = vmul.f32 %v104, %v132
    %v140 = vmul.f32 %v107, %v132
    %v141 = vmul.f32 %v110, %v132
    %v142 = vmul.f32 %v113, %v132
    %v143 = vmul.f32 %v116, %v132
    %v144 = vmul.f32 %v119, %v132
    %v145 = vmul.f32 %v122, %v132
    %v146 = vmul.f32 %v125, %v132
    %v147 = vmul.f32 %v128, %v132
    %v148 = vmul.f32 %v131, %v132
    %v149 = vsub.f32 %v63, %v133
    %v150 = vsub.f32 %v64, %v134
    %v151 = vsub.f32 %v65, %v135
    %v152 = vsub.f32 %v66, %v136
    %v153 = vsub.f32 %v67, %v137
    %v154 = vsub.f32 %v68, %v138
    %v155 = vsub.f32 %v69, %v139
    %v156 = vsub.f32 %v70, %v140
    %v157 = vsub.f32 %v71, %v141
    %v158 = vsub.f32 %v72, %v142
    %v159 = vsub.f32 %v73, %v143
    %v160 = vsub.f32 %v74, %v144
    %v161 = vsub.f32 %v75, %v145
    %v162 = vsub.f32 %v76, %v146
    %v163 = vsub.f32 %v77, %v147
    %v164 = vsub.f32 %v78, %v148
    %v165 = vmul.f32 %v149, %v149
    %v166 = vmul.f32 %v150, %v150
    %v167 = vmul.f32 %v151, %v151
    %v168 = vmul.f32 %v152, %v152
    %v169 = vmul.f32 %v153, %v153
    %v170 = vmul.f32 %v154, %v154
    %v171 = vmul.f32 %v155, %v155
    %v172 = vmul.f32 %v156, %v156
    %v173 = vmul.f32 %v157, %v157
    %v174 = vmul.f32 %v158, %v158
    %v175 = vmul.f32 %v159, %v159
    %v176 = vmul.f32 %v160, %v160
    %v177 = vmul.f32 %v161, %v161
    %v178 = vmul.f32 %v162, %v162
    %v179 = vmul.f32 %v163, %v163
    %v180 = vmul.f32 %v164, %v164
    %v181 = vsel %vm83, %v165, 0.0
    %182 = vadd.xlane.f32.xlu0 %v181
    %v183 = vpop.xlane.xlu0 %182
    %v184 = vsel %vm83, %v166, 0.0
    %185 = vadd.xlane.f32.xlu0 %v184
    %v186 = vpop.xlane.xlu0 %185
    %v187 = vsel %vm83, %v167, 0.0
    %188 = vadd.xlane.f32.xlu0 %v187
    %v189 = vpop.xlane.xlu0 %188
    %v190 = vsel %vm83, %v168, 0.0
    %191 = vadd.xlane.f32.xlu0 %v190
    %v192 = vpop.xlane.xlu0 %191
    %v193 = vsel %vm83, %v169, 0.0
    %194 = vadd.xlane.f32.xlu0 %v193
    %v195 = vpop.xlane.xlu0 %194
    %v196 = vsel %vm83, %v170, 0.0
    %197 = vadd.xlane.f32.xlu0 %v196
    %v198 = vpop.xlane.xlu0 %197
    %v199 = vsel %vm83, %v171, 0.0
    %200 = vadd.xlane.f32.xlu0 %v199
    %v201 = vpop.xlane.xlu0 %200
    %v202 = vsel %vm83, %v172, 0.0
    %203 = vadd.xlane.f32.xlu0 %v202
    %v204 = vpop.xlane.xlu0 %203
    %v205 = vsel %vm83, %v173, 0.0
    %206 = vadd.xlane.f32.xlu0 %v205
    %v207 = vpop.xlane.xlu0 %206
    %v208 = vsel %vm83, %v174, 0.0
    %209 = vadd.xlane.f32.xlu0 %v208
    %v210 = vpop.xlane.xlu0 %209
    %v211 = vsel %vm83, %v175, 0.0
    %212 = vadd.xlane.f32.xlu0 %v211
    %v213 = vpop.xlane.xlu0 %212
    %v214 = vsel %vm83, %v176, 0.0
    %215 = vadd.xlane.f32.xlu0 %v214
    %v216 = vpop.xlane.xlu0 %215
    %v217 = vsel %vm83, %v177, 0.0
    %218 = vadd.xlane.f32.xlu0 %v217
    %v219 = vpop.xlane.xlu0 %218
    %v220 = vsel %vm83, %v178, 0.0
    %221 = vadd.xlane.f32.xlu0 %v220
    %v222 = vpop.xlane.xlu0 %221
    %v223 = vsel %vm83, %v179, 0.0
    %224 = vadd.xlane.f32.xlu0 %v223
    %v225 = vpop.xlane.xlu0 %224
    %v226 = vsel %vm83, %v180, 0.0
    %227 = vadd.xlane.f32.xlu0 %v226
    %v228 = vpop.xlane.xlu0 %227
    %v229 = vmul.f32 %v183, %v132
    %v230 = vmul.f32 %v186, %v132
    %v231 = vmul.f32 %v189, %v132
    %v232 = vmul.f32 %v192, %v132
    %v233 = vmul.f32 %v195, %v132
    %v234 = vmul.f32 %v198, %v132
    %v235 = vmul.f32 %v201, %v132
    %v236 = vmul.f32 %v204, %v132
    %v237 = vmul.f32 %v207, %v132
    %v238 = vmul.f32 %v210, %v132
    %v239 = vmul.f32 %v213, %v132
    %v240 = vmul.f32 %v216, %v132
    %v241 = vmul.f32 %v219, %v132
    %v242 = vmul.f32 %v222, %v132
    %v243 = vmul.f32 %v225, %v132
    %v244 = vmul.f32 %v228, %v132
    %v245 = vadd.f32 %v229, 1e-05
    %v246 = vadd.f32 %v230, 1e-05
    %v247 = vadd.f32 %v231, 1e-05
    %v248 = vadd.f32 %v232, 1e-05
    %v249 = vadd.f32 %v233, 1e-05
    %v250 = vadd.f32 %v234, 1e-05
    %v251 = vadd.f32 %v235, 1e-05
    %v252 = vadd.f32 %v236, 1e-05
    %v253 = vadd.f32 %v237, 1e-05
    %v254 = vadd.f32 %v238, 1e-05
    %v255 = vadd.f32 %v239, 1e-05
    %v256 = vadd.f32 %v240, 1e-05
    %v257 = vadd.f32 %v241, 1e-05
    %v258 = vadd.f32 %v242, 1e-05
    %v259 = vadd.f32 %v243, 1e-05
    %v260 = vadd.f32 %v244, 1e-05
    %v261 = vrsqrt.pop %v245
    %v262 = vrsqrt.pop %v246
    %v263 = vrsqrt.pop %v247
    %v264 = vrsqrt.pop %v248
    %v265 = vrsqrt.pop %v249
    %v266 = vrsqrt.pop %v250
    %v267 = vrsqrt.pop %v251
    %v268 = vrsqrt.pop %v252
    %v269 = vrsqrt.pop %v253
    %v270 = vrsqrt.pop %v254
    %v271 = vrsqrt.pop %v255
    %v272 = vrsqrt.pop %v256
    %v273 = vrsqrt.pop %v257
    %v274 = vrsqrt.pop %v258
    %v275 = vrsqrt.pop %v259
    %v276 = vrsqrt.pop %v260
    %v277 = vmul.f32 %v149, %v261
    %v278 = vmul.f32 %v150, %v262
    %v279 = vmul.f32 %v151, %v263
    %v280 = vmul.f32 %v152, %v264
    %v281 = vmul.f32 %v153, %v265
    %v282 = vmul.f32 %v154, %v266
    %v283 = vmul.f32 %v155, %v267
    %v284 = vmul.f32 %v156, %v268
    %v285 = vmul.f32 %v157, %v269
    %v286 = vmul.f32 %v158, %v270
    %v287 = vmul.f32 %v159, %v271
    %v288 = vmul.f32 %v160, %v272
    %v289 = vmul.f32 %v161, %v273
    %v290 = vmul.f32 %v162, %v274
    %v291 = vmul.f32 %v163, %v275
    %v292 = vmul.f32 %v164, %v276
    %v293 = vld [vmem:[#allocation5] sm:$0xff]
    %v294 = vld [vmem:[#allocation5 + $0x8] sm:$0xff]
    %v295 = vld [vmem:[#allocation5 + $0x10] sm:$0xff]
    %v296 = vld [vmem:[#allocation5 + $0x18] sm:$0xff]
    %v297 = vld [vmem:[#allocation5 + $0x20] sm:$0xff]
    %v298 = vld [vmem:[#allocation5 + $0x28] sm:$0xff]
    %v299 = vld [vmem:[#allocation5 + $0x30] sm:$0xff]
    %v300 = vld [vmem:[#allocation5 + $0x38] sm:$0xff]
    %v302 = vlaneseq
    %v303 = vshrl.u32 %v302, 7
    %v304 = vsub.s32 0, %v303
    %v305 = vrot.slane %v79, %v304
    %v306 = vlaneseq
    %v307 = vshrl.u32 %v306, 7
    %v308 = vsub.s32 1, %v307
    %v309 = vrot.slane %v79, %v308
    %v313 = vsel %vm83, %v277, 0
    %v316 = vsel %vm83, %v278, 0
    %v319 = vsel %vm83, %v279, 0
    %v322 = vsel %vm83, %v280, 0
    %v325 = vsel %vm83, %v281, 0
    %v328 = vsel %vm83, %v282, 0
    %v331 = vsel %vm83, %v283, 0
    %v334 = vsel %vm83, %v284, 0
    %v337 = vsel %vm83, %v285, 0
    %v340 = vsel %vm83, %v286, 0
    %v343 = vsel %vm83, %v287, 0
    %v346 = vsel %vm83, %v288, 0
    %v349 = vsel %vm83, %v289, 0
    %v352 = vsel %vm83, %v290, 0
    %v355 = vsel %vm83, %v291, 0
    %v358 = vsel %vm83, %v292, 0
    %360 = vmatprep.subr.mxu0 0.0
    %361 = vmatpush1.msra.mxu0 0.0
    %362 = vmatprep.subr.mxu0 0.0
    %363 = vmatpush1.msra.mxu0 0.0
    %364 = vmatprep.subr.mxu0 0.0
    %365 = vmatpush1.msra.mxu0 0.0
    %366 = vmatprep.subr.mxu0 0.0
    %367 = vmatpush1.msra.mxu0 0.0
    %368 = vmatprep.subr.mxu0 0.0
    %369 = vmatpush1.msra.mxu0 0.0
    %370 = vmatprep.subr.mxu0 0.0
    %371 = vmatpush1.msra.mxu0 0.0
    %372 = vmatprep.subr.mxu0 0.0
    %373 = vmatpush1.msra.mxu0 0.0
    %374 = vmatprep.subr.mxu0 0.0
    %375 = vmatpush1.msra.mxu0 0.0
    %376 = vmatprep.subr.mxu0 0.0
    %377 = vmatpush1.msra.mxu0 0.0
    %378 = vmatprep.subr.mxu0 0.0
    %379 = vmatpush1.msra.mxu0 0.0
    %380 = vmatprep.subr.mxu0 0.0
    %381 = vmatpush1.msra.mxu0 0.0
    %382 = vmatprep.subr.mxu0 0.0
    %383 = vmatpush1.msra.mxu0 0.0
    %384 = vmatprep.subr.mxu0 %v300
    %385 = vmatpush1.msra.mxu0 %v299
    %386 = vmatprep.subr.mxu0 %v298
    %387 = vmatpush1.msra.mxu0 %v297
    %388 = vmatprep.subr.mxu0 %v296
    %389 = vmatpush1.msra.mxu0 %v295
    %390 = vmatprep.subr.mxu0 %v294
    %391 = vmatpush1.msra.mxu0 %v293
    %392 = vmatprep.subr.mxu0 0.0
    %393 = vmatpush2.msra.mxu0 0.0
    %394 = vmatprep.subr.mxu0 0.0
    %395 = vmatpush2.msra.mxu0 0.0
    %396 = vmatprep.subr.mxu0 0.0
    %397 = vmatpush2.msra.mxu0 0.0
    %398 = vmatprep.subr.mxu0 0.0
    %399 = vmatpush2.msra.mxu0 0.0
    %400 = vmatprep.subr.mxu0 0.0
    %401 = vmatpush2.msra.mxu0 0.0
    %402 = vmatprep.subr.mxu0 0.0
    %403 = vmatpush2.msra.mxu0 0.0
    %404 = vmatprep.subr.mxu0 0.0
    %405 = vmatpush2.msra.mxu0 0.0
    %406 = vmatprep.subr.mxu0 0.0
    %407 = vmatpush2.msra.mxu0 0.0
    %408 = vmatprep.subr.mxu0 0.0
    %409 = vmatpush2.msra.mxu0 0.0
    %410 = vmatprep.subr.mxu0 0.0
    %411 = vmatpush2.msra.mxu0 0.0
    %412 = vmatprep.subr.mxu0 0.0
    %413 = vmatpush2.msra.mxu0 0.0
    %414 = vmatprep.subr.mxu0 0.0
    %415 = vmatpush2.msra.mxu0 0.0
    %416 = vmatprep.subr.mxu0 0.0
    %417 = vmatpush2.msra.mxu0 0.0
    %418 = vmatprep.subr.mxu0 0.0
    %419 = vmatpush2.msra.mxu0 0.0
    %420 = vmatprep.subr.mxu0 0.0
    %421 = vmatpush2.msra.mxu0 0.0
    %422 = vmatprep.subr.mxu0 0.0
    %423 = vmatpush2.msra.mxu0 0.0
    %424 = vmatprep.mubr.f32.mxu0 0.0
    %425 = vmatmul.mubr.f32.gmra.mxu0 %v313
    %v426 = vpop.f32.mrf.mxu0
    %v427 = vadd.f32 %v305, %v426
    %v428 = vpop.f32.mrf.mxu0
    %v429 = vadd.f32 %v309, %v428
    %430 = vmatprep.mubr.f32.mxu0 0.0
    %431 = vmatmul.mubr.f32.gmra.mxu0 %v316
    %v432 = vpop.f32.mrf.mxu0
    %v433 = vadd.f32 %v305, %v432
    %v434 = vpop.f32.mrf.mxu0
    %v435 = vadd.f32 %v309, %v434
    %436 = vmatprep.mubr.f32.mxu0 0.0
    %437 = vmatmul.mubr.f32.gmra.mxu0 %v319
    %v438 = vpop.f32.mrf.mxu0
    %v439 = vadd.f32 %v305, %v438
    %v440 = vpop.f32.mrf.mxu0
    %v441 = vadd.f32 %v309, %v440
    %442 = vmatprep.mubr.f32.mxu0 0.0
    %443 = vmatmul.mubr.f32.gmra.mxu0 %v322
    %v444 = vpop.f32.mrf.mxu0
    %v445 = vadd.f32 %v305, %v444
    %v446 = vpop.f32.mrf.mxu0
    %v447 = vadd.f32 %v309, %v446
    %448 = vmatprep.mubr.f32.mxu0 0.0
    %449 = vmatmul.mubr.f32.gmra.mxu0 %v325
    %v450 = vpop.f32.mrf.mxu0
    %v451 = vadd.f32 %v305, %v450
    %v452 = vpop.f32.mrf.mxu0
    %v453 = vadd.f32 %v309, %v452
    %454 = vmatprep.mubr.f32.mxu0 0.0
    %455 = vmatmul.mubr.f32.gmra.mxu0 %v328
    %v456 = vpop.f32.mrf.mxu0
    %v457 = vadd.f32 %v305, %v456
    %v458 = vpop.f32.mrf.mxu0
    %v459 = vadd.f32 %v309, %v458
    %460 = vmatprep.mubr.f32.mxu0 0.0
    %461 = vmatmul.mubr.f32.gmra.mxu0 %v331
    %v462 = vpop.f32.mrf.mxu0
    %v463 = vadd.f32 %v305, %v462
    %v464 = vpop.f32.mrf.mxu0
    %v465 = vadd.f32 %v309, %v464
    %466 = vmatprep.mubr.f32.mxu0 0.0
    %467 = vmatmul.mubr.f32.gmra.mxu0 %v334
    %v468 = vpop.f32.mrf.mxu0
    %v469 = vadd.f32 %v305, %v468
    %v470 = vpop.f32.mrf.mxu0
    %v471 = vadd.f32 %v309, %v470
    %472 = vmatprep.mubr.f32.mxu0 0.0
    %473 = vmatmul.mubr.f32.gmra.mxu0 %v337
    %v474 = vpop.f32.mrf.mxu0
    %v475 = vadd.f32 %v305, %v474
    %v476 = vpop.f32.mrf.mxu0
    %v477 = vadd.f32 %v309, %v476
    %478 = vmatprep.mubr.f32.mxu0 0.0
    %479 = vmatmul.mubr.f32.gmra.mxu0 %v340
    %v480 = vpop.f32.mrf.mxu0
    %v481 = vadd.f32 %v305, %v480
    %v482 = vpop.f32.mrf.mxu0
    %v483 = vadd.f32 %v309, %v482
    %484 = vmatprep.mubr.f32.mxu0 0.0
    %485 = vmatmul.mubr.f32.gmra.mxu0 %v343
    %v486 = vpop.f32.mrf.mxu0
    %v487 = vadd.f32 %v305, %v486
    %v488 = vpop.f32.mrf.mxu0
    %v489 = vadd.f32 %v309, %v488
    %490 = vmatprep.mubr.f32.mxu0 0.0
    %491 = vmatmul.mubr.f32.gmra.mxu0 %v346
    %v492 = vpop.f32.mrf.mxu0
    %v493 = vadd.f32 %v305, %v492
    %v494 = vpop.f32.mrf.mxu0
    %v495 = vadd.f32 %v309, %v494
    %496 = vmatprep.mubr.f32.mxu0 0.0
    %497 = vmatmul.mubr.f32.gmra.mxu0 %v349
    %v498 = vpop.f32.mrf.mxu0
    %v499 = vadd.f32 %v305, %v498
    %v500 = vpop.f32.mrf.mxu0
    %v501 = vadd.f32 %v309, %v500
    %502 = vmatprep.mubr.f32.mxu0 0.0
    %503 = vmatmul.mubr.f32.gmra.mxu0 %v352
    %v504 = vpop.f32.mrf.mxu0
    %v505 = vadd.f32 %v305, %v504
    %v506 = vpop.f32.mrf.mxu0
    %v507 = vadd.f32 %v309, %v506
    %508 = vmatprep.mubr.f32.mxu0 0.0
    %509 = vmatmul.mubr.f32.gmra.mxu0 %v355
    %v510 = vpop.f32.mrf.mxu0
    %v511 = vadd.f32 %v305, %v510
    %v512 = vpop.f32.mrf.mxu0
    %v513 = vadd.f32 %v309, %v512
    %514 = vmatprep.mubr.f32.mxu0 0.0
    %515 = vmatmul.mubr.f32.gmra.mxu0 %v358
    %v516 = vpop.f32.mrf.mxu0
    %v517 = vadd.f32 %v305, %v516
    %v518 = vpop.f32.mrf.mxu0
    %v519 = vadd.f32 %v309, %v518
    %520 = vdwg.mxu0
    %v521 = vmul.f32 %v427, 0.35355338
    %v522 = vmul.f32 %v433, 0.35355338
    %v523 = vmul.f32 %v439, 0.35355338
    %v524 = vmul.f32 %v445, 0.35355338
    %v525 = vmul.f32 %v451, 0.35355338
    %v526 = vmul.f32 %v457, 0.35355338
    %v527 = vmul.f32 %v463, 0.35355338
    %v528 = vmul.f32 %v469, 0.35355338
    %v529 = vmul.f32 %v475, 0.35355338
    %v530 = vmul.f32 %v481, 0.35355338
    %v531 = vmul.f32 %v487, 0.35355338
    %v532 = vmul.f32 %v493, 0.35355338
    %v533 = vmul.f32 %v499, 0.35355338
    %v534 = vmul.f32 %v505, 0.35355338
    %v535 = vmul.f32 %v511, 0.35355338
    %v536 = vmul.f32 %v517, 0.35355338
    %v537 = vld [vmem:[#allocation2] sm:$0xff]
    %v538 = vld [vmem:[#allocation2 + $0x8] sm:$0xff]
    %v539 = vld [vmem:[#allocation2 + $0x10] sm:$0xff]
    %v540 = vld [vmem:[#allocation2 + $0x18] sm:$0xff]
    %v541 = vld [vmem:[#allocation2 + $0x20] sm:$0xff]
    %v542 = vld [vmem:[#allocation2 + $0x28] sm:$0xff]
    %v543 = vld [vmem:[#allocation2 + $0x30] sm:$0xff]
    %v544 = vld [vmem:[#allocation2 + $0x38] sm:$0xff]
    %v545 = vld [vmem:[#allocation2 + $0x40] sm:$0xff]
    %v546 = vld [vmem:[#allocation2 + $0x48] sm:$0xff]
    %v547 = vld [vmem:[#allocation2 + $0x50] sm:$0xff]
    %v548 = vld [vmem:[#allocation2 + $0x58] sm:$0xff]
    %v549 = vld [vmem:[#allocation2 + $0x60] sm:$0xff]
    %v550 = vld [vmem:[#allocation2 + $0x68] sm:$0xff]
    %v551 = vld [vmem:[#allocation2 + $0x70] sm:$0xff]
    %v552 = vld [vmem:[#allocation2 + $0x78] sm:$0xff]
    %569 = vrot.lane.b32.xlu0 %v427, 96
    %v570 = vpop.permute.xlu0 %569
    %571 = vrot.lane.b32.xlu0 %v433, 96
    %v572 = vpop.permute.xlu0 %571
    %573 = vrot.lane.b32.xlu0 %v439, 96
    %v574 = vpop.permute.xlu0 %573
    %575 = vrot.lane.b32.xlu0 %v445, 96
    %v576 = vpop.permute.xlu0 %575
    %577 = vrot.lane.b32.xlu0 %v451, 96
    %v578 = vpop.permute.xlu0 %577
    %579 = vrot.lane.b32.xlu0 %v457, 96
    %v580 = vpop.permute.xlu0 %579
    %581 = vrot.lane.b32.xlu0 %v463, 96
    %v582 = vpop.permute.xlu0 %581
    %583 = vrot.lane.b32.xlu0 %v469, 96
    %v584 = vpop.permute.xlu0 %583
    %585 = vrot.lane.b32.xlu0 %v475, 96
    %v586 = vpop.permute.xlu0 %585
    %587 = vrot.lane.b32.xlu0 %v481, 96
    %v588 = vpop.permute.xlu0 %587
    %589 = vrot.lane.b32.xlu0 %v487, 96
    %v590 = vpop.permute.xlu0 %589
    %591 = vrot.lane.b32.xlu0 %v493, 96
    %v592 = vpop.permute.xlu0 %591
    %593 = vrot.lane.b32.xlu0 %v499, 96
    %v594 = vpop.permute.xlu0 %593
    %595 = vrot.lane.b32.xlu0 %v505, 96
    %v596 = vpop.permute.xlu0 %595
    %597 = vrot.lane.b32.xlu0 %v511, 96
    %v598 = vpop.permute.xlu0 %597
    %599 = vrot.lane.b32.xlu0 %v517, 96
    %v600 = vpop.permute.xlu0 %599
    %vm601 = vcmask 64512
    %v603 = vsel %vm601, %v521, 0
    %v606 = vsel %vm601, %v522, 0
    %v609 = vsel %vm601, %v523, 0
    %v612 = vsel %vm601, %v524, 0
    %v615 = vsel %vm601, %v525, 0
    %v618 = vsel %vm601, %v526, 0
    %v621 = vsel %vm601, %v527, 0
    %v624 = vsel %vm601, %v528, 0
    %v627 = vsel %vm601, %v529, 0
    %v630 = vsel %vm601, %v530, 0
    %v633 = vsel %vm601, %v531, 0
    %v636 = vsel %vm601, %v532, 0
    %v639 = vsel %vm601, %v533, 0
    %v642 = vsel %vm601, %v534, 0
    %v645 = vsel %vm601, %v535, 0
    %v648 = vsel %vm601, %v536, 0
    %v650 = vsel %vm601, %v570, 0
    %v652 = vsel %vm601, %v572, 0
    %v654 = vsel %vm601, %v574, 0
    %v656 = vsel %vm601, %v576, 0
    %v658 = vsel %vm601, %v578, 0
    %v660 = vsel %vm601, %v580, 0
    %v662 = vsel %vm601, %v582, 0
    %v664 = vsel %vm601, %v584, 0
    %v666 = vsel %vm601, %v586, 0
    %v668 = vsel %vm601, %v588, 0
    %v670 = vsel %vm601, %v590, 0
    %v672 = vsel %vm601, %v592, 0
    %v674 = vsel %vm601, %v594, 0
    %v676 = vsel %vm601, %v596, 0
    %v678 = vsel %vm601, %v598, 0
    %v680 = vsel %vm601, %v600, 0
    %682 = vmatprep.subr.mxu0 0.0
    %683 = vmatpush1.xpose.msra.mxu0 %v680
    %684 = vmatprep.subr.mxu0 0.0
    %685 = vmatpush1.xpose.msra.mxu0 %v678
    %686 = vmatprep.subr.mxu0 0.0
    %687 = vmatpush1.xpose.msra.mxu0 %v676
    %688 = vmatprep.subr.mxu0 0.0
    %689 = vmatpush1.xpose.msra.mxu0 %v674
    %690 = vmatprep.subr.mxu0 0.0
    %691 = vmatpush1.xpose.msra.mxu0 %v672
    %692 = vmatprep.subr.mxu0 0.0
    %693 = vmatpush1.xpose.msra.mxu0 %v670
    %694 = vmatprep.subr.mxu0 0.0
    %695 = vmatpush1.xpose.msra.mxu0 %v668
    %696 = vmatprep.subr.mxu0 0.0
    %697 = vmatpush1.xpose.msra.mxu0 %v666
    %698 = vmatprep.subr.mxu0 0.0
    %699 = vmatpush1.xpose.msra.mxu0 %v664
    %700 = vmatprep.subr.mxu0 0.0
    %701 = vmatpush1.xpose.msra.mxu0 %v662
    %702 = vmatprep.subr.mxu0 0.0
    %703 = vmatpush1.xpose.msra.mxu0 %v660
    %704 = vmatprep.subr.mxu0 0.0
    %705 = vmatpush1.xpose.msra.mxu0 %v658
    %706 = vmatprep.subr.mxu0 0.0
    %707 = vmatpush1.xpose.msra.mxu0 %v656
    %708 = vmatprep.subr.mxu0 0.0
    %709 = vmatpush1.xpose.msra.mxu0 %v654
    %710 = vmatprep.subr.mxu0 0.0
    %711 = vmatpush1.xpose.msra.mxu0 %v652
    %712 = vmatprep.subr.mxu0 0.0
    %713 = vmatpush1.xpose.msra.mxu0 %v650
    %714 = vmatprep.subr.mxu0 0.0
    %715 = vmatpush2.xpose.msra.mxu0 0.0
    %716 = vmatprep.subr.mxu0 0.0
    %717 = vmatpush2.xpose.msra.mxu0 0.0
    %718 = vmatprep.subr.mxu0 0.0
    %719 = vmatpush2.xpose.msra.mxu0 0.0
    %720 = vmatprep.subr.mxu0 0.0
    %721 = vmatpush2.xpose.msra.mxu0 0.0
    %722 = vmatprep.subr.mxu0 0.0
    %723 = vmatpush2.xpose.msra.mxu0 0.0
    %724 = vmatprep.subr.mxu0 0.0
    %725 = vmatpush2.xpose.msra.mxu0 0.0
    %726 = vmatprep.subr.mxu0 0.0
    %727 = vmatpush2.xpose.msra.mxu0 0.0
    %728 = vmatprep.subr.mxu0 0.0
    %729 = vmatpush2.xpose.msra.mxu0 0.0
    %730 = vmatprep.subr.mxu0 0.0
    %731 = vmatpush2.xpose.msra.mxu0 0.0
    %732 = vmatprep.subr.mxu0 0.0
    %733 = vmatpush2.xpose.msra.mxu0 0.0
    %734 = vmatprep.subr.mxu0 0.0
    %735 = vmatpush2.xpose.msra.mxu0 0.0
    %736 = vmatprep.subr.mxu0 0.0
    %737 = vmatpush2.xpose.msra.mxu0 0.0
    %738 = vmatprep.subr.mxu0 0.0
    %739 = vmatpush2.xpose.msra.mxu0 0.0
    %740 = vmatprep.subr.mxu0 0.0
    %741 = vmatpush2.xpose.msra.mxu0 0.0
    %742 = vmatprep.subr.mxu0 0.0
    %743 = vmatpush2.xpose.msra.mxu0 0.0
    %744 = vmatprep.subr.mxu0 0.0
    %745 = vmatpush2.xpose.msra.mxu0 0.0
    %746 = vmatprep.mubr.f32.mxu0 0.0
    %747 = vmatmul.mubr.f32.gmra.mxu0 %v603
    %v748 = vpop.f32.mrf.mxu0
    %v749 = vadd.f32 %v537, %v748
    %v750 = vpop.f32.mrf.mxu0
    %751 = vmatprep.mubr.f32.mxu0 0.0
    %752 = vmatmul.mubr.f32.gmra.mxu0 %v606
    %v753 = vpop.f32.mrf.mxu0
    %v754 = vadd.f32 %v538, %v753
    %v755 = vpop.f32.mrf.mxu0
    %756 = vmatprep.mubr.f32.mxu0 0.0
    %757 = vmatmul.mubr.f32.gmra.mxu0 %v609
    %v758 = vpop.f32.mrf.mxu0
    %v759 = vadd.f32 %v539, %v758
    %v760 = vpop.f32.mrf.mxu0
    %761 = vmatprep.mubr.f32.mxu0 0.0
    %762 = vmatmul.mubr.f32.gmra.mxu0 %v612
    %v763 = vpop.f32.mrf.mxu0
    %v764 = vadd.f32 %v540, %v763
    %v765 = vpop.f32.mrf.mxu0
    %766 = vmatprep.mubr.f32.mxu0 0.0
    %767 = vmatmul.mubr.f32.gmra.mxu0 %v615
    %v768 = vpop.f32.mrf.mxu0
    %v769 = vadd.f32 %v541, %v768
    %v770 = vpop.f32.mrf.mxu0
    %771 = vmatprep.mubr.f32.mxu0 0.0
    %772 = vmatmul.mubr.f32.gmra.mxu0 %v618
    %v773 = vpop.f32.mrf.mxu0
    %v774 = vadd.f32 %v542, %v773
    %v775 = vpop.f32.mrf.mxu0
    %776 = vmatprep.mubr.f32.mxu0 0.0
    %777 = vmatmul.mubr.f32.gmra.mxu0 %v621
    %v778 = vpop.f32.mrf.mxu0
    %v779 = vadd.f32 %v543, %v778
    %v780 = vpop.f32.mrf.mxu0
    %781 = vmatprep.mubr.f32.mxu0 0.0
    %782 = vmatmul.mubr.f32.gmra.mxu0 %v624
    %v783 = vpop.f32.mrf.mxu0
    %v784 = vadd.f32 %v544, %v783
    %v785 = vpop.f32.mrf.mxu0
    %786 = vmatprep.mubr.f32.mxu0 0.0
    %787 = vmatmul.mubr.f32.gmra.mxu0 %v627
    %v788 = vpop.f32.mrf.mxu0
    %v789 = vadd.f32 %v545, %v788
    %v790 = vpop.f32.mrf.mxu0
    %791 = vmatprep.mubr.f32.mxu0 0.0
    %792 = vmatmul.mubr.f32.gmra.mxu0 %v630
    %v793 = vpop.f32.mrf.mxu0
    %v794 = vadd.f32 %v546, %v793
    %v795 = vpop.f32.mrf.mxu0
    %796 = vmatprep.mubr.f32.mxu0 0.0
    %797 = vmatmul.mubr.f32.gmra.mxu0 %v633
    %v798 = vpop.f32.mrf.mxu0
    %v799 = vadd.f32 %v547, %v798
    %v800 = vpop.f32.mrf.mxu0
    %801 = vmatprep.mubr.f32.mxu0 0.0
    %802 = vmatmul.mubr.f32.gmra.mxu0 %v636
    %v803 = vpop.f32.mrf.mxu0
    %v804 = vadd.f32 %v548, %v803
    %v805 = vpop.f32.mrf.mxu0
    %806 = vmatprep.mubr.f32.mxu0 0.0
    %807 = vmatmul.mubr.f32.gmra.mxu0 %v639
    %v808 = vpop.f32.mrf.mxu0
    %v809 = vadd.f32 %v549, %v808
    %v810 = vpop.f32.mrf.mxu0
    %811 = vmatprep.mubr.f32.mxu0 0.0
    %812 = vmatmul.mubr.f32.gmra.mxu0 %v642
    %v813 = vpop.f32.mrf.mxu0
    %v814 = vadd.f32 %v550, %v813
    %v815 = vpop.f32.mrf.mxu0
    %816 = vmatprep.mubr.f32.mxu0 0.0
    %817 = vmatmul.mubr.f32.gmra.mxu0 %v645
    %v818 = vpop.f32.mrf.mxu0
    %v819 = vadd.f32 %v551, %v818
    %v820 = vpop.f32.mrf.mxu0
    %821 = vmatprep.mubr.f32.mxu0 0.0
    %822 = vmatmul.mubr.f32.gmra.mxu0 %v648
    %v823 = vpop.f32.mrf.mxu0
    %v824 = vadd.f32 %v552, %v823
    %v825 = vpop.f32.mrf.mxu0
    %826 = vdwg.mxu0
    %827 = vmax.xlane.f32.xlu0 %v749
    %v828 = vpop.xlane.xlu0 %827
    %829 = vmax.xlane.f32.xlu0 %v754
    %v830 = vpop.xlane.xlu0 %829
    %831 = vmax.xlane.f32.xlu0 %v759
    %v832 = vpop.xlane.xlu0 %831
    %833 = vmax.xlane.f32.xlu0 %v764
    %v834 = vpop.xlane.xlu0 %833
    %835 = vmax.xlane.f32.xlu0 %v769
    %v836 = vpop.xlane.xlu0 %835
    %837 = vmax.xlane.f32.xlu0 %v774
    %v838 = vpop.xlane.xlu0 %837
    %839 = vmax.xlane.f32.xlu0 %v779
    %v840 = vpop.xlane.xlu0 %839
    %841 = vmax.xlane.f32.xlu0 %v784
    %v842 = vpop.xlane.xlu0 %841
    %843 = vmax.xlane.f32.xlu0 %v789
    %v844 = vpop.xlane.xlu0 %843
    %845 = vmax.xlane.f32.xlu0 %v794
    %v846 = vpop.xlane.xlu0 %845
    %847 = vmax.xlane.f32.xlu0 %v799
    %v848 = vpop.xlane.xlu0 %847
    %849 = vmax.xlane.f32.xlu0 %v804
    %v850 = vpop.xlane.xlu0 %849
    %851 = vmax.xlane.f32.xlu0 %v809
    %v852 = vpop.xlane.xlu0 %851
    %853 = vmax.xlane.f32.xlu0 %v814
    %v854 = vpop.xlane.xlu0 %853
    %855 = vmax.xlane.f32.xlu0 %v819
    %v856 = vpop.xlane.xlu0 %855
    %857 = vmax.xlane.f32.xlu0 %v824
    %v858 = vpop.xlane.xlu0 %857
    %v859 = vsub.f32 %v749, %v828
    %v860 = vsub.f32 %v754, %v830
    %v861 = vsub.f32 %v759, %v832
    %v862 = vsub.f32 %v764, %v834
    %v863 = vsub.f32 %v769, %v836
    %v864 = vsub.f32 %v774, %v838
    %v865 = vsub.f32 %v779, %v840
    %v866 = vsub.f32 %v784, %v842
    %v867 = vsub.f32 %v789, %v844
    %v868 = vsub.f32 %v794, %v846
    %v869 = vsub.f32 %v799, %v848
    %v870 = vsub.f32 %v804, %v850
    %v871 = vsub.f32 %v809, %v852
    %v872 = vsub.f32 %v814, %v854
    %v873 = vsub.f32 %v819, %v856
    %v874 = vsub.f32 %v824, %v858
    %v875 = vmul.f32 %v859, 1.442695
    %v876 = vpow.pop %v875
    %v877 = vmul.f32 %v860, 1.442695
    %v878 = vpow.pop %v877
    %v879 = vmul.f32 %v861, 1.442695
    %v880 = vpow.pop %v879
    %v881 = vmul.f32 %v862, 1.442695
    %v882 = vpow.pop %v881
    %v883 = vmul.f32 %v863, 1.442695
    %v884 = vpow.pop %v883
    %v885 = vmul.f32 %v864, 1.442695
    %v886 = vpow.pop %v885
    %v887 = vmul.f32 %v865, 1.442695
    %v888 = vpow.pop %v887
    %v889 = vmul.f32 %v866, 1.442695
    %v890 = vpow.pop %v889
    %v891 = vmul.f32 %v867, 1.442695
    %v892 = vpow.pop %v891
    %v893 = vmul.f32 %v868, 1.442695
    %v894 = vpow.pop %v893
    %v895 = vmul.f32 %v869, 1.442695
    %v896 = vpow.pop %v895
    %v897 = vmul.f32 %v870, 1.442695
    %v898 = vpow.pop %v897
    %v899 = vmul.f32 %v871, 1.442695
    %v900 = vpow.pop %v899
    %v901 = vmul.f32 %v872, 1.442695
    %v902 = vpow.pop %v901
    %v903 = vmul.f32 %v873, 1.442695
    %v904 = vpow.pop %v903
    %v905 = vmul.f32 %v874, 1.442695
    %v906 = vpow.pop %v905
    %907 = vadd.xlane.f32.xlu0 %v876
    %v908 = vpop.xlane.xlu0 %907
    %909 = vadd.xlane.f32.xlu0 %v878
    %v910 = vpop.xlane.xlu0 %909
    %911 = vadd.xlane.f32.xlu0 %v880
    %v912 = vpop.xlane.xlu0 %911
    %913 = vadd.xlane.f32.xlu0 %v882
    %v914 = vpop.xlane.xlu0 %913
    %915 = vadd.xlane.f32.xlu0 %v884
    %v916 = vpop.xlane.xlu0 %915
    %917 = vadd.xlane.f32.xlu0 %v886
    %v918 = vpop.xlane.xlu0 %917
    %919 = vadd.xlane.f32.xlu0 %v888
    %v920 = vpop.xlane.xlu0 %919
    %921 = vadd.xlane.f32.xlu0 %v890
    %v922 = vpop.xlane.xlu0 %921
    %923 = vadd.xlane.f32.xlu0 %v892
    %v924 = vpop.xlane.xlu0 %923
    %925 = vadd.xlane.f32.xlu0 %v894
    %v926 = vpop.xlane.xlu0 %925
    %927 = vadd.xlane.f32.xlu0 %v896
    %v928 = vpop.xlane.xlu0 %927
    %929 = vadd.xlane.f32.xlu0 %v898
    %v930 = vpop.xlane.xlu0 %929
    %931 = vadd.xlane.f32.xlu0 %v900
    %v932 = vpop.xlane.xlu0 %931
    %933 = vadd.xlane.f32.xlu0 %v902
    %v934 = vpop.xlane.xlu0 %933
    %935 = vadd.xlane.f32.xlu0 %v904
    %v936 = vpop.xlane.xlu0 %935
    %937 = vadd.xlane.f32.xlu0 %v906
    %v938 = vpop.xlane.xlu0 %937
    %v939 = vrcp.pop %v908
    %v940 = vrcp.pop %v910
    %v941 = vrcp.pop %v912
    %v942 = vrcp.pop %v914
    %v943 = vrcp.pop %v916
    %v944 = vrcp.pop %v918
    %v945 = vrcp.pop %v920
    %v946 = vrcp.pop %v922
    %v947 = vrcp.pop %v924
    %v948 = vrcp.pop %v926
    %v949 = vrcp.pop %v928
    %v950 = vrcp.pop %v930
    %v951 = vrcp.pop %v932
    %v952 = vrcp.pop %v934
    %v953 = vrcp.pop %v936
    %v954 = vrcp.pop %v938
    %v955 = vmul.f32 %v876, %v939
    %v956 = vmul.f32 %v878, %v940
    %v957 = vmul.f32 %v880, %v941
    %v958 = vmul.f32 %v882, %v942
    %v959 = vmul.f32 %v884, %v943
    %v960 = vmul.f32 %v886, %v944
    %v961 = vmul.f32 %v888, %v945
    %v962 = vmul.f32 %v890, %v946
    %v963 = vmul.f32 %v892, %v947
    %v964 = vmul.f32 %v894, %v948
    %v965 = vmul.f32 %v896, %v949
    %v966 = vmul.f32 %v898, %v950
    %v967 = vmul.f32 %v900, %v951
    %v968 = vmul.f32 %v902, %v952
    %v969 = vmul.f32 %v904, %v953
    %v970 = vmul.f32 %v906, %v954
    %971 = vrot.lane.b32.xlu0 %v427, 64
    %v972 = vpop.permute.xlu0 %971
    %973 = vrot.lane.b32.xlu0 %v433, 64
    %v974 = vpop.permute.xlu0 %973
    %975 = vrot.lane.b32.xlu0 %v439, 64
    %v976 = vpop.permute.xlu0 %975
    %977 = vrot.lane.b32.xlu0 %v445, 64
    %v978 = vpop.permute.xlu0 %977
    %979 = vrot.lane.b32.xlu0 %v451, 64
    %v980 = vpop.permute.xlu0 %979
    %981 = vrot.lane.b32.xlu0 %v457, 64
    %v982 = vpop.permute.xlu0 %981
    %983 = vrot.lane.b32.xlu0 %v463, 64
    %v984 = vpop.permute.xlu0 %983
    %985 = vrot.lane.b32.xlu0 %v469, 64
    %v986 = vpop.permute.xlu0 %985
    %987 = vrot.lane.b32.xlu0 %v475, 64
    %v988 = vpop.permute.xlu0 %987
    %989 = vrot.lane.b32.xlu0 %v481, 64
    %v990 = vpop.permute.xlu0 %989
    %991 = vrot.lane.b32.xlu0 %v487, 64
    %v992 = vpop.permute.xlu0 %991
    %993 = vrot.lane.b32.xlu0 %v493, 64
    %v994 = vpop.permute.xlu0 %993
    %995 = vrot.lane.b32.xlu0 %v499, 64
    %v996 = vpop.permute.xlu0 %995
    %997 = vrot.lane.b32.xlu0 %v505, 64
    %v998 = vpop.permute.xlu0 %997
    %999 = vrot.lane.b32.xlu0 %v511, 64
    %v1000 = vpop.permute.xlu0 %999
    %1001 = vrot.lane.b32.xlu0 %v517, 64
    %v1002 = vpop.permute.xlu0 %1001
    %1019 = vmatprep.subr.mxu0 0.0
    %1020 = vmatpush1.msra.mxu0 %v1002
    %1021 = vmatprep.subr.mxu0 0.0
    %1022 = vmatpush1.msra.mxu0 %v1000
    %1023 = vmatprep.subr.mxu0 0.0
    %1024 = vmatpush1.msra.mxu0 %v998
    %1025 = vmatprep.subr.mxu0 0.0
    %1026 = vmatpush1.msra.mxu0 %v996
    %1027 = vmatprep.subr.mxu0 0.0
    %1028 = vmatpush1.msra.mxu0 %v994
    %1029 = vmatprep.subr.mxu0 0.0
    %1030 = vmatpush1.msra.mxu0 %v992
    %1031 = vmatprep.subr.mxu0 0.0
    %1032 = vmatpush1.msra.mxu0 %v990
    %1033 = vmatprep.subr.mxu0 0.0
    %1034 = vmatpush1.msra.mxu0 %v988
    %1035 = vmatprep.subr.mxu0 0.0
    %1036 = vmatpush1.msra.mxu0 %v986
    %1037 = vmatprep.subr.mxu0 0.0
    %1038 = vmatpush1.msra.mxu0 %v984
    %1039 = vmatprep.subr.mxu0 0.0
    %1040 = vmatpush1.msra.mxu0 %v982
    %1041 = vmatprep.subr.mxu0 0.0
    %1042 = vmatpush1.msra.mxu0 %v980
    %1043 = vmatprep.subr.mxu0 0.0
    %1044 = vmatpush1.msra.mxu0 %v978
    %1045 = vmatprep.subr.mxu0 0.0
    %1046 = vmatpush1.msra.mxu0 %v976
    %1047 = vmatprep.subr.mxu0 0.0
    %1048 = vmatpush1.msra.mxu0 %v974
    %1049 = vmatprep.subr.mxu0 0.0
    %1050 = vmatpush1.msra.mxu0 %v972
    %1051 = vmatprep.subr.mxu0 0.0
    %1052 = vmatpush2.msra.mxu0 0.0
    %1053 = vmatprep.subr.mxu0 0.0
    %1054 = vmatpush2.msra.mxu0 0.0
    %1055 = vmatprep.subr.mxu0 0.0
    %1056 = vmatpush2.msra.mxu0 0.0
    %1057 = vmatprep.subr.mxu0 0.0
    %1058 = vmatpush2.msra.mxu0 0.0
    %1059 = vmatprep.subr.mxu0 0.0
    %1060 = vmatpush2.msra.mxu0 0.0
    %1061 = vmatprep.subr.mxu0 0.0
    %1062 = vmatpush2.msra.mxu0 0.0
    %1063 = vmatprep.subr.mxu0 0.0
    %1064 = vmatpush2.msra.mxu0 0.0
    %1065 = vmatprep.subr.mxu0 0.0
    %1066 = vmatpush2.msra.mxu0 0.0
    %1067 = vmatprep.subr.mxu0 0.0
    %1068 = vmatpush2.msra.mxu0 0.0
    %1069 = vmatprep.subr.mxu0 0.0
    %1070 = vmatpush2.msra.mxu0 0.0
    %1071 = vmatprep.subr.mxu0 0.0
    %1072 = vmatpush2.msra.mxu0 0.0
    %1073 = vmatprep.subr.mxu0 0.0
    %1074 = vmatpush2.msra.mxu0 0.0
    %1075 = vmatprep.subr.mxu0 0.0
    %1076 = vmatpush2.msra.mxu0 0.0
    %1077 = vmatprep.subr.mxu0 0.0
    %1078 = vmatpush2.msra.mxu0 0.0
    %1079 = vmatprep.subr.mxu0 0.0
    %1080 = vmatpush2.msra.mxu0 0.0
    %1081 = vmatprep.subr.mxu0 0.0
    %1082 = vmatpush2.msra.mxu0 0.0
    %1083 = vmatprep.mubr.f32.mxu0 0.0
    %1084 = vmatmul.mubr.f32.gmra.mxu0 %v955
    %v1085 = vpop.f32.mrf.mxu0
    %v1086 = vadd.f32 0.0, %v1085
    %v1087 = vpop.f32.mrf.mxu0
    %1088 = vmatprep.mubr.f32.mxu0 0.0
    %1089 = vmatmul.mubr.f32.gmra.mxu0 %v956
    %v1090 = vpop.f32.mrf.mxu0
    %v1091 = vadd.f32 0.0, %v1090
    %v1092 = vpop.f32.mrf.mxu0
    %1093 = vmatprep.mubr.f32.mxu0 0.0
    %1094 = vmatmul.mubr.f32.gmra.mxu0 %v957
    %v1095 = vpop.f32.mrf.mxu0
    %v1096 = vadd.f32 0.0, %v1095
    %v1097 = vpop.f32.mrf.mxu0
    %1098 = vmatprep.mubr.f32.mxu0 0.0
    %1099 = vmatmul.mubr.f32.gmra.mxu0 %v958
    %v1100 = vpop.f32.mrf.mxu0
    %v1101 = vadd.f32 0.0, %v1100
    %v1102 = vpop.f32.mrf.mxu0
    %1103 = vmatprep.mubr.f32.mxu0 0.0
    %1104 = vmatmul.mubr.f32.gmra.mxu0 %v959
    %v1105 = vpop.f32.mrf.mxu0
    %v1106 = vadd.f32 0.0, %v1105
    %v1107 = vpop.f32.mrf.mxu0
    %1108 = vmatprep.mubr.f32.mxu0 0.0
    %1109 = vmatmul.mubr.f32.gmra.mxu0 %v960
    %v1110 = vpop.f32.mrf.mxu0
    %v1111 = vadd.f32 0.0, %v1110
    %v1112 = vpop.f32.mrf.mxu0
    %1113 = vmatprep.mubr.f32.mxu0 0.0
    %1114 = vmatmul.mubr.f32.gmra.mxu0 %v961
    %v1115 = vpop.f32.mrf.mxu0
    %v1116 = vadd.f32 0.0, %v1115
    %v1117 = vpop.f32.mrf.mxu0
    %1118 = vmatprep.mubr.f32.mxu0 0.0
    %1119 = vmatmul.mubr.f32.gmra.mxu0 %v962
    %v1120 = vpop.f32.mrf.mxu0
    %v1121 = vadd.f32 0.0, %v1120
    %v1122 = vpop.f32.mrf.mxu0
    %1123 = vmatprep.mubr.f32.mxu0 0.0
    %1124 = vmatmul.mubr.f32.gmra.mxu0 %v963
    %v1125 = vpop.f32.mrf.mxu0
    %v1126 = vadd.f32 0.0, %v1125
    %v1127 = vpop.f32.mrf.mxu0
    %1128 = vmatprep.mubr.f32.mxu0 0.0
    %1129 = vmatmul.mubr.f32.gmra.mxu0 %v964
    %v1130 = vpop.f32.mrf.mxu0
    %v1131 = vadd.f32 0.0, %v1130
    %v1132 = vpop.f32.mrf.mxu0
    %1133 = vmatprep.mubr.f32.mxu0 0.0
    %1134 = vmatmul.mubr.f32.gmra.mxu0 %v965
    %v1135 = vpop.f32.mrf.mxu0
    %v1136 = vadd.f32 0.0, %v1135
    %v1137 = vpop.f32.mrf.mxu0
    %1138 = vmatprep.mubr.f32.mxu0 0.0
    %1139 = vmatmul.mubr.f32.gmra.mxu0 %v966
    %v1140 = vpop.f32.mrf.mxu0
    %v1141 = vadd.f32 0.0, %v1140
    %v1142 = vpop.f32.mrf.mxu0
    %1143 = vmatprep.mubr.f32.mxu0 0.0
    %1144 = vmatmul.mubr.f32.gmra.mxu0 %v967
    %v1145 = vpop.f32.mrf.mxu0
    %v1146 = vadd.f32 0.0, %v1145
    %v1147 = vpop.f32.mrf.mxu0
    %1148 = vmatprep.mubr.f32.mxu0 0.0
    %1149 = vmatmul.mubr.f32.gmra.mxu0 %v968
    %v1150 = vpop.f32.mrf.mxu0
    %v1151 = vadd.f32 0.0, %v1150
    %v1152 = vpop.f32.mrf.mxu0
    %1153 = vmatprep.mubr.f32.mxu0 0.0
    %1154 = vmatmul.mubr.f32.gmra.mxu0 %v969
    %v1155 = vpop.f32.mrf.mxu0
    %v1156 = vadd.f32 0.0, %v1155
    %v1157 = vpop.f32.mrf.mxu0
    %1158 = vmatprep.mubr.f32.mxu0 0.0
    %1159 = vmatmul.mubr.f32.gmra.mxu0 %v970
    %v1160 = vpop.f32.mrf.mxu0
    %v1161 = vadd.f32 0.0, %v1160
    %v1162 = vpop.f32.mrf.mxu0
    %1163 = vdwg.mxu0
    %v1164 = vlaneseq
    %v1165 = vshrl.u32 %v1164, 7
    %v1166 = vsub.s32 0, %v1165
    %v1167 = vrot.slane %v82, %v1166
    %v1168 = vadd.f32 %v1167, %v1086
    %v1169 = vadd.f32 %v1167, %v1091
    %v1170 = vadd.f32 %v1167, %v1096
    %v1171 = vadd.f32 %v1167, %v1101
    %v1172 = vadd.f32 %v1167, %v1106
    %v1173 = vadd.f32 %v1167, %v1111
    %v1174 = vadd.f32 %v1167, %v1116
    %v1175 = vadd.f32 %v1167, %v1121
    %v1176 = vadd.f32 %v1167, %v1126
    %v1177 = vadd.f32 %v1167, %v1131
    %v1178 = vadd.f32 %v1167, %v1136
    %v1179 = vadd.f32 %v1167, %v1141
    %v1180 = vadd.f32 %v1167, %v1146
    %v1181 = vadd.f32 %v1167, %v1151
    %v1182 = vadd.f32 %v1167, %v1156
    %v1183 = vadd.f32 %v1167, %v1161
    %s1184 = scalar_lea.vmem [#allocation2], 128
    %v1185 = vld [vmem:[%s1184] sm:$0xff]
    %v1186 = vld [vmem:[%s1184 + $0x8] sm:$0xff]
    %v1187 = vld [vmem:[%s1184 + $0x10] sm:$0xff]
    %v1188 = vld [vmem:[%s1184 + $0x18] sm:$0xff]
    %v1189 = vld [vmem:[%s1184 + $0x20] sm:$0xff]
    %v1190 = vld [vmem:[%s1184 + $0x28] sm:$0xff]
    %v1191 = vld [vmem:[%s1184 + $0x30] sm:$0xff]
    %v1192 = vld [vmem:[%s1184 + $0x38] sm:$0xff]
    %v1193 = vld [vmem:[%s1184 + $0x40] sm:$0xff]
    %v1194 = vld [vmem:[%s1184 + $0x48] sm:$0xff]
    %v1195 = vld [vmem:[%s1184 + $0x50] sm:$0xff]
    %v1196 = vld [vmem:[%s1184 + $0x58] sm:$0xff]
    %v1197 = vld [vmem:[%s1184 + $0x60] sm:$0xff]
    %v1198 = vld [vmem:[%s1184 + $0x68] sm:$0xff]
    %v1199 = vld [vmem:[%s1184 + $0x70] sm:$0xff]
    %v1200 = vld [vmem:[%s1184 + $0x78] sm:$0xff]
    %1201 = vrot.lane.b32.xlu0 %v521, 120
    %v1202 = vpop.permute.xlu0 %1201
    %1203 = vrot.lane.b32.xlu0 %v522, 120
    %v1204 = vpop.permute.xlu0 %1203
    %1205 = vrot.lane.b32.xlu0 %v523, 120
    %v1206 = vpop.permute.xlu0 %1205
    %1207 = vrot.lane.b32.xlu0 %v524, 120
    %v1208 = vpop.permute.xlu0 %1207
    %1209 = vrot.lane.b32.xlu0 %v525, 120
    %v1210 = vpop.permute.xlu0 %1209
    %1211 = vrot.lane.b32.xlu0 %v526, 120
    %v1212 = vpop.permute.xlu0 %1211
    %1213 = vrot.lane.b32.xlu0 %v527, 120
    %v1214 = vpop.permute.xlu0 %1213
    %1215 = vrot.lane.b32.xlu0 %v528, 120
    %v1216 = vpop.permute.xlu0 %1215
    %1217 = vrot.lane.b32.xlu0 %v529, 120
    %v1218 = vpop.permute.xlu0 %1217
    %1219 = vrot.lane.b32.xlu0 %v530, 120
    %v1220 = vpop.permute.xlu0 %1219
    %1221 = vrot.lane.b32.xlu0 %v531, 120
    %v1222 = vpop.permute.xlu0 %1221
    %1223 = vrot.lane.b32.xlu0 %v532, 120
    %v1224 = vpop.permute.xlu0 %1223
    %1225 = vrot.lane.b32.xlu0 %v533, 120
    %v1226 = vpop.permute.xlu0 %1225
    %1227 = vrot.lane.b32.xlu0 %v534, 120
    %v1228 = vpop.permute.xlu0 %1227
    %1229 = vrot.lane.b32.xlu0 %v535, 120
    %v1230 = vpop.permute.xlu0 %1229
    %1231 = vrot.lane.b32.xlu0 %v536, 120
    %v1232 = vpop.permute.xlu0 %1231
    %1233 = vrot.lane.b32.xlu0 %v427, 88
    %v1234 = vpop.permute.xlu0 %1233
    %1235 = vrot.lane.b32.xlu0 %v433, 88
    %v1236 = vpop.permute.xlu0 %1235
    %1237 = vrot.lane.b32.xlu0 %v439, 88
    %v1238 = vpop.permute.xlu0 %1237
    %1239 = vrot.lane.b32.xlu0 %v445, 88
    %v1240 = vpop.permute.xlu0 %1239
    %1241 = vrot.lane.b32.xlu0 %v451, 88
    %v1242 = vpop.permute.xlu0 %1241
    %1243 = vrot.lane.b32.xlu0 %v457, 88
    %v1244 = vpop.permute.xlu0 %1243
    %1245 = vrot.lane.b32.xlu0 %v463, 88
    %v1246 = vpop.permute.xlu0 %1245
    %1247 = vrot.lane.b32.xlu0 %v469, 88
    %v1248 = vpop.permute.xlu0 %1247
    %1249 = vrot.lane.b32.xlu0 %v475, 88
    %v1250 = vpop.permute.xlu0 %1249
    %1251 = vrot.lane.b32.xlu0 %v481, 88
    %v1252 = vpop.permute.xlu0 %1251
    %1253 = vrot.lane.b32.xlu0 %v487, 88
    %v1254 = vpop.permute.xlu0 %1253
    %1255 = vrot.lane.b32.xlu0 %v493, 88
    %v1256 = vpop.permute.xlu0 %1255
    %1257 = vrot.lane.b32.xlu0 %v499, 88
    %v1258 = vpop.permute.xlu0 %1257
    %1259 = vrot.lane.b32.xlu0 %v505, 88
    %v1260 = vpop.permute.xlu0 %1259
    %1261 = vrot.lane.b32.xlu0 %v511, 88
    %v1262 = vpop.permute.xlu0 %1261
    %1263 = vrot.lane.b32.xlu0 %v517, 88
    %v1264 = vpop.permute.xlu0 %1263
    %v1265 = vsel %vm601, %v1202, 0
    %v1267 = vsel %vm601, %v1204, 0
    %v1269 = vsel %vm601, %v1206, 0
    %v1271 = vsel %vm601, %v1208, 0
    %v1273 = vsel %vm601, %v1210, 0
    %v1275 = vsel %vm601, %v1212, 0
    %v1277 = vsel %vm601, %v1214, 0
    %v1279 = vsel %vm601, %v1216, 0
    %v1281 = vsel %vm601, %v1218, 0
    %v1283 = vsel %vm601, %v1220, 0
    %v1285 = vsel %vm601, %v1222, 0
    %v1287 = vsel %vm601, %v1224, 0
    %v1289 = vsel %vm601, %v1226, 0
    %v1291 = vsel %vm601, %v1228, 0
    %v1293 = vsel %vm601, %v1230, 0
    %v1295 = vsel %vm601, %v1232, 0
    %v1297 = vsel %vm601, %v1234, 0
    %v1299 = vsel %vm601, %v1236, 0
    %v1301 = vsel %vm601, %v1238, 0
    %v1303 = vsel %vm601, %v1240, 0
    %v1305 = vsel %vm601, %v1242, 0
    %v1307 = vsel %vm601, %v1244, 0
    %v1309 = vsel %vm601, %v1246, 0
    %v1311 = vsel %vm601, %v1248, 0
    %v1313 = vsel %vm601, %v1250, 0
    %v1315 = vsel %vm601, %v1252, 0
    %v1317 = vsel %vm601, %v1254, 0
    %v1319 = vsel %vm601, %v1256, 0
    %v1321 = vsel %vm601, %v1258, 0
    %v1323 = vsel %vm601, %v1260, 0
    %v1325 = vsel %vm601, %v1262, 0
    %v1327 = vsel %vm601, %v1264, 0
    %1329 = vmatprep.subr.mxu0 0.0
    %1330 = vmatpush1.xpose.msra.mxu0 %v1327
    %1331 = vmatprep.subr.mxu0 0.0
    %1332 = vmatpush1.xpose.msra.mxu0 %v1325
    %1333 = vmatprep.subr.mxu0 0.0
    %1334 = vmatpush1.xpose.msra.mxu0 %v1323
    %1335 = vmatprep.subr.mxu0 0.0
    %1336 = vmatpush1.xpose.msra.mxu0 %v1321
    %1337 = vmatprep.subr.mxu0 0.0
    %1338 = vmatpush1.xpose.msra.mxu0 %v1319
    %1339 = vmatprep.subr.mxu0 0.0
    %1340 = vmatpush1.xpose.msra.mxu0 %v1317
    %1341 = vmatprep.subr.mxu0 0.0
    %1342 = vmatpush1.xpose.msra.mxu0 %v1315
    %1343 = vmatprep.subr.mxu0 0.0
    %1344 = vmatpush1.xpose.msra.mxu0 %v1313
    %1345 = vmatprep.subr.mxu0 0.0
    %1346 = vmatpush1.xpose.msra.mxu0 %v1311
    %1347 = vmatprep.subr.mxu0 0.0
    %1348 = vmatpush1.xpose.msra.mxu0 %v1309
    %1349 = vmatprep.subr.mxu0 0.0
    %1350 = vmatpush1.xpose.msra.mxu0 %v1307
    %1351 = vmatprep.subr.mxu0 0.0
    %1352 = vmatpush1.xpose.msra.mxu0 %v1305
    %1353 = vmatprep.subr.mxu0 0.0
    %1354 = vmatpush1.xpose.msra.mxu0 %v1303
    %1355 = vmatprep.subr.mxu0 0.0
    %1356 = vmatpush1.xpose.msra.mxu0 %v1301
    %1357 = vmatprep.subr.mxu0 0.0
    %1358 = vmatpush1.xpose.msra.mxu0 %v1299
    %1359 = vmatprep.subr.mxu0 0.0
    %1360 = vmatpush1.xpose.msra.mxu0 %v1297
    %1361 = vmatprep.subr.mxu0 0.0
    %1362 = vmatpush2.xpose.msra.mxu0 0.0
    %1363 = vmatprep.subr.mxu0 0.0
    %1364 = vmatpush2.xpose.msra.mxu0 0.0
    %1365 = vmatprep.subr.mxu0 0.0
    %1366 = vmatpush2.xpose.msra.mxu0 0.0
    %1367 = vmatprep.subr.mxu0 0.0
    %1368 = vmatpush2.xpose.msra.mxu0 0.0
    %1369 = vmatprep.subr.mxu0 0.0
    %1370 = vmatpush2.xpose.msra.mxu0 0.0
    %1371 = vmatprep.subr.mxu0 0.0
    %1372 = vmatpush2.xpose.msra.mxu0 0.0
    %1373 = vmatprep.subr.mxu0 0.0
    %1374 = vmatpush2.xpose.msra.mxu0 0.0
    %1375 = vmatprep.subr.mxu0 0.0
    %1376 = vmatpush2.xpose.msra.mxu0 0.0
    %1377 = vmatprep.subr.mxu0 0.0
    %1378 = vmatpush2.xpose.msra.mxu0 0.0
    %1379 = vmatprep.subr.mxu0 0.0
    %1380 = vmatpush2.xpose.msra.mxu0 0.0
    %1381 = vmatprep.subr.mxu0 0.0
    %1382 = vmatpush2.xpose.msra.mxu0 0.0
    %1383 = vmatprep.subr.mxu0 0.0
    %1384 = vmatpush2.xpose.msra.mxu0 0.0
    %1385 = vmatprep.subr.mxu0 0.0
    %1386 = vmatpush2.xpose.msra.mxu0 0.0
    %1387 = vmatprep.subr.mxu0 0.0
    %1388 = vmatpush2.xpose.msra.mxu0 0.0
    %1389 = vmatprep.subr.mxu0 0.0
    %1390 = vmatpush2.xpose.msra.mxu0 0.0
    %1391 = vmatprep.subr.mxu0 0.0
    %1392 = vmatpush2.xpose.msra.mxu0 0.0
    %1393 = vmatprep.mubr.f32.mxu0 0.0
    %1394 = vmatmul.mubr.f32.gmra.mxu0 %v1265
    %v1395 = vpop.f32.mrf.mxu0
    %v1396 = vadd.f32 %v1185, %v1395
    %v1397 = vpop.f32.mrf.mxu0
    %1398 = vmatprep.mubr.f32.mxu0 0.0
    %1399 = vmatmul.mubr.f32.gmra.mxu0 %v1267
    %v1400 = vpop.f32.mrf.mxu0
    %v1401 = vadd.f32 %v1186, %v1400
    %v1402 = vpop.f32.mrf.mxu0
    %1403 = vmatprep.mubr.f32.mxu0 0.0
    %1404 = vmatmul.mubr.f32.gmra.mxu0 %v1269
    %v1405 = vpop.f32.mrf.mxu0
    %v1406 = vadd.f32 %v1187, %v1405
    %v1407 = vpop.f32.mrf.mxu0
    %1408 = vmatprep.mubr.f32.mxu0 0.0
    %1409 = vmatmul.mubr.f32.gmra.mxu0 %v1271
    %v1410 = vpop.f32.mrf.mxu0
    %v1411 = vadd.f32 %v1188, %v1410
    %v1412 = vpop.f32.mrf.mxu0
    %1413 = vmatprep.mubr.f32.mxu0 0.0
    %1414 = vmatmul.mubr.f32.gmra.mxu0 %v1273
    %v1415 = vpop.f32.mrf.mxu0
    %v1416 = vadd.f32 %v1189, %v1415
    %v1417 = vpop.f32.mrf.mxu0
    %1418 = vmatprep.mubr.f32.mxu0 0.0
    %1419 = vmatmul.mubr.f32.gmra.mxu0 %v1275
    %v1420 = vpop.f32.mrf.mxu0
    %v1421 = vadd.f32 %v1190, %v1420
    %v1422 = vpop.f32.mrf.mxu0
    %1423 = vmatprep.mubr.f32.mxu0 0.0
    %1424 = vmatmul.mubr.f32.gmra.mxu0 %v1277
    %v1425 = vpop.f32.mrf.mxu0
    %v1426 = vadd.f32 %v1191, %v1425
    %v1427 = vpop.f32.mrf.mxu0
    %1428 = vmatprep.mubr.f32.mxu0 0.0
    %1429 = vmatmul.mubr.f32.gmra.mxu0 %v1279
    %v1430 = vpop.f32.mrf.mxu0
    %v1431 = vadd.f32 %v1192, %v1430
    %v1432 = vpop.f32.mrf.mxu0
    %1433 = vmatprep.mubr.f32.mxu0 0.0
    %1434 = vmatmul.mubr.f32.gmra.mxu0 %v1281
    %v1435 = vpop.f32.mrf.mxu0
    %v1436 = vadd.f32 %v1193, %v1435
    %v1437 = vpop.f32.mrf.mxu0
    %1438 = vmatprep.mubr.f32.mxu0 0.0
    %1439 = vmatmul.mubr.f32.gmra.mxu0 %v1283
    %v1440 = vpop.f32.mrf.mxu0
    %v1441 = vadd.f32 %v1194, %v1440
    %v1442 = vpop.f32.mrf.mxu0
    %1443 = vmatprep.mubr.f32.mxu0 0.0
    %1444 = vmatmul.mubr.f32.gmra.mxu0 %v1285
    %v1445 = vpop.f32.mrf.mxu0
    %v1446 = vadd.f32 %v1195, %v1445
    %v1447 = vpop.f32.mrf.mxu0
    %1448 = vmatprep.mubr.f32.mxu0 0.0
    %1449 = vmatmul.mubr.f32.gmra.mxu0 %v1287
    %v1450 = vpop.f32.mrf.mxu0
    %v1451 = vadd.f32 %v1196, %v1450
    %v1452 = vpop.f32.mrf.mxu0
    %1453 = vmatprep.mubr.f32.mxu0 0.0
    %1454 = vmatmul.mubr.f32.gmra.mxu0 %v1289
    %v1455 = vpop.f32.mrf.mxu0
    %v1456 = vadd.f32 %v1197, %v1455
    %v1457 = vpop.f32.mrf.mxu0
    %1458 = vmatprep.mubr.f32.mxu0 0.0
    %1459 = vmatmul.mubr.f32.gmra.mxu0 %v1291
    %v1460 = vpop.f32.mrf.mxu0
    %v1461 = vadd.f32 %v1198, %v1460
    %v1462 = vpop.f32.mrf.mxu0
    %1463 = vmatprep.mubr.f32.mxu0 0.0
    %1464 = vmatmul.mubr.f32.gmra.mxu0 %v1293
    %v1465 = vpop.f32.mrf.mxu0
    %v1466 = vadd.f32 %v1199, %v1465
    %v1467 = vpop.f32.mrf.mxu0
    %1468 = vmatprep.mubr.f32.mxu0 0.0
    %1469 = vmatmul.mubr.f32.gmra.mxu0 %v1295
    %v1470 = vpop.f32.mrf.mxu0
    %v1471 = vadd.f32 %v1200, %v1470
    %v1472 = vpop.f32.mrf.mxu0
    %1473 = vdwg.mxu0
    %1474 = vmax.xlane.f32.xlu0 %v1396
    %v1475 = vpop.xlane.xlu0 %1474
    %1476 = vmax.xlane.f32.xlu0 %v1401
    %v1477 = vpop.xlane.xlu0 %1476
    %1478 = vmax.xlane.f32.xlu0 %v1406
    %v1479 = vpop.xlane.xlu0 %1478
    %1480 = vmax.xlane.f32.xlu0 %v1411
    %v1481 = vpop.xlane.xlu0 %1480
    %1482 = vmax.xlane.f32.xlu0 %v1416
    %v1483 = vpop.xlane.xlu0 %1482
    %1484 = vmax.xlane.f32.xlu0 %v1421
    %v1485 = vpop.xlane.xlu0 %1484
    %1486 = vmax.xlane.f32.xlu0 %v1426
    %v1487 = vpop.xlane.xlu0 %1486
    %1488 = vmax.xlane.f32.xlu0 %v1431
    %v1489 = vpop.xlane.xlu0 %1488
    %1490 = vmax.xlane.f32.xlu0 %v1436
    %v1491 = vpop.xlane.xlu0 %1490
    %1492 = vmax.xlane.f32.xlu0 %v1441
    %v1493 = vpop.xlane.xlu0 %1492
    %1494 = vmax.xlane.f32.xlu0 %v1446
    %v1495 = vpop.xlane.xlu0 %1494
    %1496 = vmax.xlane.f32.xlu0 %v1451
    %v1497 = vpop.xlane.xlu0 %1496
    %1498 = vmax.xlane.f32.xlu0 %v1456
    %v1499 = vpop.xlane.xlu0 %1498
    %1500 = vmax.xlane.f32.xlu0 %v1461
    %v1501 = vpop.xlane.xlu0 %1500
    %1502 = vmax.xlane.f32.xlu0 %v1466
    %v1503 = vpop.xlane.xlu0 %1502
    %1504 = vmax.xlane.f32.xlu0 %v1471
    %v1505 = vpop.xlane.xlu0 %1504
    %v1506 = vsub.f32 %v1396, %v1475
    %v1507 = vsub.f32 %v1401, %v1477
    %v1508 = vsub.f32 %v1406, %v1479
    %v1509 = vsub.f32 %v1411, %v1481
    %v1510 = vsub.f32 %v1416, %v1483
    %v1511 = vsub.f32 %v1421, %v1485
    %v1512 = vsub.f32 %v1426, %v1487
    %v1513 = vsub.f32 %v1431, %v1489
    %v1514 = vsub.f32 %v1436, %v1491
    %v1515 = vsub.f32 %v1441, %v1493
    %v1516 = vsub.f32 %v1446, %v1495
    %v1517 = vsub.f32 %v1451, %v1497
    %v1518 = vsub.f32 %v1456, %v1499
    %v1519 = vsub.f32 %v1461, %v1501
    %v1520 = vsub.f32 %v1466, %v1503
    %v1521 = vsub.f32 %v1471, %v1505
    %v1522 = vmul.f32 %v1506, 1.442695
    %v1523 = vpow.pop %v1522
    %v1524 = vmul.f32 %v1507, 1.442695
    %v1525 = vpow.pop %v1524
    %v1526 = vmul.f32 %v1508, 1.442695
    %v1527 = vpow.pop %v1526
    %v1528 = vmul.f32 %v1509, 1.442695
    %v1529 = vpow.pop %v1528
    %v1530 = vmul.f32 %v1510, 1.442695
    %v1531 = vpow.pop %v1530
    %v1532 = vmul.f32 %v1511, 1.442695
    %v1533 = vpow.pop %v1532
    %v1534 = vmul.f32 %v1512, 1.442695
    %v1535 = vpow.pop %v1534
    %v1536 = vmul.f32 %v1513, 1.442695
    %v1537 = vpow.pop %v1536
    %v1538 = vmul.f32 %v1514, 1.442695
    %v1539 = vpow.pop %v1538
    %v1540 = vmul.f32 %v1515, 1.442695
    %v1541 = vpow.pop %v1540
    %v1542 = vmul.f32 %v1516, 1.442695
    %v1543 = vpow.pop %v1542
    %v1544 = vmul.f32 %v1517, 1.442695
    %v1545 = vpow.pop %v1544
    %v1546 = vmul.f32 %v1518, 1.442695
    %v1547 = vpow.pop %v1546
    %v1548 = vmul.f32 %v1519, 1.442695
    %v1549 = vpow.pop %v1548
    %v1550 = vmul.f32 %v1520, 1.442695
    %v1551 = vpow.pop %v1550
    %v1552 = vmul.f32 %v1521, 1.442695
    %v1553 = vpow.pop %v1552
    %1554 = vadd.xlane.f32.xlu0 %v1523
    %v1555 = vpop.xlane.xlu0 %1554
    %1556 = vadd.xlane.f32.xlu0 %v1525
    %v1557 = vpop.xlane.xlu0 %1556
    %1558 = vadd.xlane.f32.xlu0 %v1527
    %v1559 = vpop.xlane.xlu0 %1558
    %1560 = vadd.xlane.f32.xlu0 %v1529
    %v1561 = vpop.xlane.xlu0 %1560
    %1562 = vadd.xlane.f32.xlu0 %v1531
    %v1563 = vpop.xlane.xlu0 %1562
    %1564 = vadd.xlane.f32.xlu0 %v1533
    %v1565 = vpop.xlane.xlu0 %1564
    %1566 = vadd.xlane.f32.xlu0 %v1535
    %v1567 = vpop.xlane.xlu0 %1566
    %1568 = vadd.xlane.f32.xlu0 %v1537
    %v1569 = vpop.xlane.xlu0 %1568
    %1570 = vadd.xlane.f32.xlu0 %v1539
    %v1571 = vpop.xlane.xlu0 %1570
    %1572 = vadd.xlane.f32.xlu0 %v1541
    %v1573 = vpop.xlane.xlu0 %1572
    %1574 = vadd.xlane.f32.xlu0 %v1543
    %v1575 = vpop.xlane.xlu0 %1574
    %1576 = vadd.xlane.f32.xlu0 %v1545
    %v1577 = vpop.xlane.xlu0 %1576
    %1578 = vadd.xlane.f32.xlu0 %v1547
    %v1579 = vpop.xlane.xlu0 %1578
    %1580 = vadd.xlane.f32.xlu0 %v1549
    %v1581 = vpop.xlane.xlu0 %1580
    %1582 = vadd.xlane.f32.xlu0 %v1551
    %v1583 = vpop.xlane.xlu0 %1582
    %1584 = vadd.xlane.f32.xlu0 %v1553
    %v1585 = vpop.xlane.xlu0 %1584
    %v1586 = vrcp.pop %v1555
    %v1587 = vrcp.pop %v1557
    %v1588 = vrcp.pop %v1559
    %v1589 = vrcp.pop %v1561
    %v1590 = vrcp.pop %v1563
    %v1591 = vrcp.pop %v1565
    %v1592 = vrcp.pop %v1567
    %v1593 = vrcp.pop %v1569
    %v1594 = vrcp.pop %v1571
    %v1595 = vrcp.pop %v1573
    %v1596 = vrcp.pop %v1575
    %v1597 = vrcp.pop %v1577
    %v1598 = vrcp.pop %v1579
    %v1599 = vrcp.pop %v1581
    %v1600 = vrcp.pop %v1583
    %v1601 = vrcp.pop %v1585
    %v1602 = vmul.f32 %v1523, %v1586
    %v1603 = vmul.f32 %v1525, %v1587
    %v1604 = vmul.f32 %v1527, %v1588
    %v1605 = vmul.f32 %v1529, %v1589
    %v1606 = vmul.f32 %v1531, %v1590
    %v1607 = vmul.f32 %v1533, %v1591
    %v1608 = vmul.f32 %v1535, %v1592
    %v1609 = vmul.f32 %v1537, %v1593
    %v1610 = vmul.f32 %v1539, %v1594
    %v1611 = vmul.f32 %v1541, %v1595
    %v1612 = vmul.f32 %v1543, %v1596
    %v1613 = vmul.f32 %v1545, %v1597
    %v1614 = vmul.f32 %v1547, %v1598
    %v1615 = vmul.f32 %v1549, %v1599
    %v1616 = vmul.f32 %v1551, %v1600
    %v1617 = vmul.f32 %v1553, %v1601
    %1618 = vrot.lane.b32.xlu0 %v427, 32
    %v1619 = vpop.permute.xlu0 %1618
    %1620 = vrot.lane.b32.xlu0 %v433, 32
    %v1621 = vpop.permute.xlu0 %1620
    %1622 = vrot.lane.b32.xlu0 %v439, 32
    %v1623 = vpop.permute.xlu0 %1622
    %1624 = vrot.lane.b32.xlu0 %v445, 32
    %v1625 = vpop.permute.xlu0 %1624
    %1626 = vrot.lane.b32.xlu0 %v451, 32
    %v1627 = vpop.permute.xlu0 %1626
    %1628 = vrot.lane.b32.xlu0 %v457, 32
    %v1629 = vpop.permute.xlu0 %1628
    %1630 = vrot.lane.b32.xlu0 %v463, 32
    %v1631 = vpop.permute.xlu0 %1630
    %1632 = vrot.lane.b32.xlu0 %v469, 32
    %v1633 = vpop.permute.xlu0 %1632
    %1634 = vrot.lane.b32.xlu0 %v475, 32
    %v1635 = vpop.permute.xlu0 %1634
    %1636 = vrot.lane.b32.xlu0 %v481, 32
    %v1637 = vpop.permute.xlu0 %1636
    %1638 = vrot.lane.b32.xlu0 %v487, 32
    %v1639 = vpop.permute.xlu0 %1638
    %1640 = vrot.lane.b32.xlu0 %v493, 32
    %v1641 = vpop.permute.xlu0 %1640
    %1642 = vrot.lane.b32.xlu0 %v499, 32
    %v1643 = vpop.permute.xlu0 %1642
    %1644 = vrot.lane.b32.xlu0 %v505, 32
    %v1645 = vpop.permute.xlu0 %1644
    %1646 = vrot.lane.b32.xlu0 %v511, 32
    %v1647 = vpop.permute.xlu0 %1646
    %1648 = vrot.lane.b32.xlu0 %v517, 32
    %v1649 = vpop.permute.xlu0 %1648
    %1666 = vmatprep.subr.mxu0 0.0
    %1667 = vmatpush1.msra.mxu0 %v1649
    %1668 = vmatprep.subr.mxu0 0.0
    %1669 = vmatpush1.msra.mxu0 %v1647
    %1670 = vmatprep.subr.mxu0 0.0
    %1671 = vmatpush1.msra.mxu0 %v1645
    %1672 = vmatprep.subr.mxu0 0.0
    %1673 = vmatpush1.msra.mxu0 %v1643
    %1674 = vmatprep.subr.mxu0 0.0
    %1675 = vmatpush1.msra.mxu0 %v1641
    %1676 = vmatprep.subr.mxu0 0.0
    %1677 = vmatpush1.msra.mxu0 %v1639
    %1678 = vmatprep.subr.mxu0 0.0
    %1679 = vmatpush1.msra.mxu0 %v1637
    %1680 = vmatprep.subr.mxu0 0.0
    %1681 = vmatpush1.msra.mxu0 %v1635
    %1682 = vmatprep.subr.mxu0 0.0
    %1683 = vmatpush1.msra.mxu0 %v1633
    %1684 = vmatprep.subr.mxu0 0.0
    %1685 = vmatpush1.msra.mxu0 %v1631
    %1686 = vmatprep.subr.mxu0 0.0
    %1687 = vmatpush1.msra.mxu0 %v1629
    %1688 = vmatprep.subr.mxu0 0.0
    %1689 = vmatpush1.msra.mxu0 %v1627
    %1690 = vmatprep.subr.mxu0 0.0
    %1691 = vmatpush1.msra.mxu0 %v1625
    %1692 = vmatprep.subr.mxu0 0.0
    %1693 = vmatpush1.msra.mxu0 %v1623
    %1694 = vmatprep.subr.mxu0 0.0
    %1695 = vmatpush1.msra.mxu0 %v1621
    %1696 = vmatprep.subr.mxu0 0.0
    %1697 = vmatpush1.msra.mxu0 %v1619
    %1698 = vmatprep.subr.mxu0 0.0
    %1699 = vmatpush2.msra.mxu0 0.0
    %1700 = vmatprep.subr.mxu0 0.0
    %1701 = vmatpush2.msra.mxu0 0.0
    %1702 = vmatprep.subr.mxu0 0.0
    %1703 = vmatpush2.msra.mxu0 0.0
    %1704 = vmatprep.subr.mxu0 0.0
    %1705 = vmatpush2.msra.mxu0 0.0
    %1706 = vmatprep.subr.mxu0 0.0
    %1707 = vmatpush2.msra.mxu0 0.0
    %1708 = vmatprep.subr.mxu0 0.0
    %1709 = vmatpush2.msra.mxu0 0.0
    %1710 = vmatprep.subr.mxu0 0.0
    %1711 = vmatpush2.msra.mxu0 0.0
    %1712 = vmatprep.subr.mxu0 0.0
    %1713 = vmatpush2.msra.mxu0 0.0
    %1714 = vmatprep.subr.mxu0 0.0
    %1715 = vmatpush2.msra.mxu0 0.0
    %1716 = vmatprep.subr.mxu0 0.0
    %1717 = vmatpush2.msra.mxu0 0.0
    %1718 = vmatprep.subr.mxu0 0.0
    %1719 = vmatpush2.msra.mxu0 0.0
    %1720 = vmatprep.subr.mxu0 0.0
    %1721 = vmatpush2.msra.mxu0 0.0
    %1722 = vmatprep.subr.mxu0 0.0
    %1723 = vmatpush2.msra.mxu0 0.0
    %1724 = vmatprep.subr.mxu0 0.0
    %1725 = vmatpush2.msra.mxu0 0.0
    %1726 = vmatprep.subr.mxu0 0.0
    %1727 = vmatpush2.msra.mxu0 0.0
    %1728 = vmatprep.subr.mxu0 0.0
    %1729 = vmatpush2.msra.mxu0 0.0
    %1730 = vmatprep.mubr.f32.mxu0 0.0
    %1731 = vmatmul.mubr.f32.gmra.mxu0 %v1602
    %v1732 = vpop.f32.mrf.mxu0
    %v1733 = vadd.f32 0.0, %v1732
    %v1734 = vpop.f32.mrf.mxu0
    %1735 = vmatprep.mubr.f32.mxu0 0.0
    %1736 = vmatmul.mubr.f32.gmra.mxu0 %v1603
    %v1737 = vpop.f32.mrf.mxu0
    %v1738 = vadd.f32 0.0, %v1737
    %v1739 = vpop.f32.mrf.mxu0
    %1740 = vmatprep.mubr.f32.mxu0 0.0
    %1741 = vmatmul.mubr.f32.gmra.mxu0 %v1604
    %v1742 = vpop.f32.mrf.mxu0
    %v1743 = vadd.f32 0.0, %v1742
    %v1744 = vpop.f32.mrf.mxu0
    %1745 = vmatprep.mubr.f32.mxu0 0.0
    %1746 = vmatmul.mubr.f32.gmra.mxu0 %v1605
    %v1747 = vpop.f32.mrf.mxu0
    %v1748 = vadd.f32 0.0, %v1747
    %v1749 = vpop.f32.mrf.mxu0
    %1750 = vmatprep.mubr.f32.mxu0 0.0
    %1751 = vmatmul.mubr.f32.gmra.mxu0 %v1606
    %v1752 = vpop.f32.mrf.mxu0
    %v1753 = vadd.f32 0.0, %v1752
    %v1754 = vpop.f32.mrf.mxu0
    %1755 = vmatprep.mubr.f32.mxu0 0.0
    %1756 = vmatmul.mubr.f32.gmra.mxu0 %v1607
    %v1757 = vpop.f32.mrf.mxu0
    %v1758 = vadd.f32 0.0, %v1757
    %v1759 = vpop.f32.mrf.mxu0
    %1760 = vmatprep.mubr.f32.mxu0 0.0
    %1761 = vmatmul.mubr.f32.gmra.mxu0 %v1608
    %v1762 = vpop.f32.mrf.mxu0
    %v1763 = vadd.f32 0.0, %v1762
    %v1764 = vpop.f32.mrf.mxu0
    %1765 = vmatprep.mubr.f32.mxu0 0.0
    %1766 = vmatmul.mubr.f32.gmra.mxu0 %v1609
    %v1767 = vpop.f32.mrf.mxu0
    %v1768 = vadd.f32 0.0, %v1767
    %v1769 = vpop.f32.mrf.mxu0
    %1770 = vmatprep.mubr.f32.mxu0 0.0
    %1771 = vmatmul.mubr.f32.gmra.mxu0 %v1610
    %v1772 = vpop.f32.mrf.mxu0
    %v1773 = vadd.f32 0.0, %v1772
    %v1774 = vpop.f32.mrf.mxu0
    %1775 = vmatprep.mubr.f32.mxu0 0.0
    %1776 = vmatmul.mubr.f32.gmra.mxu0 %v1611
    %v1777 = vpop.f32.mrf.mxu0
    %v1778 = vadd.f32 0.0, %v1777
    %v1779 = vpop.f32.mrf.mxu0
    %1780 = vmatprep.mubr.f32.mxu0 0.0
    %1781 = vmatmul.mubr.f32.gmra.mxu0 %v1612
    %v1782 = vpop.f32.mrf.mxu0
    %v1783 = vadd.f32 0.0, %v1782
    %v1784 = vpop.f32.mrf.mxu0
    %1785 = vmatprep.mubr.f32.mxu0 0.0
    %1786 = vmatmul.mubr.f32.gmra.mxu0 %v1613
    %v1787 = vpop.f32.mrf.mxu0
    %v1788 = vadd.f32 0.0, %v1787
    %v1789 = vpop.f32.mrf.mxu0
    %1790 = vmatprep.mubr.f32.mxu0 0.0
    %1791 = vmatmul.mubr.f32.gmra.mxu0 %v1614
    %v1792 = vpop.f32.mrf.mxu0
    %v1793 = vadd.f32 0.0, %v1792
    %v1794 = vpop.f32.mrf.mxu0
    %1795 = vmatprep.mubr.f32.mxu0 0.0
    %1796 = vmatmul.mubr.f32.gmra.mxu0 %v1615
    %v1797 = vpop.f32.mrf.mxu0
    %v1798 = vadd.f32 0.0, %v1797
    %v1799 = vpop.f32.mrf.mxu0
    %1800 = vmatprep.mubr.f32.mxu0 0.0
    %1801 = vmatmul.mubr.f32.gmra.mxu0 %v1616
    %v1802 = vpop.f32.mrf.mxu0
    %v1803 = vadd.f32 0.0, %v1802
    %v1804 = vpop.f32.mrf.mxu0
    %1805 = vmatprep.mubr.f32.mxu0 0.0
    %1806 = vmatmul.mubr.f32.gmra.mxu0 %v1617
    %v1807 = vpop.f32.mrf.mxu0
    %v1808 = vadd.f32 0.0, %v1807
    %v1809 = vpop.f32.mrf.mxu0
    %1810 = vdwg.mxu0
    %v1811 = vadd.f32 %v1168, %v1733
    %v1812 = vadd.f32 %v1169, %v1738
    %v1813 = vadd.f32 %v1170, %v1743
    %v1814 = vadd.f32 %v1171, %v1748
    %v1815 = vadd.f32 %v1172, %v1753
    %v1816 = vadd.f32 %v1173, %v1758
    %v1817 = vadd.f32 %v1174, %v1763
    %v1818 = vadd.f32 %v1175, %v1768
    %v1819 = vadd.f32 %v1176, %v1773
    %v1820 = vadd.f32 %v1177, %v1778
    %v1821 = vadd.f32 %v1178, %v1783
    %v1822 = vadd.f32 %v1179, %v1788
    %v1823 = vadd.f32 %v1180, %v1793
    %v1824 = vadd.f32 %v1181, %v1798
    %v1825 = vadd.f32 %v1182, %v1803
    %v1826 = vadd.f32 %v1183, %v1808
    %s1827 = scalar_lea.vmem [#allocation2], 256
    %v1828 = vld [vmem:[%s1827] sm:$0xff]
    %v1829 = vld [vmem:[%s1827 + $0x8] sm:$0xff]
    %v1830 = vld [vmem:[%s1827 + $0x10] sm:$0xff]
    %v1831 = vld [vmem:[%s1827 + $0x18] sm:$0xff]
    %v1832 = vld [vmem:[%s1827 + $0x20] sm:$0xff]
    %v1833 = vld [vmem:[%s1827 + $0x28] sm:$0xff]
    %v1834 = vld [vmem:[%s1827 + $0x30] sm:$0xff]
    %v1835 = vld [vmem:[%s1827 + $0x38] sm:$0xff]
    %v1836 = vld [vmem:[%s1827 + $0x40] sm:$0xff]
    %v1837 = vld [vmem:[%s1827 + $0x48] sm:$0xff]
    %v1838 = vld [vmem:[%s1827 + $0x50] sm:$0xff]
    %v1839 = vld [vmem:[%s1827 + $0x58] sm:$0xff]
    %v1840 = vld [vmem:[%s1827 + $0x60] sm:$0xff]
    %v1841 = vld [vmem:[%s1827 + $0x68] sm:$0xff]
    %v1842 = vld [vmem:[%s1827 + $0x70] sm:$0xff]
    %v1843 = vld [vmem:[%s1827 + $0x78] sm:$0xff]
    %1844 = vrot.lane.b32.xlu0 %v521, 112
    %v1845 = vpop.permute.xlu0 %1844
    %1846 = vrot.lane.b32.xlu0 %v522, 112
    %v1847 = vpop.permute.xlu0 %1846
    %1848 = vrot.lane.b32.xlu0 %v523, 112
    %v1849 = vpop.permute.xlu0 %1848
    %1850 = vrot.lane.b32.xlu0 %v524, 112
    %v1851 = vpop.permute.xlu0 %1850
    %1852 = vrot.lane.b32.xlu0 %v525, 112
    %v1853 = vpop.permute.xlu0 %1852
    %1854 = vrot.lane.b32.xlu0 %v526, 112
    %v1855 = vpop.permute.xlu0 %1854
    %1856 = vrot.lane.b32.xlu0 %v527, 112
    %v1857 = vpop.permute.xlu0 %1856
    %1858 = vrot.lane.b32.xlu0 %v528, 112
    %v1859 = vpop.permute.xlu0 %1858
    %1860 = vrot.lane.b32.xlu0 %v529, 112
    %v1861 = vpop.permute.xlu0 %1860
    %1862 = vrot.lane.b32.xlu0 %v530, 112
    %v1863 = vpop.permute.xlu0 %1862
    %1864 = vrot.lane.b32.xlu0 %v531, 112
    %v1865 = vpop.permute.xlu0 %1864
    %1866 = vrot.lane.b32.xlu0 %v532, 112
    %v1867 = vpop.permute.xlu0 %1866
    %1868 = vrot.lane.b32.xlu0 %v533, 112
    %v1869 = vpop.permute.xlu0 %1868
    %1870 = vrot.lane.b32.xlu0 %v534, 112
    %v1871 = vpop.permute.xlu0 %1870
    %1872 = vrot.lane.b32.xlu0 %v535, 112
    %v1873 = vpop.permute.xlu0 %1872
    %1874 = vrot.lane.b32.xlu0 %v536, 112
    %v1875 = vpop.permute.xlu0 %1874
    %1876 = vrot.lane.b32.xlu0 %v427, 80
    %v1877 = vpop.permute.xlu0 %1876
    %1878 = vrot.lane.b32.xlu0 %v433, 80
    %v1879 = vpop.permute.xlu0 %1878
    %1880 = vrot.lane.b32.xlu0 %v439, 80
    %v1881 = vpop.permute.xlu0 %1880
    %1882 = vrot.lane.b32.xlu0 %v445, 80
    %v1883 = vpop.permute.xlu0 %1882
    %1884 = vrot.lane.b32.xlu0 %v451, 80
    %v1885 = vpop.permute.xlu0 %1884
    %1886 = vrot.lane.b32.xlu0 %v457, 80
    %v1887 = vpop.permute.xlu0 %1886
    %1888 = vrot.lane.b32.xlu0 %v463, 80
    %v1889 = vpop.permute.xlu0 %1888
    %1890 = vrot.lane.b32.xlu0 %v469, 80
    %v1891 = vpop.permute.xlu0 %1890
    %1892 = vrot.lane.b32.xlu0 %v475, 80
    %v1893 = vpop.permute.xlu0 %1892
    %1894 = vrot.lane.b32.xlu0 %v481, 80
    %v1895 = vpop.permute.xlu0 %1894
    %1896 = vrot.lane.b32.xlu0 %v487, 80
    %v1897 = vpop.permute.xlu0 %1896
    %1898 = vrot.lane.b32.xlu0 %v493, 80
    %v1899 = vpop.permute.xlu0 %1898
    %1900 = vrot.lane.b32.xlu0 %v499, 80
    %v1901 = vpop.permute.xlu0 %1900
    %1902 = vrot.lane.b32.xlu0 %v505, 80
    %v1903 = vpop.permute.xlu0 %1902
    %1904 = vrot.lane.b32.xlu0 %v511, 80
    %v1905 = vpop.permute.xlu0 %1904
    %1906 = vrot.lane.b32.xlu0 %v517, 80
    %v1907 = vpop.permute.xlu0 %1906
    %v1908 = vsel %vm601, %v1845, 0
    %v1910 = vsel %vm601, %v1847, 0
    %v1912 = vsel %vm601, %v1849, 0
    %v1914 = vsel %vm601, %v1851, 0
    %v1916 = vsel %vm601, %v1853, 0
    %v1918 = vsel %vm601, %v1855, 0
    %v1920 = vsel %vm601, %v1857, 0
    %v1922 = vsel %vm601, %v1859, 0
    %v1924 = vsel %vm601, %v1861, 0
    %v1926 = vsel %vm601, %v1863, 0
    %v1928 = vsel %vm601, %v1865, 0
    %v1930 = vsel %vm601, %v1867, 0
    %v1932 = vsel %vm601, %v1869, 0
    %v1934 = vsel %vm601, %v1871, 0
    %v1936 = vsel %vm601, %v1873, 0
    %v1938 = vsel %vm601, %v1875, 0
    %v1940 = vsel %vm601, %v1877, 0
    %v1942 = vsel %vm601, %v1879, 0
    %v1944 = vsel %vm601, %v1881, 0
    %v1946 = vsel %vm601, %v1883, 0
    %v1948 = vsel %vm601, %v1885, 0
    %v1950 = vsel %vm601, %v1887, 0
    %v1952 = vsel %vm601, %v1889, 0
    %v1954 = vsel %vm601, %v1891, 0
    %v1956 = vsel %vm601, %v1893, 0
    %v1958 = vsel %vm601, %v1895, 0
    %v1960 = vsel %vm601, %v1897, 0
    %v1962 = vsel %vm601, %v1899, 0
    %v1964 = vsel %vm601, %v1901, 0
    %v1966 = vsel %vm601, %v1903, 0
    %v1968 = vsel %vm601, %v1905, 0
    %v1970 = vsel %vm601, %v1907, 0
    %1972 = vmatprep.subr.mxu0 0.0
    %1973 = vmatpush1.xpose.msra.mxu0 %v1970
    %1974 = vmatprep.subr.mxu0 0.0
    %1975 = vmatpush1.xpose.msra.mxu0 %v1968
    %1976 = vmatprep.subr.mxu0 0.0
    %1977 = vmatpush1.xpose.msra.mxu0 %v1966
    %1978 = vmatprep.subr.mxu0 0.0
    %1979 = vmatpush1.xpose.msra.mxu0 %v1964
    %1980 = vmatprep.subr.mxu0 0.0
    %1981 = vmatpush1.xpose.msra.mxu0 %v1962
    %1982 = vmatprep.subr.mxu0 0.0
    %1983 = vmatpush1.xpose.msra.mxu0 %v1960
    %1984 = vmatprep.subr.mxu0 0.0
    %1985 = vmatpush1.xpose.msra.mxu0 %v1958
    %1986 = vmatprep.subr.mxu0 0.0
    %1987 = vmatpush1.xpose.msra.mxu0 %v1956
    %1988 = vmatprep.subr.mxu0 0.0
    %1989 = vmatpush1.xpose.msra.mxu0 %v1954
    %1990 = vmatprep.subr.mxu0 0.0
    %1991 = vmatpush1.xpose.msra.mxu0 %v1952
    %1992 = vmatprep.subr.mxu0 0.0
    %1993 = vmatpush1.xpose.msra.mxu0 %v1950
    %1994 = vmatprep.subr.mxu0 0.0
    %1995 = vmatpush1.xpose.msra.mxu0 %v1948
    %1996 = vmatprep.subr.mxu0 0.0
    %1997 = vmatpush1.xpose.msra.mxu0 %v1946
    %1998 = vmatprep.subr.mxu0 0.0
    %1999 = vmatpush1.xpose.msra.mxu0 %v1944
    %2000 = vmatprep.subr.mxu0 0.0
    %2001 = vmatpush1.xpose.msra.mxu0 %v1942
    %2002 = vmatprep.subr.mxu0 0.0
    %2003 = vmatpush1.xpose.msra.mxu0 %v1940
    %2004 = vmatprep.subr.mxu0 0.0
    %2005 = vmatpush2.xpose.msra.mxu0 0.0
    %2006 = vmatprep.subr.mxu0 0.0
    %2007 = vmatpush2.xpose.msra.mxu0 0.0
    %2008 = vmatprep.subr.mxu0 0.0
    %2009 = vmatpush2.xpose.msra.mxu0 0.0
    %2010 = vmatprep.subr.mxu0 0.0
    %2011 = vmatpush2.xpose.msra.mxu0 0.0
    %2012 = vmatprep.subr.mxu0 0.0
    %2013 = vmatpush2.xpose.msra.mxu0 0.0
    %2014 = vmatprep.subr.mxu0 0.0
    %2015 = vmatpush2.xpose.msra.mxu0 0.0
    %2016 = vmatprep.subr.mxu0 0.0
    %2017 = vmatpush2.xpose.msra.mxu0 0.0
    %2018 = vmatprep.subr.mxu0 0.0
    %2019 = vmatpush2.xpose.msra.mxu0 0.0
    %2020 = vmatprep.subr.mxu0 0.0
    %2021 = vmatpush2.xpose.msra.mxu0 0.0
    %2022 = vmatprep.subr.mxu0 0.0
    %2023 = vmatpush2.xpose.msra.mxu0 0.0
    %2024 = vmatprep.subr.mxu0 0.0
    %2025 = vmatpush2.xpose.msra.mxu0 0.0
    %2026 = vmatprep.subr.mxu0 0.0
    %2027 = vmatpush2.xpose.msra.mxu0 0.0
    %2028 = vmatprep.subr.mxu0 0.0
    %2029 = vmatpush2.xpose.msra.mxu0 0.0
    %2030 = vmatprep.subr.mxu0 0.0
    %2031 = vmatpush2.xpose.msra.mxu0 0.0
    %2032 = vmatprep.subr.mxu0 0.0
    %2033 = vmatpush2.xpose.msra.mxu0 0.0
    %2034 = vmatprep.subr.mxu0 0.0
    %2035 = vmatpush2.xpose.msra.mxu0 0.0
    %2036 = vmatprep.mubr.f32.mxu0 0.0
    %2037 = vmatmul.mubr.f32.gmra.mxu0 %v1908
    %v2038 = vpop.f32.mrf.mxu0
    %v2039 = vadd.f32 %v1828, %v2038
    %v2040 = vpop.f32.mrf.mxu0
    %2041 = vmatprep.mubr.f32.mxu0 0.0
    %2042 = vmatmul.mubr.f32.gmra.mxu0 %v1910
    %v2043 = vpop.f32.mrf.mxu0
    %v2044 = vadd.f32 %v1829, %v2043
    %v2045 = vpop.f32.mrf.mxu0
    %2046 = vmatprep.mubr.f32.mxu0 0.0
    %2047 = vmatmul.mubr.f32.gmra.mxu0 %v1912
    %v2048 = vpop.f32.mrf.mxu0
    %v2049 = vadd.f32 %v1830, %v2048
    %v2050 = vpop.f32.mrf.mxu0
    %2051 = vmatprep.mubr.f32.mxu0 0.0
    %2052 = vmatmul.mubr.f32.gmra.mxu0 %v1914
    %v2053 = vpop.f32.mrf.mxu0
    %v2054 = vadd.f32 %v1831, %v2053
    %v2055 = vpop.f32.mrf.mxu0
    %2056 = vmatprep.mubr.f32.mxu0 0.0
    %2057 = vmatmul.mubr.f32.gmra.mxu0 %v1916
    %v2058 = vpop.f32.mrf.mxu0
    %v2059 = vadd.f32 %v1832, %v2058
    %v2060 = vpop.f32.mrf.mxu0
    %2061 = vmatprep.mubr.f32.mxu0 0.0
    %2062 = vmatmul.mubr.f32.gmra.mxu0 %v1918
    %v2063 = vpop.f32.mrf.mxu0
    %v2064 = vadd.f32 %v1833, %v2063
    %v2065 = vpop.f32.mrf.mxu0
    %2066 = vmatprep.mubr.f32.mxu0 0.0
    %2067 = vmatmul.mubr.f32.gmra.mxu0 %v1920
    %v2068 = vpop.f32.mrf.mxu0
    %v2069 = vadd.f32 %v1834, %v2068
    %v2070 = vpop.f32.mrf.mxu0
    %2071 = vmatprep.mubr.f32.mxu0 0.0
    %2072 = vmatmul.mubr.f32.gmra.mxu0 %v1922
    %v2073 = vpop.f32.mrf.mxu0
    %v2074 = vadd.f32 %v1835, %v2073
    %v2075 = vpop.f32.mrf.mxu0
    %2076 = vmatprep.mubr.f32.mxu0 0.0
    %2077 = vmatmul.mubr.f32.gmra.mxu0 %v1924
    %v2078 = vpop.f32.mrf.mxu0
    %v2079 = vadd.f32 %v1836, %v2078
    %v2080 = vpop.f32.mrf.mxu0
    %2081 = vmatprep.mubr.f32.mxu0 0.0
    %2082 = vmatmul.mubr.f32.gmra.mxu0 %v1926
    %v2083 = vpop.f32.mrf.mxu0
    %v2084 = vadd.f32 %v1837, %v2083
    %v2085 = vpop.f32.mrf.mxu0
    %2086 = vmatprep.mubr.f32.mxu0 0.0
    %2087 = vmatmul.mubr.f32.gmra.mxu0 %v1928
    %v2088 = vpop.f32.mrf.mxu0
    %v2089 = vadd.f32 %v1838, %v2088
    %v2090 = vpop.f32.mrf.mxu0
    %2091 = vmatprep.mubr.f32.mxu0 0.0
    %2092 = vmatmul.mubr.f32.gmra.mxu0 %v1930
    %v2093 = vpop.f32.mrf.mxu0
    %v2094 = vadd.f32 %v1839, %v2093
    %v2095 = vpop.f32.mrf.mxu0
    %2096 = vmatprep.mubr.f32.mxu0 0.0
    %2097 = vmatmul.mubr.f32.gmra.mxu0 %v1932
    %v2098 = vpop.f32.mrf.mxu0
    %v2099 = vadd.f32 %v1840, %v2098
    %v2100 = vpop.f32.mrf.mxu0
    %2101 = vmatprep.mubr.f32.mxu0 0.0
    %2102 = vmatmul.mubr.f32.gmra.mxu0 %v1934
    %v2103 = vpop.f32.mrf.mxu0
    %v2104 = vadd.f32 %v1841, %v2103
    %v2105 = vpop.f32.mrf.mxu0
    %2106 = vmatprep.mubr.f32.mxu0 0.0
    %2107 = vmatmul.mubr.f32.gmra.mxu0 %v1936
    %v2108 = vpop.f32.mrf.mxu0
    %v2109 = vadd.f32 %v1842, %v2108
    %v2110 = vpop.f32.mrf.mxu0
    %2111 = vmatprep.mubr.f32.mxu0 0.0
    %2112 = vmatmul.mubr.f32.gmra.mxu0 %v1938
    %v2113 = vpop.f32.mrf.mxu0
    %v2114 = vadd.f32 %v1843, %v2113
    %v2115 = vpop.f32.mrf.mxu0
    %2116 = vdwg.mxu0
    %2117 = vmax.xlane.f32.xlu0 %v2039
    %v2118 = vpop.xlane.xlu0 %2117
    %2119 = vmax.xlane.f32.xlu0 %v2044
    %v2120 = vpop.xlane.xlu0 %2119
    %2121 = vmax.xlane.f32.xlu0 %v2049
    %v2122 = vpop.xlane.xlu0 %2121
    %2123 = vmax.xlane.f32.xlu0 %v2054
    %v2124 = vpop.xlane.xlu0 %2123
    %2125 = vmax.xlane.f32.xlu0 %v2059
    %v2126 = vpop.xlane.xlu0 %2125
    %2127 = vmax.xlane.f32.xlu0 %v2064
    %v2128 = vpop.xlane.xlu0 %2127
    %2129 = vmax.xlane.f32.xlu0 %v2069
    %v2130 = vpop.xlane.xlu0 %2129
    %2131 = vmax.xlane.f32.xlu0 %v2074
    %v2132 = vpop.xlane.xlu0 %2131
    %2133 = vmax.xlane.f32.xlu0 %v2079
    %v2134 = vpop.xlane.xlu0 %2133
    %2135 = vmax.xlane.f32.xlu0 %v2084
    %v2136 = vpop.xlane.xlu0 %2135
    %2137 = vmax.xlane.f32.xlu0 %v2089
    %v2138 = vpop.xlane.xlu0 %2137
    %2139 = vmax.xlane.f32.xlu0 %v2094
    %v2140 = vpop.xlane.xlu0 %2139
    %2141 = vmax.xlane.f32.xlu0 %v2099
    %v2142 = vpop.xlane.xlu0 %2141
    %2143 = vmax.xlane.f32.xlu0 %v2104
    %v2144 = vpop.xlane.xlu0 %2143
    %2145 = vmax.xlane.f32.xlu0 %v2109
    %v2146 = vpop.xlane.xlu0 %2145
    %2147 = vmax.xlane.f32.xlu0 %v2114
    %v2148 = vpop.xlane.xlu0 %2147
    %v2149 = vsub.f32 %v2039, %v2118
    %v2150 = vsub.f32 %v2044, %v2120
    %v2151 = vsub.f32 %v2049, %v2122
    %v2152 = vsub.f32 %v2054, %v2124
    %v2153 = vsub.f32 %v2059, %v2126
    %v2154 = vsub.f32 %v2064, %v2128
    %v2155 = vsub.f32 %v2069, %v2130
    %v2156 = vsub.f32 %v2074, %v2132
    %v2157 = vsub.f32 %v2079, %v2134
    %v2158 = vsub.f32 %v2084, %v2136
    %v2159 = vsub.f32 %v2089, %v2138
    %v2160 = vsub.f32 %v2094, %v2140
    %v2161 = vsub.f32 %v2099, %v2142
    %v2162 = vsub.f32 %v2104, %v2144
    %v2163 = vsub.f32 %v2109, %v2146
    %v2164 = vsub.f32 %v2114, %v2148
    %v2165 = vmul.f32 %v2149, 1.442695
    %v2166 = vpow.pop %v2165
    %v2167 = vmul.f32 %v2150, 1.442695
    %v2168 = vpow.pop %v2167
    %v2169 = vmul.f32 %v2151, 1.442695
    %v2170 = vpow.pop %v2169
    %v2171 = vmul.f32 %v2152, 1.442695
    %v2172 = vpow.pop %v2171
    %v2173 = vmul.f32 %v2153, 1.442695
    %v2174 = vpow.pop %v2173
    %v2175 = vmul.f32 %v2154, 1.442695
    %v2176 = vpow.pop %v2175
    %v2177 = vmul.f32 %v2155, 1.442695
    %v2178 = vpow.pop %v2177
    %v2179 = vmul.f32 %v2156, 1.442695
    %v2180 = vpow.pop %v2179
    %v2181 = vmul.f32 %v2157, 1.442695
    %v2182 = vpow.pop %v2181
    %v2183 = vmul.f32 %v2158, 1.442695
    %v2184 = vpow.pop %v2183
    %v2185 = vmul.f32 %v2159, 1.442695
    %v2186 = vpow.pop %v2185
    %v2187 = vmul.f32 %v2160, 1.442695
    %v2188 = vpow.pop %v2187
    %v2189 = vmul.f32 %v2161, 1.442695
    %v2190 = vpow.pop %v2189
    %v2191 = vmul.f32 %v2162, 1.442695
    %v2192 = vpow.pop %v2191
    %v2193 = vmul.f32 %v2163, 1.442695
    %v2194 = vpow.pop %v2193
    %v2195 = vmul.f32 %v2164, 1.442695
    %v2196 = vpow.pop %v2195
    %2197 = vadd.xlane.f32.xlu0 %v2166
    %v2198 = vpop.xlane.xlu0 %2197
    %2199 = vadd.xlane.f32.xlu0 %v2168
    %v2200 = vpop.xlane.xlu0 %2199
    %2201 = vadd.xlane.f32.xlu0 %v2170
    %v2202 = vpop.xlane.xlu0 %2201
    %2203 = vadd.xlane.f32.xlu0 %v2172
    %v2204 = vpop.xlane.xlu0 %2203
    %2205 = vadd.xlane.f32.xlu0 %v2174
    %v2206 = vpop.xlane.xlu0 %2205
    %2207 = vadd.xlane.f32.xlu0 %v2176
    %v2208 = vpop.xlane.xlu0 %2207
    %2209 = vadd.xlane.f32.xlu0 %v2178
    %v2210 = vpop.xlane.xlu0 %2209
    %2211 = vadd.xlane.f32.xlu0 %v2180
    %v2212 = vpop.xlane.xlu0 %2211
    %2213 = vadd.xlane.f32.xlu0 %v2182
    %v2214 = vpop.xlane.xlu0 %2213
    %2215 = vadd.xlane.f32.xlu0 %v2184
    %v2216 = vpop.xlane.xlu0 %2215
    %2217 = vadd.xlane.f32.xlu0 %v2186
    %v2218 = vpop.xlane.xlu0 %2217
    %2219 = vadd.xlane.f32.xlu0 %v2188
    %v2220 = vpop.xlane.xlu0 %2219
    %2221 = vadd.xlane.f32.xlu0 %v2190
    %v2222 = vpop.xlane.xlu0 %2221
    %2223 = vadd.xlane.f32.xlu0 %v2192
    %v2224 = vpop.xlane.xlu0 %2223
    %2225 = vadd.xlane.f32.xlu0 %v2194
    %v2226 = vpop.xlane.xlu0 %2225
    %2227 = vadd.xlane.f32.xlu0 %v2196
    %v2228 = vpop.xlane.xlu0 %2227
    %v2229 = vrcp.pop %v2198
    %v2230 = vrcp.pop %v2200
    %v2231 = vrcp.pop %v2202
    %v2232 = vrcp.pop %v2204
    %v2233 = vrcp.pop %v2206
    %v2234 = vrcp.pop %v2208
    %v2235 = vrcp.pop %v2210
    %v2236 = vrcp.pop %v2212
    %v2237 = vrcp.pop %v2214
    %v2238 = vrcp.pop %v2216
    %v2239 = vrcp.pop %v2218
    %v2240 = vrcp.pop %v2220
    %v2241 = vrcp.pop %v2222
    %v2242 = vrcp.pop %v2224
    %v2243 = vrcp.pop %v2226
    %v2244 = vrcp.pop %v2228
    %v2245 = vmul.f32 %v2166, %v2229
    %v2246 = vmul.f32 %v2168, %v2230
    %v2247 = vmul.f32 %v2170, %v2231
    %v2248 = vmul.f32 %v2172, %v2232
    %v2249 = vmul.f32 %v2174, %v2233
    %v2250 = vmul.f32 %v2176, %v2234
    %v2251 = vmul.f32 %v2178, %v2235
    %v2252 = vmul.f32 %v2180, %v2236
    %v2253 = vmul.f32 %v2182, %v2237
    %v2254 = vmul.f32 %v2184, %v2238
    %v2255 = vmul.f32 %v2186, %v2239
    %v2256 = vmul.f32 %v2188, %v2240
    %v2257 = vmul.f32 %v2190, %v2241
    %v2258 = vmul.f32 %v2192, %v2242
    %v2259 = vmul.f32 %v2194, %v2243
    %v2260 = vmul.f32 %v2196, %v2244
    %2261 = vmatprep.subr.mxu0 0.0
    %2262 = vmatpush1.msra.mxu0 %v519
    %2263 = vmatprep.subr.mxu0 0.0
    %2264 = vmatpush1.msra.mxu0 %v513
    %2265 = vmatprep.subr.mxu0 0.0
    %2266 = vmatpush1.msra.mxu0 %v507
    %2267 = vmatprep.subr.mxu0 0.0
    %2268 = vmatpush1.msra.mxu0 %v501
    %2269 = vmatprep.subr.mxu0 0.0
    %2270 = vmatpush1.msra.mxu0 %v495
    %2271 = vmatprep.subr.mxu0 0.0
    %2272 = vmatpush1.msra.mxu0 %v489
    %2273 = vmatprep.subr.mxu0 0.0
    %2274 = vmatpush1.msra.mxu0 %v483
    %2275 = vmatprep.subr.mxu0 0.0
    %2276 = vmatpush1.msra.mxu0 %v477
    %2277 = vmatprep.subr.mxu0 0.0
    %2278 = vmatpush1.msra.mxu0 %v471
    %2279 = vmatprep.subr.mxu0 0.0
    %2280 = vmatpush1.msra.mxu0 %v465
    %2281 = vmatprep.subr.mxu0 0.0
    %2282 = vmatpush1.msra.mxu0 %v459
    %2283 = vmatprep.subr.mxu0 0.0
    %2284 = vmatpush1.msra.mxu0 %v453
    %2285 = vmatprep.subr.mxu0 0.0
    %2286 = vmatpush1.msra.mxu0 %v447
    %2287 = vmatprep.subr.mxu0 0.0
    %2288 = vmatpush1.msra.mxu0 %v441
    %2289 = vmatprep.subr.mxu0 0.0
    %2290 = vmatpush1.msra.mxu0 %v435
    %2291 = vmatprep.subr.mxu0 0.0
    %2292 = vmatpush1.msra.mxu0 %v429
    %2293 = vmatprep.subr.mxu0 0.0
    %2294 = vmatpush2.msra.mxu0 0.0
    %2295 = vmatprep.subr.mxu0 0.0
    %2296 = vmatpush2.msra.mxu0 0.0
    %2297 = vmatprep.subr.mxu0 0.0
    %2298 = vmatpush2.msra.mxu0 0.0
    %2299 = vmatprep.subr.mxu0 0.0
    %2300 = vmatpush2.msra.mxu0 0.0
    %2301 = vmatprep.subr.mxu0 0.0
    %2302 = vmatpush2.msra.mxu0 0.0
    %2303 = vmatprep.subr.mxu0 0.0
    %2304 = vmatpush2.msra.mxu0 0.0
    %2305 = vmatprep.subr.mxu0 0.0
    %2306 = vmatpush2.msra.mxu0 0.0
    %2307 = vmatprep.subr.mxu0 0.0
    %2308 = vmatpush2.msra.mxu0 0.0
    %2309 = vmatprep.subr.mxu0 0.0
    %2310 = vmatpush2.msra.mxu0 0.0
    %2311 = vmatprep.subr.mxu0 0.0
    %2312 = vmatpush2.msra.mxu0 0.0
    %2313 = vmatprep.subr.mxu0 0.0
    %2314 = vmatpush2.msra.mxu0 0.0
    %2315 = vmatprep.subr.mxu0 0.0
    %2316 = vmatpush2.msra.mxu0 0.0
    %2317 = vmatprep.subr.mxu0 0.0
    %2318 = vmatpush2.msra.mxu0 0.0
    %2319 = vmatprep.subr.mxu0 0.0
    %2320 = vmatpush2.msra.mxu0 0.0
    %2321 = vmatprep.subr.mxu0 0.0
    %2322 = vmatpush2.msra.mxu0 0.0
    %2323 = vmatprep.subr.mxu0 0.0
    %2324 = vmatpush2.msra.mxu0 0.0
    %2325 = vmatprep.mubr.f32.mxu0 0.0
    %2326 = vmatmul.mubr.f32.gmra.mxu0 %v2245
    %v2327 = vpop.f32.mrf.mxu0
    %v2328 = vadd.f32 0.0, %v2327
    %v2329 = vpop.f32.mrf.mxu0
    %2330 = vmatprep.mubr.f32.mxu0 0.0
    %2331 = vmatmul.mubr.f32.gmra.mxu0 %v2246
    %v2332 = vpop.f32.mrf.mxu0
    %v2333 = vadd.f32 0.0, %v2332
    %v2334 = vpop.f32.mrf.mxu0
    %2335 = vmatprep.mubr.f32.mxu0 0.0
    %2336 = vmatmul.mubr.f32.gmra.mxu0 %v2247
    %v2337 = vpop.f32.mrf.mxu0
    %v2338 = vadd.f32 0.0, %v2337
    %v2339 = vpop.f32.mrf.mxu0
    %2340 = vmatprep.mubr.f32.mxu0 0.0
    %2341 = vmatmul.mubr.f32.gmra.mxu0 %v2248
    %v2342 = vpop.f32.mrf.mxu0
    %v2343 = vadd.f32 0.0, %v2342
    %v2344 = vpop.f32.mrf.mxu0
    %2345 = vmatprep.mubr.f32.mxu0 0.0
    %2346 = vmatmul.mubr.f32.gmra.mxu0 %v2249
    %v2347 = vpop.f32.mrf.mxu0
    %v2348 = vadd.f32 0.0, %v2347
    %v2349 = vpop.f32.mrf.mxu0
    %2350 = vmatprep.mubr.f32.mxu0 0.0
    %2351 = vmatmul.mubr.f32.gmra.mxu0 %v2250
    %v2352 = vpop.f32.mrf.mxu0
    %v2353 = vadd.f32 0.0, %v2352
    %v2354 = vpop.f32.mrf.mxu0
    %2355 = vmatprep.mubr.f32.mxu0 0.0
    %2356 = vmatmul.mubr.f32.gmra.mxu0 %v2251
    %v2357 = vpop.f32.mrf.mxu0
    %v2358 = vadd.f32 0.0, %v2357
    %v2359 = vpop.f32.mrf.mxu0
    %2360 = vmatprep.mubr.f32.mxu0 0.0
    %2361 = vmatmul.mubr.f32.gmra.mxu0 %v2252
    %v2362 = vpop.f32.mrf.mxu0
    %v2363 = vadd.f32 0.0, %v2362
    %v2364 = vpop.f32.mrf.mxu0
    %2365 = vmatprep.mubr.f32.mxu0 0.0
    %2366 = vmatmul.mubr.f32.gmra.mxu0 %v2253
    %v2367 = vpop.f32.mrf.mxu0
    %v2368 = vadd.f32 0.0, %v2367
    %v2369 = vpop.f32.mrf.mxu0
    %2370 = vmatprep.mubr.f32.mxu0 0.0
    %2371 = vmatmul.mubr.f32.gmra.mxu0 %v2254
    %v2372 = vpop.f32.mrf.mxu0
    %v2373 = vadd.f32 0.0, %v2372
    %v2374 = vpop.f32.mrf.mxu0
    %2375 = vmatprep.mubr.f32.mxu0 0.0
    %2376 = vmatmul.mubr.f32.gmra.mxu0 %v2255
    %v2377 = vpop.f32.mrf.mxu0
    %v2378 = vadd.f32 0.0, %v2377
    %v2379 = vpop.f32.mrf.mxu0
    %2380 = vmatprep.mubr.f32.mxu0 0.0
    %2381 = vmatmul.mubr.f32.gmra.mxu0 %v2256
    %v2382 = vpop.f32.mrf.mxu0
    %v2383 = vadd.f32 0.0, %v2382
    %v2384 = vpop.f32.mrf.mxu0
    %2385 = vmatprep.mubr.f32.mxu0 0.0
    %2386 = vmatmul.mubr.f32.gmra.mxu0 %v2257
    %v2387 = vpop.f32.mrf.mxu0
    %v2388 = vadd.f32 0.0, %v2387
    %v2389 = vpop.f32.mrf.mxu0
    %2390 = vmatprep.mubr.f32.mxu0 0.0
    %2391 = vmatmul.mubr.f32.gmra.mxu0 %v2258
    %v2392 = vpop.f32.mrf.mxu0
    %v2393 = vadd.f32 0.0, %v2392
    %v2394 = vpop.f32.mrf.mxu0
    %2395 = vmatprep.mubr.f32.mxu0 0.0
    %2396 = vmatmul.mubr.f32.gmra.mxu0 %v2259
    %v2397 = vpop.f32.mrf.mxu0
    %v2398 = vadd.f32 0.0, %v2397
    %v2399 = vpop.f32.mrf.mxu0
    %2400 = vmatprep.mubr.f32.mxu0 0.0
    %2401 = vmatmul.mubr.f32.gmra.mxu0 %v2260
    %v2402 = vpop.f32.mrf.mxu0
    %v2403 = vadd.f32 0.0, %v2402
    %v2404 = vpop.f32.mrf.mxu0
    %2405 = vdwg.mxu0
    %v2406 = vadd.f32 %v1811, %v2328
    %v2407 = vadd.f32 %v1812, %v2333
    %v2408 = vadd.f32 %v1813, %v2338
    %v2409 = vadd.f32 %v1814, %v2343
    %v2410 = vadd.f32 %v1815, %v2348
    %v2411 = vadd.f32 %v1816, %v2353
    %v2412 = vadd.f32 %v1817, %v2358
    %v2413 = vadd.f32 %v1818, %v2363
    %v2414 = vadd.f32 %v1819, %v2368
    %v2415 = vadd.f32 %v1820, %v2373
    %v2416 = vadd.f32 %v1821, %v2378
    %v2417 = vadd.f32 %v1822, %v2383
    %v2418 = vadd.f32 %v1823, %v2388
    %v2419 = vadd.f32 %v1824, %v2393
    %v2420 = vadd.f32 %v1825, %v2398
    %v2421 = vadd.f32 %v1826, %v2403
    %s2422 = scalar_lea.vmem [#allocation2], 384
    %v2423 = vld [vmem:[%s2422] sm:$0xff]
    %v2424 = vld [vmem:[%s2422 + $0x8] sm:$0xff]
    %v2425 = vld [vmem:[%s2422 + $0x10] sm:$0xff]
    %v2426 = vld [vmem:[%s2422 + $0x18] sm:$0xff]
    %v2427 = vld [vmem:[%s2422 + $0x20] sm:$0xff]
    %v2428 = vld [vmem:[%s2422 + $0x28] sm:$0xff]
    %v2429 = vld [vmem:[%s2422 + $0x30] sm:$0xff]
    %v2430 = vld [vmem:[%s2422 + $0x38] sm:$0xff]
    %v2431 = vld [vmem:[%s2422 + $0x40] sm:$0xff]
    %v2432 = vld [vmem:[%s2422 + $0x48] sm:$0xff]
    %v2433 = vld [vmem:[%s2422 + $0x50] sm:$0xff]
    %v2434 = vld [vmem:[%s2422 + $0x58] sm:$0xff]
    %v2435 = vld [vmem:[%s2422 + $0x60] sm:$0xff]
    %v2436 = vld [vmem:[%s2422 + $0x68] sm:$0xff]
    %v2437 = vld [vmem:[%s2422 + $0x70] sm:$0xff]
    %v2438 = vld [vmem:[%s2422 + $0x78] sm:$0xff]
    %2439 = vrot.lane.b32.xlu0 %v521, 104
    %v2440 = vpop.permute.xlu0 %2439
    %2441 = vrot.lane.b32.xlu0 %v522, 104
    %v2442 = vpop.permute.xlu0 %2441
    %2443 = vrot.lane.b32.xlu0 %v523, 104
    %v2444 = vpop.permute.xlu0 %2443
    %2445 = vrot.lane.b32.xlu0 %v524, 104
    %v2446 = vpop.permute.xlu0 %2445
    %2447 = vrot.lane.b32.xlu0 %v525, 104
    %v2448 = vpop.permute.xlu0 %2447
    %2449 = vrot.lane.b32.xlu0 %v526, 104
    %v2450 = vpop.permute.xlu0 %2449
    %2451 = vrot.lane.b32.xlu0 %v527, 104
    %v2452 = vpop.permute.xlu0 %2451
    %2453 = vrot.lane.b32.xlu0 %v528, 104
    %v2454 = vpop.permute.xlu0 %2453
    %2455 = vrot.lane.b32.xlu0 %v529, 104
    %v2456 = vpop.permute.xlu0 %2455
    %2457 = vrot.lane.b32.xlu0 %v530, 104
    %v2458 = vpop.permute.xlu0 %2457
    %2459 = vrot.lane.b32.xlu0 %v531, 104
    %v2460 = vpop.permute.xlu0 %2459
    %2461 = vrot.lane.b32.xlu0 %v532, 104
    %v2462 = vpop.permute.xlu0 %2461
    %2463 = vrot.lane.b32.xlu0 %v533, 104
    %v2464 = vpop.permute.xlu0 %2463
    %2465 = vrot.lane.b32.xlu0 %v534, 104
    %v2466 = vpop.permute.xlu0 %2465
    %2467 = vrot.lane.b32.xlu0 %v535, 104
    %v2468 = vpop.permute.xlu0 %2467
    %2469 = vrot.lane.b32.xlu0 %v536, 104
    %v2470 = vpop.permute.xlu0 %2469
    %2471 = vrot.lane.b32.xlu0 %v427, 72
    %v2472 = vpop.permute.xlu0 %2471
    %2473 = vrot.lane.b32.xlu0 %v433, 72
    %v2474 = vpop.permute.xlu0 %2473
    %2475 = vrot.lane.b32.xlu0 %v439, 72
    %v2476 = vpop.permute.xlu0 %2475
    %2477 = vrot.lane.b32.xlu0 %v445, 72
    %v2478 = vpop.permute.xlu0 %2477
    %2479 = vrot.lane.b32.xlu0 %v451, 72
    %v2480 = vpop.permute.xlu0 %2479
    %2481 = vrot.lane.b32.xlu0 %v457, 72
    %v2482 = vpop.permute.xlu0 %2481
    %2483 = vrot.lane.b32.xlu0 %v463, 72
    %v2484 = vpop.permute.xlu0 %2483
    %2485 = vrot.lane.b32.xlu0 %v469, 72
    %v2486 = vpop.permute.xlu0 %2485
    %2487 = vrot.lane.b32.xlu0 %v475, 72
    %v2488 = vpop.permute.xlu0 %2487
    %2489 = vrot.lane.b32.xlu0 %v481, 72
    %v2490 = vpop.permute.xlu0 %2489
    %2491 = vrot.lane.b32.xlu0 %v487, 72
    %v2492 = vpop.permute.xlu0 %2491
    %2493 = vrot.lane.b32.xlu0 %v493, 72
    %v2494 = vpop.permute.xlu0 %2493
    %2495 = vrot.lane.b32.xlu0 %v499, 72
    %v2496 = vpop.permute.xlu0 %2495
    %2497 = vrot.lane.b32.xlu0 %v505, 72
    %v2498 = vpop.permute.xlu0 %2497
    %2499 = vrot.lane.b32.xlu0 %v511, 72
    %v2500 = vpop.permute.xlu0 %2499
    %2501 = vrot.lane.b32.xlu0 %v517, 72
    %v2502 = vpop.permute.xlu0 %2501
    %v2503 = vsel %vm601, %v2440, 0
    %v2505 = vsel %vm601, %v2442, 0
    %v2507 = vsel %vm601, %v2444, 0
    %v2509 = vsel %vm601, %v2446, 0
    %v2511 = vsel %vm601, %v2448, 0
    %v2513 = vsel %vm601, %v2450, 0
    %v2515 = vsel %vm601, %v2452, 0
    %v2517 = vsel %vm601, %v2454, 0
    %v2519 = vsel %vm601, %v2456, 0
    %v2521 = vsel %vm601, %v2458, 0
    %v2523 = vsel %vm601, %v2460, 0
    %v2525 = vsel %vm601, %v2462, 0
    %v2527 = vsel %vm601, %v2464, 0
    %v2529 = vsel %vm601, %v2466, 0
    %v2531 = vsel %vm601, %v2468, 0
    %v2533 = vsel %vm601, %v2470, 0
    %v2535 = vsel %vm601, %v2472, 0
    %v2537 = vsel %vm601, %v2474, 0
    %v2539 = vsel %vm601, %v2476, 0
    %v2541 = vsel %vm601, %v2478, 0
    %v2543 = vsel %vm601, %v2480, 0
    %v2545 = vsel %vm601, %v2482, 0
    %v2547 = vsel %vm601, %v2484, 0
    %v2549 = vsel %vm601, %v2486, 0
    %v2551 = vsel %vm601, %v2488, 0
    %v2553 = vsel %vm601, %v2490, 0
    %v2555 = vsel %vm601, %v2492, 0
    %v2557 = vsel %vm601, %v2494, 0
    %v2559 = vsel %vm601, %v2496, 0
    %v2561 = vsel %vm601, %v2498, 0
    %v2563 = vsel %vm601, %v2500, 0
    %v2565 = vsel %vm601, %v2502, 0
    %2567 = vmatprep.subr.mxu0 0.0
    %2568 = vmatpush1.xpose.msra.mxu0 %v2565
    %2569 = vmatprep.subr.mxu0 0.0
    %2570 = vmatpush1.xpose.msra.mxu0 %v2563
    %2571 = vmatprep.subr.mxu0 0.0
    %2572 = vmatpush1.xpose.msra.mxu0 %v2561
    %2573 = vmatprep.subr.mxu0 0.0
    %2574 = vmatpush1.xpose.msra.mxu0 %v2559
    %2575 = vmatprep.subr.mxu0 0.0
    %2576 = vmatpush1.xpose.msra.mxu0 %v2557
    %2577 = vmatprep.subr.mxu0 0.0
    %2578 = vmatpush1.xpose.msra.mxu0 %v2555
    %2579 = vmatprep.subr.mxu0 0.0
    %2580 = vmatpush1.xpose.msra.mxu0 %v2553
    %2581 = vmatprep.subr.mxu0 0.0
    %2582 = vmatpush1.xpose.msra.mxu0 %v2551
    %2583 = vmatprep.subr.mxu0 0.0
    %2584 = vmatpush1.xpose.msra.mxu0 %v2549
    %2585 = vmatprep.subr.mxu0 0.0
    %2586 = vmatpush1.xpose.msra.mxu0 %v2547
    %2587 = vmatprep.subr.mxu0 0.0
    %2588 = vmatpush1.xpose.msra.mxu0 %v2545
    %2589 = vmatprep.subr.mxu0 0.0
    %2590 = vmatpush1.xpose.msra.mxu0 %v2543
    %2591 = vmatprep.subr.mxu0 0.0
    %2592 = vmatpush1.xpose.msra.mxu0 %v2541
    %2593 = vmatprep.subr.mxu0 0.0
    %2594 = vmatpush1.xpose.msra.mxu0 %v2539
    %2595 = vmatprep.subr.mxu0 0.0
    %2596 = vmatpush1.xpose.msra.mxu0 %v2537
    %2597 = vmatprep.subr.mxu0 0.0
    %2598 = vmatpush1.xpose.msra.mxu0 %v2535
    %2599 = vmatprep.subr.mxu0 0.0
    %2600 = vmatpush2.xpose.msra.mxu0 0.0
    %2601 = vmatprep.subr.mxu0 0.0
    %2602 = vmatpush2.xpose.msra.mxu0 0.0
    %2603 = vmatprep.subr.mxu0 0.0
    %2604 = vmatpush2.xpose.msra.mxu0 0.0
    %2605 = vmatprep.subr.mxu0 0.0
    %2606 = vmatpush2.xpose.msra.mxu0 0.0
    %2607 = vmatprep.subr.mxu0 0.0
    %2608 = vmatpush2.xpose.msra.mxu0 0.0
    %2609 = vmatprep.subr.mxu0 0.0
    %2610 = vmatpush2.xpose.msra.mxu0 0.0
    %2611 = vmatprep.subr.mxu0 0.0
    %2612 = vmatpush2.xpose.msra.mxu0 0.0
    %2613 = vmatprep.subr.mxu0 0.0
    %2614 = vmatpush2.xpose.msra.mxu0 0.0
    %2615 = vmatprep.subr.mxu0 0.0
    %2616 = vmatpush2.xpose.msra.mxu0 0.0
    %2617 = vmatprep.subr.mxu0 0.0
    %2618 = vmatpush2.xpose.msra.mxu0 0.0
    %2619 = vmatprep.subr.mxu0 0.0
    %2620 = vmatpush2.xpose.msra.mxu0 0.0
    %2621 = vmatprep.subr.mxu0 0.0
    %2622 = vmatpush2.xpose.msra.mxu0 0.0
    %2623 = vmatprep.subr.mxu0 0.0
    %2624 = vmatpush2.xpose.msra.mxu0 0.0
    %2625 = vmatprep.subr.mxu0 0.0
    %2626 = vmatpush2.xpose.msra.mxu0 0.0
    %2627 = vmatprep.subr.mxu0 0.0
    %2628 = vmatpush2.xpose.msra.mxu0 0.0
    %2629 = vmatprep.subr.mxu0 0.0
    %2630 = vmatpush2.xpose.msra.mxu0 0.0
    %2631 = vmatprep.mubr.f32.mxu0 0.0
    %2632 = vmatmul.mubr.f32.gmra.mxu0 %v2503
    %v2633 = vpop.f32.mrf.mxu0
    %v2634 = vadd.f32 %v2423, %v2633
    %v2635 = vpop.f32.mrf.mxu0
    %2636 = vmatprep.mubr.f32.mxu0 0.0
    %2637 = vmatmul.mubr.f32.gmra.mxu0 %v2505
    %v2638 = vpop.f32.mrf.mxu0
    %v2639 = vadd.f32 %v2424, %v2638
    %v2640 = vpop.f32.mrf.mxu0
    %2641 = vmatprep.mubr.f32.mxu0 0.0
    %2642 = vmatmul.mubr.f32.gmra.mxu0 %v2507
    %v2643 = vpop.f32.mrf.mxu0
    %v2644 = vadd.f32 %v2425, %v2643
    %v2645 = vpop.f32.mrf.mxu0
    %2646 = vmatprep.mubr.f32.mxu0 0.0
    %2647 = vmatmul.mubr.f32.gmra.mxu0 %v2509
    %v2648 = vpop.f32.mrf.mxu0
    %v2649 = vadd.f32 %v2426, %v2648
    %v2650 = vpop.f32.mrf.mxu0
    %2651 = vmatprep.mubr.f32.mxu0 0.0
    %2652 = vmatmul.mubr.f32.gmra.mxu0 %v2511
    %v2653 = vpop.f32.mrf.mxu0
    %v2654 = vadd.f32 %v2427, %v2653
    %v2655 = vpop.f32.mrf.mxu0
    %2656 = vmatprep.mubr.f32.mxu0 0.0
    %2657 = vmatmul.mubr.f32.gmra.mxu0 %v2513
    %v2658 = vpop.f32.mrf.mxu0
    %v2659 = vadd.f32 %v2428, %v2658
    %v2660 = vpop.f32.mrf.mxu0
    %2661 = vmatprep.mubr.f32.mxu0 0.0
    %2662 = vmatmul.mubr.f32.gmra.mxu0 %v2515
    %v2663 = vpop.f32.mrf.mxu0
    %v2664 = vadd.f32 %v2429, %v2663
    %v2665 = vpop.f32.mrf.mxu0
    %2666 = vmatprep.mubr.f32.mxu0 0.0
    %2667 = vmatmul.mubr.f32.gmra.mxu0 %v2517
    %v2668 = vpop.f32.mrf.mxu0
    %v2669 = vadd.f32 %v2430, %v2668
    %v2670 = vpop.f32.mrf.mxu0
    %2671 = vmatprep.mubr.f32.mxu0 0.0
    %2672 = vmatmul.mubr.f32.gmra.mxu0 %v2519
    %v2673 = vpop.f32.mrf.mxu0
    %v2674 = vadd.f32 %v2431, %v2673
    %v2675 = vpop.f32.mrf.mxu0
    %2676 = vmatprep.mubr.f32.mxu0 0.0
    %2677 = vmatmul.mubr.f32.gmra.mxu0 %v2521
    %v2678 = vpop.f32.mrf.mxu0
    %v2679 = vadd.f32 %v2432, %v2678
    %v2680 = vpop.f32.mrf.mxu0
    %2681 = vmatprep.mubr.f32.mxu0 0.0
    %2682 = vmatmul.mubr.f32.gmra.mxu0 %v2523
    %v2683 = vpop.f32.mrf.mxu0
    %v2684 = vadd.f32 %v2433, %v2683
    %v2685 = vpop.f32.mrf.mxu0
    %2686 = vmatprep.mubr.f32.mxu0 0.0
    %2687 = vmatmul.mubr.f32.gmra.mxu0 %v2525
    %v2688 = vpop.f32.mrf.mxu0
    %v2689 = vadd.f32 %v2434, %v2688
    %v2690 = vpop.f32.mrf.mxu0
    %2691 = vmatprep.mubr.f32.mxu0 0.0
    %2692 = vmatmul.mubr.f32.gmra.mxu0 %v2527
    %v2693 = vpop.f32.mrf.mxu0
    %v2694 = vadd.f32 %v2435, %v2693
    %v2695 = vpop.f32.mrf.mxu0
    %2696 = vmatprep.mubr.f32.mxu0 0.0
    %2697 = vmatmul.mubr.f32.gmra.mxu0 %v2529
    %v2698 = vpop.f32.mrf.mxu0
    %v2699 = vadd.f32 %v2436, %v2698
    %v2700 = vpop.f32.mrf.mxu0
    %2701 = vmatprep.mubr.f32.mxu0 0.0
    %2702 = vmatmul.mubr.f32.gmra.mxu0 %v2531
    %v2703 = vpop.f32.mrf.mxu0
    %v2704 = vadd.f32 %v2437, %v2703
    %v2705 = vpop.f32.mrf.mxu0
    %2706 = vmatprep.mubr.f32.mxu0 0.0
    %2707 = vmatmul.mubr.f32.gmra.mxu0 %v2533
    %v2708 = vpop.f32.mrf.mxu0
    %v2709 = vadd.f32 %v2438, %v2708
    %v2710 = vpop.f32.mrf.mxu0
    %2711 = vdwg.mxu0
    %2712 = vmax.xlane.f32.xlu0 %v2634
    %v2713 = vpop.xlane.xlu0 %2712
    %2714 = vmax.xlane.f32.xlu0 %v2639
    %v2715 = vpop.xlane.xlu0 %2714
    %2716 = vmax.xlane.f32.xlu0 %v2644
    %v2717 = vpop.xlane.xlu0 %2716
    %2718 = vmax.xlane.f32.xlu0 %v2649
    %v2719 = vpop.xlane.xlu0 %2718
    %2720 = vmax.xlane.f32.xlu0 %v2654
    %v2721 = vpop.xlane.xlu0 %2720
    %2722 = vmax.xlane.f32.xlu0 %v2659
    %v2723 = vpop.xlane.xlu0 %2722
    %2724 = vmax.xlane.f32.xlu0 %v2664
    %v2725 = vpop.xlane.xlu0 %2724
    %2726 = vmax.xlane.f32.xlu0 %v2669
    %v2727 = vpop.xlane.xlu0 %2726
    %2728 = vmax.xlane.f32.xlu0 %v2674
    %v2729 = vpop.xlane.xlu0 %2728
    %2730 = vmax.xlane.f32.xlu0 %v2679
    %v2731 = vpop.xlane.xlu0 %2730
    %2732 = vmax.xlane.f32.xlu0 %v2684
    %v2733 = vpop.xlane.xlu0 %2732
    %2734 = vmax.xlane.f32.xlu0 %v2689
    %v2735 = vpop.xlane.xlu0 %2734
    %2736 = vmax.xlane.f32.xlu0 %v2694
    %v2737 = vpop.xlane.xlu0 %2736
    %2738 = vmax.xlane.f32.xlu0 %v2699
    %v2739 = vpop.xlane.xlu0 %2738
    %2740 = vmax.xlane.f32.xlu0 %v2704
    %v2741 = vpop.xlane.xlu0 %2740
    %2742 = vmax.xlane.f32.xlu0 %v2709
    %v2743 = vpop.xlane.xlu0 %2742
    %v2744 = vsub.f32 %v2634, %v2713
    %v2745 = vsub.f32 %v2639, %v2715
    %v2746 = vsub.f32 %v2644, %v2717
    %v2747 = vsub.f32 %v2649, %v2719
    %v2748 = vsub.f32 %v2654, %v2721
    %v2749 = vsub.f32 %v2659, %v2723
    %v2750 = vsub.f32 %v2664, %v2725
    %v2751 = vsub.f32 %v2669, %v2727
    %v2752 = vsub.f32 %v2674, %v2729
    %v2753 = vsub.f32 %v2679, %v2731
    %v2754 = vsub.f32 %v2684, %v2733
    %v2755 = vsub.f32 %v2689, %v2735
    %v2756 = vsub.f32 %v2694, %v2737
    %v2757 = vsub.f32 %v2699, %v2739
    %v2758 = vsub.f32 %v2704, %v2741
    %v2759 = vsub.f32 %v2709, %v2743
    %v2760 = vmul.f32 %v2744, 1.442695
    %v2761 = vpow.pop %v2760
    %v2762 = vmul.f32 %v2745, 1.442695
    %v2763 = vpow.pop %v2762
    %v2764 = vmul.f32 %v2746, 1.442695
    %v2765 = vpow.pop %v2764
    %v2766 = vmul.f32 %v2747, 1.442695
    %v2767 = vpow.pop %v2766
    %v2768 = vmul.f32 %v2748, 1.442695
    %v2769 = vpow.pop %v2768
    %v2770 = vmul.f32 %v2749, 1.442695
    %v2771 = vpow.pop %v2770
    %v2772 = vmul.f32 %v2750, 1.442695
    %v2773 = vpow.pop %v2772
    %v2774 = vmul.f32 %v2751, 1.442695
    %v2775 = vpow.pop %v2774
    %v2776 = vmul.f32 %v2752, 1.442695
    %v2777 = vpow.pop %v2776
    %v2778 = vmul.f32 %v2753, 1.442695
    %v2779 = vpow.pop %v2778
    %v2780 = vmul.f32 %v2754, 1.442695
    %v2781 = vpow.pop %v2780
    %v2782 = vmul.f32 %v2755, 1.442695
    %v2783 = vpow.pop %v2782
    %v2784 = vmul.f32 %v2756, 1.442695
    %v2785 = vpow.pop %v2784
    %v2786 = vmul.f32 %v2757, 1.442695
    %v2787 = vpow.pop %v2786
    %v2788 = vmul.f32 %v2758, 1.442695
    %v2789 = vpow.pop %v2788
    %v2790 = vmul.f32 %v2759, 1.442695
    %v2791 = vpow.pop %v2790
    %2792 = vadd.xlane.f32.xlu0 %v2761
    %v2793 = vpop.xlane.xlu0 %2792
    %2794 = vadd.xlane.f32.xlu0 %v2763
    %v2795 = vpop.xlane.xlu0 %2794
    %2796 = vadd.xlane.f32.xlu0 %v2765
    %v2797 = vpop.xlane.xlu0 %2796
    %2798 = vadd.xlane.f32.xlu0 %v2767
    %v2799 = vpop.xlane.xlu0 %2798
    %2800 = vadd.xlane.f32.xlu0 %v2769
    %v2801 = vpop.xlane.xlu0 %2800
    %2802 = vadd.xlane.f32.xlu0 %v2771
    %v2803 = vpop.xlane.xlu0 %2802
    %2804 = vadd.xlane.f32.xlu0 %v2773
    %v2805 = vpop.xlane.xlu0 %2804
    %2806 = vadd.xlane.f32.xlu0 %v2775
    %v2807 = vpop.xlane.xlu0 %2806
    %2808 = vadd.xlane.f32.xlu0 %v2777
    %v2809 = vpop.xlane.xlu0 %2808
    %2810 = vadd.xlane.f32.xlu0 %v2779
    %v2811 = vpop.xlane.xlu0 %2810
    %2812 = vadd.xlane.f32.xlu0 %v2781
    %v2813 = vpop.xlane.xlu0 %2812
    %2814 = vadd.xlane.f32.xlu0 %v2783
    %v2815 = vpop.xlane.xlu0 %2814
    %2816 = vadd.xlane.f32.xlu0 %v2785
    %v2817 = vpop.xlane.xlu0 %2816
    %2818 = vadd.xlane.f32.xlu0 %v2787
    %v2819 = vpop.xlane.xlu0 %2818
    %2820 = vadd.xlane.f32.xlu0 %v2789
    %v2821 = vpop.xlane.xlu0 %2820
    %2822 = vadd.xlane.f32.xlu0 %v2791
    %v2823 = vpop.xlane.xlu0 %2822
    %v2824 = vrcp.pop %v2793
    %v2825 = vrcp.pop %v2795
    %v2826 = vrcp.pop %v2797
    %v2827 = vrcp.pop %v2799
    %v2828 = vrcp.pop %v2801
    %v2829 = vrcp.pop %v2803
    %v2830 = vrcp.pop %v2805
    %v2831 = vrcp.pop %v2807
    %v2832 = vrcp.pop %v2809
    %v2833 = vrcp.pop %v2811
    %v2834 = vrcp.pop %v2813
    %v2835 = vrcp.pop %v2815
    %v2836 = vrcp.pop %v2817
    %v2837 = vrcp.pop %v2819
    %v2838 = vrcp.pop %v2821
    %v2839 = vrcp.pop %v2823
    %v2840 = vmul.f32 %v2761, %v2824
    %v2841 = vmul.f32 %v2763, %v2825
    %v2842 = vmul.f32 %v2765, %v2826
    %v2843 = vmul.f32 %v2767, %v2827
    %v2844 = vmul.f32 %v2769, %v2828
    %v2845 = vmul.f32 %v2771, %v2829
    %v2846 = vmul.f32 %v2773, %v2830
    %v2847 = vmul.f32 %v2775, %v2831
    %v2848 = vmul.f32 %v2777, %v2832
    %v2849 = vmul.f32 %v2779, %v2833
    %v2850 = vmul.f32 %v2781, %v2834
    %v2851 = vmul.f32 %v2783, %v2835
    %v2852 = vmul.f32 %v2785, %v2836
    %v2853 = vmul.f32 %v2787, %v2837
    %v2854 = vmul.f32 %v2789, %v2838
    %v2855 = vmul.f32 %v2791, %v2839
    %2872 = vrot.lane.b32.xlu0 %v429, 96
    %v2873 = vpop.permute.xlu0 %2872
    %2874 = vrot.lane.b32.xlu0 %v435, 96
    %v2875 = vpop.permute.xlu0 %2874
    %2876 = vrot.lane.b32.xlu0 %v441, 96
    %v2877 = vpop.permute.xlu0 %2876
    %2878 = vrot.lane.b32.xlu0 %v447, 96
    %v2879 = vpop.permute.xlu0 %2878
    %2880 = vrot.lane.b32.xlu0 %v453, 96
    %v2881 = vpop.permute.xlu0 %2880
    %2882 = vrot.lane.b32.xlu0 %v459, 96
    %v2883 = vpop.permute.xlu0 %2882
    %2884 = vrot.lane.b32.xlu0 %v465, 96
    %v2885 = vpop.permute.xlu0 %2884
    %2886 = vrot.lane.b32.xlu0 %v471, 96
    %v2887 = vpop.permute.xlu0 %2886
    %2888 = vrot.lane.b32.xlu0 %v477, 96
    %v2889 = vpop.permute.xlu0 %2888
    %2890 = vrot.lane.b32.xlu0 %v483, 96
    %v2891 = vpop.permute.xlu0 %2890
    %2892 = vrot.lane.b32.xlu0 %v489, 96
    %v2893 = vpop.permute.xlu0 %2892
    %2894 = vrot.lane.b32.xlu0 %v495, 96
    %v2895 = vpop.permute.xlu0 %2894
    %2896 = vrot.lane.b32.xlu0 %v501, 96
    %v2897 = vpop.permute.xlu0 %2896
    %2898 = vrot.lane.b32.xlu0 %v507, 96
    %v2899 = vpop.permute.xlu0 %2898
    %2900 = vrot.lane.b32.xlu0 %v513, 96
    %v2901 = vpop.permute.xlu0 %2900
    %2902 = vrot.lane.b32.xlu0 %v519, 96
    %v2903 = vpop.permute.xlu0 %2902
    %2920 = vmatprep.subr.mxu0 0.0
    %2921 = vmatpush1.msra.mxu0 %v2903
    %2922 = vmatprep.subr.mxu0 0.0
    %2923 = vmatpush1.msra.mxu0 %v2901
    %2924 = vmatprep.subr.mxu0 0.0
    %2925 = vmatpush1.msra.mxu0 %v2899
    %2926 = vmatprep.subr.mxu0 0.0
    %2927 = vmatpush1.msra.mxu0 %v2897
    %2928 = vmatprep.subr.mxu0 0.0
    %2929 = vmatpush1.msra.mxu0 %v2895
    %2930 = vmatprep.subr.mxu0 0.0
    %2931 = vmatpush1.msra.mxu0 %v2893
    %2932 = vmatprep.subr.mxu0 0.0
    %2933 = vmatpush1.msra.mxu0 %v2891
    %2934 = vmatprep.subr.mxu0 0.0
    %2935 = vmatpush1.msra.mxu0 %v2889
    %2936 = vmatprep.subr.mxu0 0.0
    %2937 = vmatpush1.msra.mxu0 %v2887
    %2938 = vmatprep.subr.mxu0 0.0
    %2939 = vmatpush1.msra.mxu0 %v2885
    %2940 = vmatprep.subr.mxu0 0.0
    %2941 = vmatpush1.msra.mxu0 %v2883
    %2942 = vmatprep.subr.mxu0 0.0
    %2943 = vmatpush1.msra.mxu0 %v2881
    %2944 = vmatprep.subr.mxu0 0.0
    %2945 = vmatpush1.msra.mxu0 %v2879
    %2946 = vmatprep.subr.mxu0 0.0
    %2947 = vmatpush1.msra.mxu0 %v2877
    %2948 = vmatprep.subr.mxu0 0.0
    %2949 = vmatpush1.msra.mxu0 %v2875
    %2950 = vmatprep.subr.mxu0 0.0
    %2951 = vmatpush1.msra.mxu0 %v2873
    %2952 = vmatprep.subr.mxu0 0.0
    %2953 = vmatpush2.msra.mxu0 0.0
    %2954 = vmatprep.subr.mxu0 0.0
    %2955 = vmatpush2.msra.mxu0 0.0
    %2956 = vmatprep.subr.mxu0 0.0
    %2957 = vmatpush2.msra.mxu0 0.0
    %2958 = vmatprep.subr.mxu0 0.0
    %2959 = vmatpush2.msra.mxu0 0.0
    %2960 = vmatprep.subr.mxu0 0.0
    %2961 = vmatpush2.msra.mxu0 0.0
    %2962 = vmatprep.subr.mxu0 0.0
    %2963 = vmatpush2.msra.mxu0 0.0
    %2964 = vmatprep.subr.mxu0 0.0
    %2965 = vmatpush2.msra.mxu0 0.0
    %2966 = vmatprep.subr.mxu0 0.0
    %2967 = vmatpush2.msra.mxu0 0.0
    %2968 = vmatprep.subr.mxu0 0.0
    %2969 = vmatpush2.msra.mxu0 0.0
    %2970 = vmatprep.subr.mxu0 0.0
    %2971 = vmatpush2.msra.mxu0 0.0
    %2972 = vmatprep.subr.mxu0 0.0
    %2973 = vmatpush2.msra.mxu0 0.0
    %2974 = vmatprep.subr.mxu0 0.0
    %2975 = vmatpush2.msra.mxu0 0.0
    %2976 = vmatprep.subr.mxu0 0.0
    %2977 = vmatpush2.msra.mxu0 0.0
    %2978 = vmatprep.subr.mxu0 0.0
    %2979 = vmatpush2.msra.mxu0 0.0
    %2980 = vmatprep.subr.mxu0 0.0
    %2981 = vmatpush2.msra.mxu0 0.0
    %2982 = vmatprep.subr.mxu0 0.0
    %2983 = vmatpush2.msra.mxu0 0.0
    %2984 = vmatprep.mubr.f32.mxu0 0.0
    %2985 = vmatmul.mubr.f32.gmra.mxu0 %v2840
    %v2986 = vpop.f32.mrf.mxu0
    %v2987 = vadd.f32 0.0, %v2986
    %v2988 = vpop.f32.mrf.mxu0
    %2989 = vmatprep.mubr.f32.mxu0 0.0
    %2990 = vmatmul.mubr.f32.gmra.mxu0 %v2841
    %v2991 = vpop.f32.mrf.mxu0
    %v2992 = vadd.f32 0.0, %v2991
    %v2993 = vpop.f32.mrf.mxu0
    %2994 = vmatprep.mubr.f32.mxu0 0.0
    %2995 = vmatmul.mubr.f32.gmra.mxu0 %v2842
    %v2996 = vpop.f32.mrf.mxu0
    %v2997 = vadd.f32 0.0, %v2996
    %v2998 = vpop.f32.mrf.mxu0
    %2999 = vmatprep.mubr.f32.mxu0 0.0
    %3000 = vmatmul.mubr.f32.gmra.mxu0 %v2843
    %v3001 = vpop.f32.mrf.mxu0
    %v3002 = vadd.f32 0.0, %v3001
    %v3003 = vpop.f32.mrf.mxu0
    %3004 = vmatprep.mubr.f32.mxu0 0.0
    %3005 = vmatmul.mubr.f32.gmra.mxu0 %v2844
    %v3006 = vpop.f32.mrf.mxu0
    %v3007 = vadd.f32 0.0, %v3006
    %v3008 = vpop.f32.mrf.mxu0
    %3009 = vmatprep.mubr.f32.mxu0 0.0
    %3010 = vmatmul.mubr.f32.gmra.mxu0 %v2845
    %v3011 = vpop.f32.mrf.mxu0
    %v3012 = vadd.f32 0.0, %v3011
    %v3013 = vpop.f32.mrf.mxu0
    %3014 = vmatprep.mubr.f32.mxu0 0.0
    %3015 = vmatmul.mubr.f32.gmra.mxu0 %v2846
    %v3016 = vpop.f32.mrf.mxu0
    %v3017 = vadd.f32 0.0, %v3016
    %v3018 = vpop.f32.mrf.mxu0
    %3019 = vmatprep.mubr.f32.mxu0 0.0
    %3020 = vmatmul.mubr.f32.gmra.mxu0 %v2847
    %v3021 = vpop.f32.mrf.mxu0
    %v3022 = vadd.f32 0.0, %v3021
    %v3023 = vpop.f32.mrf.mxu0
    %3024 = vmatprep.mubr.f32.mxu0 0.0
    %3025 = vmatmul.mubr.f32.gmra.mxu0 %v2848
    %v3026 = vpop.f32.mrf.mxu0
    %v3027 = vadd.f32 0.0, %v3026
    %v3028 = vpop.f32.mrf.mxu0
    %3029 = vmatprep.mubr.f32.mxu0 0.0
    %3030 = vmatmul.mubr.f32.gmra.mxu0 %v2849
    %v3031 = vpop.f32.mrf.mxu0
    %v3032 = vadd.f32 0.0, %v3031
    %v3033 = vpop.f32.mrf.mxu0
    %3034 = vmatprep.mubr.f32.mxu0 0.0
    %3035 = vmatmul.mubr.f32.gmra.mxu0 %v2850
    %v3036 = vpop.f32.mrf.mxu0
    %v3037 = vadd.f32 0.0, %v3036
    %v3038 = vpop.f32.mrf.mxu0
    %3039 = vmatprep.mubr.f32.mxu0 0.0
    %3040 = vmatmul.mubr.f32.gmra.mxu0 %v2851
    %v3041 = vpop.f32.mrf.mxu0
    %v3042 = vadd.f32 0.0, %v3041
    %v3043 = vpop.f32.mrf.mxu0
    %3044 = vmatprep.mubr.f32.mxu0 0.0
    %3045 = vmatmul.mubr.f32.gmra.mxu0 %v2852
    %v3046 = vpop.f32.mrf.mxu0
    %v3047 = vadd.f32 0.0, %v3046
    %v3048 = vpop.f32.mrf.mxu0
    %3049 = vmatprep.mubr.f32.mxu0 0.0
    %3050 = vmatmul.mubr.f32.gmra.mxu0 %v2853
    %v3051 = vpop.f32.mrf.mxu0
    %v3052 = vadd.f32 0.0, %v3051
    %v3053 = vpop.f32.mrf.mxu0
    %3054 = vmatprep.mubr.f32.mxu0 0.0
    %3055 = vmatmul.mubr.f32.gmra.mxu0 %v2854
    %v3056 = vpop.f32.mrf.mxu0
    %v3057 = vadd.f32 0.0, %v3056
    %v3058 = vpop.f32.mrf.mxu0
    %3059 = vmatprep.mubr.f32.mxu0 0.0
    %3060 = vmatmul.mubr.f32.gmra.mxu0 %v2855
    %v3061 = vpop.f32.mrf.mxu0
    %v3062 = vadd.f32 0.0, %v3061
    %v3063 = vpop.f32.mrf.mxu0
    %3064 = vdwg.mxu0
    %v3065 = vadd.f32 %v2406, %v2987
    %v3066 = vadd.f32 %v2407, %v2992
    %v3067 = vadd.f32 %v2408, %v2997
    %v3068 = vadd.f32 %v2409, %v3002
    %v3069 = vadd.f32 %v2410, %v3007
    %v3070 = vadd.f32 %v2411, %v3012
    %v3071 = vadd.f32 %v2412, %v3017
    %v3072 = vadd.f32 %v2413, %v3022
    %v3073 = vadd.f32 %v2414, %v3027
    %v3074 = vadd.f32 %v2415, %v3032
    %v3075 = vadd.f32 %v2416, %v3037
    %v3076 = vadd.f32 %v2417, %v3042
    %v3077 = vadd.f32 %v2418, %v3047
    %v3078 = vadd.f32 %v2419, %v3052
    %v3079 = vadd.f32 %v2420, %v3057
    %v3080 = vadd.f32 %v2421, %v3062
    %v3081 = vadd.f32 %v63, %v3065
    %v3082 = vadd.f32 %v64, %v3066
    %v3083 = vadd.f32 %v65, %v3067
    %v3084 = vadd.f32 %v66, %v3068
    %v3085 = vadd.f32 %v67, %v3069
    %v3086 = vadd.f32 %v68, %v3070
    %v3087 = vadd.f32 %v69, %v3071
    %v3088 = vadd.f32 %v70, %v3072
    %v3089 = vadd.f32 %v71, %v3073
    %v3090 = vadd.f32 %v72, %v3074
    %v3091 = vadd.f32 %v73, %v3075
    %v3092 = vadd.f32 %v74, %v3076
    %v3093 = vadd.f32 %v75, %v3077
    %v3094 = vadd.f32 %v76, %v3078
    %v3095 = vadd.f32 %v77, %v3079
    %v3096 = vadd.f32 %v78, %v3080
    %v3097 = vsel %vm83, %v3081, 0.0
    %3098 = vadd.xlane.f32.xlu0 %v3097
    %v3099 = vpop.xlane.xlu0 %3098
    %v3100 = vsel %vm83, %v3082, 0.0
    %3101 = vadd.xlane.f32.xlu0 %v3100
    %v3102 = vpop.xlane.xlu0 %3101
    %v3103 = vsel %vm83, %v3083, 0.0
    %3104 = vadd.xlane.f32.xlu0 %v3103
    %v3105 = vpop.xlane.xlu0 %3104
    %v3106 = vsel %vm83, %v3084, 0.0
    %3107 = vadd.xlane.f32.xlu0 %v3106
    %v3108 = vpop.xlane.xlu0 %3107
    %v3109 = vsel %vm83, %v3085, 0.0
    %3110 = vadd.xlane.f32.xlu0 %v3109
    %v3111 = vpop.xlane.xlu0 %3110
    %v3112 = vsel %vm83, %v3086, 0.0
    %3113 = vadd.xlane.f32.xlu0 %v3112
    %v3114 = vpop.xlane.xlu0 %3113
    %v3115 = vsel %vm83, %v3087, 0.0
    %3116 = vadd.xlane.f32.xlu0 %v3115
    %v3117 = vpop.xlane.xlu0 %3116
    %v3118 = vsel %vm83, %v3088, 0.0
    %3119 = vadd.xlane.f32.xlu0 %v3118
    %v3120 = vpop.xlane.xlu0 %3119
    %v3121 = vsel %vm83, %v3089, 0.0
    %3122 = vadd.xlane.f32.xlu0 %v3121
    %v3123 = vpop.xlane.xlu0 %3122
    %v3124 = vsel %vm83, %v3090, 0.0
    %3125 = vadd.xlane.f32.xlu0 %v3124
    %v3126 = vpop.xlane.xlu0 %3125
    %v3127 = vsel %vm83, %v3091, 0.0
    %3128 = vadd.xlane.f32.xlu0 %v3127
    %v3129 = vpop.xlane.xlu0 %3128
    %v3130 = vsel %vm83, %v3092, 0.0
    %3131 = vadd.xlane.f32.xlu0 %v3130
    %v3132 = vpop.xlane.xlu0 %3131
    %v3133 = vsel %vm83, %v3093, 0.0
    %3134 = vadd.xlane.f32.xlu0 %v3133
    %v3135 = vpop.xlane.xlu0 %3134
    %v3136 = vsel %vm83, %v3094, 0.0
    %3137 = vadd.xlane.f32.xlu0 %v3136
    %v3138 = vpop.xlane.xlu0 %3137
    %v3139 = vsel %vm83, %v3095, 0.0
    %3140 = vadd.xlane.f32.xlu0 %v3139
    %v3141 = vpop.xlane.xlu0 %3140
    %v3142 = vsel %vm83, %v3096, 0.0
    %3143 = vadd.xlane.f32.xlu0 %v3142
    %v3144 = vpop.xlane.xlu0 %3143
    %v3145 = vmul.f32 %v3099, %v132
    %v3146 = vmul.f32 %v3102, %v132
    %v3147 = vmul.f32 %v3105, %v132
    %v3148 = vmul.f32 %v3108, %v132
    %v3149 = vmul.f32 %v3111, %v132
    %v3150 = vmul.f32 %v3114, %v132
    %v3151 = vmul.f32 %v3117, %v132
    %v3152 = vmul.f32 %v3120, %v132
    %v3153 = vmul.f32 %v3123, %v132
    %v3154 = vmul.f32 %v3126, %v132
    %v3155 = vmul.f32 %v3129, %v132
    %v3156 = vmul.f32 %v3132, %v132
    %v3157 = vmul.f32 %v3135, %v132
    %v3158 = vmul.f32 %v3138, %v132
    %v3159 = vmul.f32 %v3141, %v132
    %v3160 = vmul.f32 %v3144, %v132
    %v3161 = vsub.f32 %v3081, %v3145
    %v3162 = vsub.f32 %v3082, %v3146
    %v3163 = vsub.f32 %v3083, %v3147
    %v3164 = vsub.f32 %v3084, %v3148
    %v3165 = vsub.f32 %v3085, %v3149
    %v3166 = vsub.f32 %v3086, %v3150
    %v3167 = vsub.f32 %v3087, %v3151
    %v3168 = vsub.f32 %v3088, %v3152
    %v3169 = vsub.f32 %v3089, %v3153
    %v3170 = vsub.f32 %v3090, %v3154
    %v3171 = vsub.f32 %v3091, %v3155
    %v3172 = vsub.f32 %v3092, %v3156
    %v3173 = vsub.f32 %v3093, %v3157
    %v3174 = vsub.f32 %v3094, %v3158
    %v3175 = vsub.f32 %v3095, %v3159
    %v3176 = vsub.f32 %v3096, %v3160
    %v3177 = vmul.f32 %v3161, %v3161
    %v3178 = vmul.f32 %v3162, %v3162
    %v3179 = vmul.f32 %v3163, %v3163
    %v3180 = vmul.f32 %v3164, %v3164
    %v3181 = vmul.f32 %v3165, %v3165
    %v3182 = vmul.f32 %v3166, %v3166
    %v3183 = vmul.f32 %v3167, %v3167
    %v3184 = vmul.f32 %v3168, %v3168
    %v3185 = vmul.f32 %v3169, %v3169
    %v3186 = vmul.f32 %v3170, %v3170
    %v3187 = vmul.f32 %v3171, %v3171
    %v3188 = vmul.f32 %v3172, %v3172
    %v3189 = vmul.f32 %v3173, %v3173
    %v3190 = vmul.f32 %v3174, %v3174
    %v3191 = vmul.f32 %v3175, %v3175
    %v3192 = vmul.f32 %v3176, %v3176
    %v3193 = vsel %vm83, %v3177, 0.0
    %3194 = vadd.xlane.f32.xlu0 %v3193
    %v3195 = vpop.xlane.xlu0 %3194
    %v3196 = vsel %vm83, %v3178, 0.0
    %3197 = vadd.xlane.f32.xlu0 %v3196
    %v3198 = vpop.xlane.xlu0 %3197
    %v3199 = vsel %vm83, %v3179, 0.0
    %3200 = vadd.xlane.f32.xlu0 %v3199
    %v3201 = vpop.xlane.xlu0 %3200
    %v3202 = vsel %vm83, %v3180, 0.0
    %3203 = vadd.xlane.f32.xlu0 %v3202
    %v3204 = vpop.xlane.xlu0 %3203
    %v3205 = vsel %vm83, %v3181, 0.0
    %3206 = vadd.xlane.f32.xlu0 %v3205
    %v3207 = vpop.xlane.xlu0 %3206
    %v3208 = vsel %vm83, %v3182, 0.0
    %3209 = vadd.xlane.f32.xlu0 %v3208
    %v3210 = vpop.xlane.xlu0 %3209
    %v3211 = vsel %vm83, %v3183, 0.0
    %3212 = vadd.xlane.f32.xlu0 %v3211
    %v3213 = vpop.xlane.xlu0 %3212
    %v3214 = vsel %vm83, %v3184, 0.0
    %3215 = vadd.xlane.f32.xlu0 %v3214
    %v3216 = vpop.xlane.xlu0 %3215
    %v3217 = vsel %vm83, %v3185, 0.0
    %3218 = vadd.xlane.f32.xlu0 %v3217
    %v3219 = vpop.xlane.xlu0 %3218
    %v3220 = vsel %vm83, %v3186, 0.0
    %3221 = vadd.xlane.f32.xlu0 %v3220
    %v3222 = vpop.xlane.xlu0 %3221
    %v3223 = vsel %vm83, %v3187, 0.0
    %3224 = vadd.xlane.f32.xlu0 %v3223
    %v3225 = vpop.xlane.xlu0 %3224
    %v3226 = vsel %vm83, %v3188, 0.0
    %3227 = vadd.xlane.f32.xlu0 %v3226
    %v3228 = vpop.xlane.xlu0 %3227
    %v3229 = vsel %vm83, %v3189, 0.0
    %3230 = vadd.xlane.f32.xlu0 %v3229
    %v3231 = vpop.xlane.xlu0 %3230
    %v3232 = vsel %vm83, %v3190, 0.0
    %3233 = vadd.xlane.f32.xlu0 %v3232
    %v3234 = vpop.xlane.xlu0 %3233
    %v3235 = vsel %vm83, %v3191, 0.0
    %3236 = vadd.xlane.f32.xlu0 %v3235
    %v3237 = vpop.xlane.xlu0 %3236
    %v3238 = vsel %vm83, %v3192, 0.0
    %3239 = vadd.xlane.f32.xlu0 %v3238
    %v3240 = vpop.xlane.xlu0 %3239
    %v3241 = vmul.f32 %v3195, %v132
    %v3242 = vmul.f32 %v3198, %v132
    %v3243 = vmul.f32 %v3201, %v132
    %v3244 = vmul.f32 %v3204, %v132
    %v3245 = vmul.f32 %v3207, %v132
    %v3246 = vmul.f32 %v3210, %v132
    %v3247 = vmul.f32 %v3213, %v132
    %v3248 = vmul.f32 %v3216, %v132
    %v3249 = vmul.f32 %v3219, %v132
    %v3250 = vmul.f32 %v3222, %v132
    %v3251 = vmul.f32 %v3225, %v132
    %v3252 = vmul.f32 %v3228, %v132
    %v3253 = vmul.f32 %v3231, %v132
    %v3254 = vmul.f32 %v3234, %v132
    %v3255 = vmul.f32 %v3237, %v132
    %v3256 = vmul.f32 %v3240, %v132
    %v3257 = vadd.f32 %v3241, 1e-05
    %v3258 = vadd.f32 %v3242, 1e-05
    %v3259 = vadd.f32 %v3243, 1e-05
    %v3260 = vadd.f32 %v3244, 1e-05
    %v3261 = vadd.f32 %v3245, 1e-05
    %v3262 = vadd.f32 %v3246, 1e-05
    %v3263 = vadd.f32 %v3247, 1e-05
    %v3264 = vadd.f32 %v3248, 1e-05
    %v3265 = vadd.f32 %v3249, 1e-05
    %v3266 = vadd.f32 %v3250, 1e-05
    %v3267 = vadd.f32 %v3251, 1e-05
    %v3268 = vadd.f32 %v3252, 1e-05
    %v3269 = vadd.f32 %v3253, 1e-05
    %v3270 = vadd.f32 %v3254, 1e-05
    %v3271 = vadd.f32 %v3255, 1e-05
    %v3272 = vadd.f32 %v3256, 1e-05
    %v3273 = vrsqrt.pop %v3257
    %v3274 = vrsqrt.pop %v3258
    %v3275 = vrsqrt.pop %v3259
    %v3276 = vrsqrt.pop %v3260
    %v3277 = vrsqrt.pop %v3261
    %v3278 = vrsqrt.pop %v3262
    %v3279 = vrsqrt.pop %v3263
    %v3280 = vrsqrt.pop %v3264
    %v3281 = vrsqrt.pop %v3265
    %v3282 = vrsqrt.pop %v3266
    %v3283 = vrsqrt.pop %v3267
    %v3284 = vrsqrt.pop %v3268
    %v3285 = vrsqrt.pop %v3269
    %v3286 = vrsqrt.pop %v3270
    %v3287 = vrsqrt.pop %v3271
    %v3288 = vrsqrt.pop %v3272
    %v3289 = vmul.f32 %v3161, %v3273
    %v3290 = vmul.f32 %v3162, %v3274
    %v3291 = vmul.f32 %v3163, %v3275
    %v3292 = vmul.f32 %v3164, %v3276
    %v3293 = vmul.f32 %v3165, %v3277
    %v3294 = vmul.f32 %v3166, %v3278
    %v3295 = vmul.f32 %v3167, %v3279
    %v3296 = vmul.f32 %v3168, %v3280
    %v3297 = vmul.f32 %v3169, %v3281
    %v3298 = vmul.f32 %v3170, %v3282
    %v3299 = vmul.f32 %v3171, %v3283
    %v3300 = vmul.f32 %v3172, %v3284
    %v3301 = vmul.f32 %v3173, %v3285
    %v3302 = vmul.f32 %v3174, %v3286
    %v3303 = vmul.f32 %v3175, %v3287
    %v3304 = vmul.f32 %v3176, %v3288
    %v3305 = vld [vmem:[%s3] sm:$0xff]
    %v3306 = vld [vmem:[%s3 + $0x8] sm:$0xff]
    %v3307 = vld [vmem:[%s3 + $0x10] sm:$0xff]
    %v3308 = vld [vmem:[%s3 + $0x18] sm:$0xff]
    %v3309 = vlaneseq
    %v3310 = vshrl.u32 %v3309, 7
    %v3311 = vsub.s32 0, %v3310
    %v3312 = vrot.slane %v80, %v3311
    %v3314 = vsel %vm83, %v3289, 0
    %v3317 = vsel %vm83, %v3290, 0
    %v3320 = vsel %vm83, %v3291, 0
    %v3323 = vsel %vm83, %v3292, 0
    %v3326 = vsel %vm83, %v3293, 0
    %v3329 = vsel %vm83, %v3294, 0
    %v3332 = vsel %vm83, %v3295, 0
    %v3335 = vsel %vm83, %v3296, 0
    %v3338 = vsel %vm83, %v3297, 0
    %v3341 = vsel %vm83, %v3298, 0
    %v3344 = vsel %vm83, %v3299, 0
    %v3347 = vsel %vm83, %v3300, 0
    %v3350 = vsel %vm83, %v3301, 0
    %v3353 = vsel %vm83, %v3302, 0
    %v3356 = vsel %vm83, %v3303, 0
    %v3359 = vsel %vm83, %v3304, 0
    %3361 = vmatprep.subr.mxu0 0.0
    %3362 = vmatpush1.msra.mxu0 0.0
    %3363 = vmatprep.subr.mxu0 0.0
    %3364 = vmatpush1.msra.mxu0 0.0
    %3365 = vmatprep.subr.mxu0 0.0
    %3366 = vmatpush1.msra.mxu0 0.0
    %3367 = vmatprep.subr.mxu0 0.0
    %3368 = vmatpush1.msra.mxu0 0.0
    %3369 = vmatprep.subr.mxu0 0.0
    %3370 = vmatpush1.msra.mxu0 0.0
    %3371 = vmatprep.subr.mxu0 0.0
    %3372 = vmatpush1.msra.mxu0 0.0
    %3373 = vmatprep.subr.mxu0 0.0
    %3374 = vmatpush1.msra.mxu0 0.0
    %3375 = vmatprep.subr.mxu0 0.0
    %3376 = vmatpush1.msra.mxu0 0.0
    %3377 = vmatprep.subr.mxu0 0.0
    %3378 = vmatpush1.msra.mxu0 0.0
    %3379 = vmatprep.subr.mxu0 0.0
    %3380 = vmatpush1.msra.mxu0 0.0
    %3381 = vmatprep.subr.mxu0 0.0
    %3382 = vmatpush1.msra.mxu0 0.0
    %3383 = vmatprep.subr.mxu0 0.0
    %3384 = vmatpush1.msra.mxu0 0.0
    %3385 = vmatprep.subr.mxu0 0.0
    %3386 = vmatpush1.msra.mxu0 %v3308
    %3387 = vmatprep.subr.mxu0 0.0
    %3388 = vmatpush1.msra.mxu0 %v3307
    %3389 = vmatprep.subr.mxu0 0.0
    %3390 = vmatpush1.msra.mxu0 %v3306
    %3391 = vmatprep.subr.mxu0 0.0
    %3392 = vmatpush1.msra.mxu0 %v3305
    %3393 = vmatprep.subr.mxu0 0.0
    %3394 = vmatpush2.msra.mxu0 0.0
    %3395 = vmatprep.subr.mxu0 0.0
    %3396 = vmatpush2.msra.mxu0 0.0
    %3397 = vmatprep.subr.mxu0 0.0
    %3398 = vmatpush2.msra.mxu0 0.0
    %3399 = vmatprep.subr.mxu0 0.0
    %3400 = vmatpush2.msra.mxu0 0.0
    %3401 = vmatprep.subr.mxu0 0.0
    %3402 = vmatpush2.msra.mxu0 0.0
    %3403 = vmatprep.subr.mxu0 0.0
    %3404 = vmatpush2.msra.mxu0 0.0
    %3405 = vmatprep.subr.mxu0 0.0
    %3406 = vmatpush2.msra.mxu0 0.0
    %3407 = vmatprep.subr.mxu0 0.0
    %3408 = vmatpush2.msra.mxu0 0.0
    %3409 = vmatprep.subr.mxu0 0.0
    %3410 = vmatpush2.msra.mxu0 0.0
    %3411 = vmatprep.subr.mxu0 0.0
    %3412 = vmatpush2.msra.mxu0 0.0
    %3413 = vmatprep.subr.mxu0 0.0
    %3414 = vmatpush2.msra.mxu0 0.0
    %3415 = vmatprep.subr.mxu0 0.0
    %3416 = vmatpush2.msra.mxu0 0.0
    %3417 = vmatprep.subr.mxu0 0.0
    %3418 = vmatpush2.msra.mxu0 0.0
    %3419 = vmatprep.subr.mxu0 0.0
    %3420 = vmatpush2.msra.mxu0 0.0
    %3421 = vmatprep.subr.mxu0 0.0
    %3422 = vmatpush2.msra.mxu0 0.0
    %3423 = vmatprep.subr.mxu0 0.0
    %3424 = vmatpush2.msra.mxu0 0.0
    %3425 = vmatprep.mubr.f32.mxu0 0.0
    %3426 = vmatmul.mubr.f32.gmra.mxu0 %v3314
    %v3427 = vpop.f32.mrf.mxu0
    %v3428 = vadd.f32 %v3312, %v3427
    %v3429 = vpop.f32.mrf.mxu0
    %3430 = vmatprep.mubr.f32.mxu0 0.0
    %3431 = vmatmul.mubr.f32.gmra.mxu0 %v3317
    %v3432 = vpop.f32.mrf.mxu0
    %v3433 = vadd.f32 %v3312, %v3432
    %v3434 = vpop.f32.mrf.mxu0
    %3435 = vmatprep.mubr.f32.mxu0 0.0
    %3436 = vmatmul.mubr.f32.gmra.mxu0 %v3320
    %v3437 = vpop.f32.mrf.mxu0
    %v3438 = vadd.f32 %v3312, %v3437
    %v3439 = vpop.f32.mrf.mxu0
    %3440 = vmatprep.mubr.f32.mxu0 0.0
    %3441 = vmatmul.mubr.f32.gmra.mxu0 %v3323
    %v3442 = vpop.f32.mrf.mxu0
    %v3443 = vadd.f32 %v3312, %v3442
    %v3444 = vpop.f32.mrf.mxu0
    %3445 = vmatprep.mubr.f32.mxu0 0.0
    %3446 = vmatmul.mubr.f32.gmra.mxu0 %v3326
    %v3447 = vpop.f32.mrf.mxu0
    %v3448 = vadd.f32 %v3312, %v3447
    %v3449 = vpop.f32.mrf.mxu0
    %3450 = vmatprep.mubr.f32.mxu0 0.0
    %3451 = vmatmul.mubr.f32.gmra.mxu0 %v3329
    %v3452 = vpop.f32.mrf.mxu0
    %v3453 = vadd.f32 %v3312, %v3452
    %v3454 = vpop.f32.mrf.mxu0
    %3455 = vmatprep.mubr.f32.mxu0 0.0
    %3456 = vmatmul.mubr.f32.gmra.mxu0 %v3332
    %v3457 = vpop.f32.mrf.mxu0
    %v3458 = vadd.f32 %v3312, %v3457
    %v3459 = vpop.f32.mrf.mxu0
    %3460 = vmatprep.mubr.f32.mxu0 0.0
    %3461 = vmatmul.mubr.f32.gmra.mxu0 %v3335
    %v3462 = vpop.f32.mrf.mxu0
    %v3463 = vadd.f32 %v3312, %v3462
    %v3464 = vpop.f32.mrf.mxu0
    %3465 = vmatprep.mubr.f32.mxu0 0.0
    %3466 = vmatmul.mubr.f32.gmra.mxu0 %v3338
    %v3467 = vpop.f32.mrf.mxu0
    %v3468 = vadd.f32 %v3312, %v3467
    %v3469 = vpop.f32.mrf.mxu0
    %3470 = vmatprep.mubr.f32.mxu0 0.0
    %3471 = vmatmul.mubr.f32.gmra.mxu0 %v3341
    %v3472 = vpop.f32.mrf.mxu0
    %v3473 = vadd.f32 %v3312, %v3472
    %v3474 = vpop.f32.mrf.mxu0
    %3475 = vmatprep.mubr.f32.mxu0 0.0
    %3476 = vmatmul.mubr.f32.gmra.mxu0 %v3344
    %v3477 = vpop.f32.mrf.mxu0
    %v3478 = vadd.f32 %v3312, %v3477
    %v3479 = vpop.f32.mrf.mxu0
    %3480 = vmatprep.mubr.f32.mxu0 0.0
    %3481 = vmatmul.mubr.f32.gmra.mxu0 %v3347
    %v3482 = vpop.f32.mrf.mxu0
    %v3483 = vadd.f32 %v3312, %v3482
    %v3484 = vpop.f32.mrf.mxu0
    %3485 = vmatprep.mubr.f32.mxu0 0.0
    %3486 = vmatmul.mubr.f32.gmra.mxu0 %v3350
    %v3487 = vpop.f32.mrf.mxu0
    %v3488 = vadd.f32 %v3312, %v3487
    %v3489 = vpop.f32.mrf.mxu0
    %3490 = vmatprep.mubr.f32.mxu0 0.0
    %3491 = vmatmul.mubr.f32.gmra.mxu0 %v3353
    %v3492 = vpop.f32.mrf.mxu0
    %v3493 = vadd.f32 %v3312, %v3492
    %v3494 = vpop.f32.mrf.mxu0
    %3495 = vmatprep.mubr.f32.mxu0 0.0
    %3496 = vmatmul.mubr.f32.gmra.mxu0 %v3356
    %v3497 = vpop.f32.mrf.mxu0
    %v3498 = vadd.f32 %v3312, %v3497
    %v3499 = vpop.f32.mrf.mxu0
    %3500 = vmatprep.mubr.f32.mxu0 0.0
    %3501 = vmatmul.mubr.f32.gmra.mxu0 %v3359
    %v3502 = vpop.f32.mrf.mxu0
    %v3503 = vadd.f32 %v3312, %v3502
    %v3504 = vpop.f32.mrf.mxu0
    %3505 = vdwg.mxu0
    %v3506 = vmul.f32 %v3428, 0.5
    %v3507 = vmul.f32 %v3433, 0.5
    %v3508 = vmul.f32 %v3438, 0.5
    %v3509 = vmul.f32 %v3443, 0.5
    %v3510 = vmul.f32 %v3448, 0.5
    %v3511 = vmul.f32 %v3453, 0.5
    %v3512 = vmul.f32 %v3458, 0.5
    %v3513 = vmul.f32 %v3463, 0.5
    %v3514 = vmul.f32 %v3468, 0.5
    %v3515 = vmul.f32 %v3473, 0.5
    %v3516 = vmul.f32 %v3478, 0.5
    %v3517 = vmul.f32 %v3483, 0.5
    %v3518 = vmul.f32 %v3488, 0.5
    %v3519 = vmul.f32 %v3493, 0.5
    %v3520 = vmul.f32 %v3498, 0.5
    %v3521 = vmul.f32 %v3503, 0.5
    %v3522 = vmul.f32 %v3428, 0.70710677
    %v3523 = vmul.f32 %v3433, 0.70710677
    %v3524 = vmul.f32 %v3438, 0.70710677
    %v3525 = vmul.f32 %v3443, 0.70710677
    %v3526 = vmul.f32 %v3448, 0.70710677
    %v3527 = vmul.f32 %v3453, 0.70710677
    %v3528 = vmul.f32 %v3458, 0.70710677
    %v3529 = vmul.f32 %v3463, 0.70710677
    %v3530 = vmul.f32 %v3468, 0.70710677
    %v3531 = vmul.f32 %v3473, 0.70710677
    %v3532 = vmul.f32 %v3478, 0.70710677
    %v3533 = vmul.f32 %v3483, 0.70710677
    %v3534 = vmul.f32 %v3488, 0.70710677
    %v3535 = vmul.f32 %v3493, 0.70710677
    %v3536 = vmul.f32 %v3498, 0.70710677
    %v3537 = vmul.f32 %v3503, 0.70710677
    %v3538 = verf.f32.pop %v3522
    %v3539 = verf.f32.pop %v3523
    %v3540 = verf.f32.pop %v3524
    %v3541 = verf.f32.pop %v3525
    %v3542 = verf.f32.pop %v3526
    %v3543 = verf.f32.pop %v3527
    %v3544 = verf.f32.pop %v3528
    %v3545 = verf.f32.pop %v3529
    %v3546 = verf.f32.pop %v3530
    %v3547 = verf.f32.pop %v3531
    %v3548 = verf.f32.pop %v3532
    %v3549 = verf.f32.pop %v3533
    %v3550 = verf.f32.pop %v3534
    %v3551 = verf.f32.pop %v3535
    %v3552 = verf.f32.pop %v3536
    %v3553 = verf.f32.pop %v3537
    %v3554 = vadd.f32 %v3538, 1.0
    %v3555 = vadd.f32 %v3539, 1.0
    %v3556 = vadd.f32 %v3540, 1.0
    %v3557 = vadd.f32 %v3541, 1.0
    %v3558 = vadd.f32 %v3542, 1.0
    %v3559 = vadd.f32 %v3543, 1.0
    %v3560 = vadd.f32 %v3544, 1.0
    %v3561 = vadd.f32 %v3545, 1.0
    %v3562 = vadd.f32 %v3546, 1.0
    %v3563 = vadd.f32 %v3547, 1.0
    %v3564 = vadd.f32 %v3548, 1.0
    %v3565 = vadd.f32 %v3549, 1.0
    %v3566 = vadd.f32 %v3550, 1.0
    %v3567 = vadd.f32 %v3551, 1.0
    %v3568 = vadd.f32 %v3552, 1.0
    %v3569 = vadd.f32 %v3553, 1.0
    %v3570 = vmul.f32 %v3506, %v3554
    %v3571 = vmul.f32 %v3507, %v3555
    %v3572 = vmul.f32 %v3508, %v3556
    %v3573 = vmul.f32 %v3509, %v3557
    %v3574 = vmul.f32 %v3510, %v3558
    %v3575 = vmul.f32 %v3511, %v3559
    %v3576 = vmul.f32 %v3512, %v3560
    %v3577 = vmul.f32 %v3513, %v3561
    %v3578 = vmul.f32 %v3514, %v3562
    %v3579 = vmul.f32 %v3515, %v3563
    %v3580 = vmul.f32 %v3516, %v3564
    %v3581 = vmul.f32 %v3517, %v3565
    %v3582 = vmul.f32 %v3518, %v3566
    %v3583 = vmul.f32 %v3519, %v3567
    %v3584 = vmul.f32 %v3520, %v3568
    %v3585 = vmul.f32 %v3521, %v3569
    %v3586 = vld [vmem:[%s4] sm:$0xff]
    %v3587 = vld [vmem:[%s4 + $0x8] sm:$0xff]
    %v3588 = vld [vmem:[%s4 + $0x10] sm:$0xff]
    %v3589 = vld [vmem:[%s4 + $0x18] sm:$0xff]
    %v3590 = vld [vmem:[%s4 + $0x20] sm:$0xff]
    %v3591 = vld [vmem:[%s4 + $0x28] sm:$0xff]
    %v3592 = vld [vmem:[%s4 + $0x30] sm:$0xff]
    %v3593 = vld [vmem:[%s4 + $0x38] sm:$0xff]
    %v3594 = vld [vmem:[%s4 + $0x40] sm:$0xff]
    %v3595 = vld [vmem:[%s4 + $0x48] sm:$0xff]
    %v3596 = vld [vmem:[%s4 + $0x50] sm:$0xff]
    %v3597 = vld [vmem:[%s4 + $0x58] sm:$0xff]
    %v3598 = vld [vmem:[%s4 + $0x60] sm:$0xff]
    %v3599 = vld [vmem:[%s4 + $0x68] sm:$0xff]
    %v3600 = vld [vmem:[%s4 + $0x70] sm:$0xff]
    %v3601 = vld [vmem:[%s4 + $0x78] sm:$0xff]
    %v3602 = vlaneseq
    %v3603 = vshrl.u32 %v3602, 7
    %v3604 = vsub.s32 0, %v3603
    %v3605 = vrot.slane %v81, %v3604
    %3606 = vmatprep.subr.mxu0 0.0
    %3607 = vmatpush1.msra.mxu0 %v3601
    %3608 = vmatprep.subr.mxu0 0.0
    %3609 = vmatpush1.msra.mxu0 %v3600
    %3610 = vmatprep.subr.mxu0 0.0
    %3611 = vmatpush1.msra.mxu0 %v3599
    %3612 = vmatprep.subr.mxu0 0.0
    %3613 = vmatpush1.msra.mxu0 %v3598
    %3614 = vmatprep.subr.mxu0 0.0
    %3615 = vmatpush1.msra.mxu0 %v3597
    %3616 = vmatprep.subr.mxu0 0.0
    %3617 = vmatpush1.msra.mxu0 %v3596
    %3618 = vmatprep.subr.mxu0 0.0
    %3619 = vmatpush1.msra.mxu0 %v3595
    %3620 = vmatprep.subr.mxu0 0.0
    %3621 = vmatpush1.msra.mxu0 %v3594
    %3622 = vmatprep.subr.mxu0 0.0
    %3623 = vmatpush1.msra.mxu0 %v3593
    %3624 = vmatprep.subr.mxu0 0.0
    %3625 = vmatpush1.msra.mxu0 %v3592
    %3626 = vmatprep.subr.mxu0 0.0
    %3627 = vmatpush1.msra.mxu0 %v3591
    %3628 = vmatprep.subr.mxu0 0.0
    %3629 = vmatpush1.msra.mxu0 %v3590
    %3630 = vmatprep.subr.mxu0 0.0
    %3631 = vmatpush1.msra.mxu0 %v3589
    %3632 = vmatprep.subr.mxu0 0.0
    %3633 = vmatpush1.msra.mxu0 %v3588
    %3634 = vmatprep.subr.mxu0 0.0
    %3635 = vmatpush1.msra.mxu0 %v3587
    %3636 = vmatprep.subr.mxu0 0.0
    %3637 = vmatpush1.msra.mxu0 %v3586
    %3638 = vmatprep.subr.mxu0 0.0
    %3639 = vmatpush2.msra.mxu0 0.0
    %3640 = vmatprep.subr.mxu0 0.0
    %3641 = vmatpush2.msra.mxu0 0.0
    %3642 = vmatprep.subr.mxu0 0.0
    %3643 = vmatpush2.msra.mxu0 0.0
    %3644 = vmatprep.subr.mxu0 0.0
    %3645 = vmatpush2.msra.mxu0 0.0
    %3646 = vmatprep.subr.mxu0 0.0
    %3647 = vmatpush2.msra.mxu0 0.0
    %3648 = vmatprep.subr.mxu0 0.0
    %3649 = vmatpush2.msra.mxu0 0.0
    %3650 = vmatprep.subr.mxu0 0.0
    %3651 = vmatpush2.msra.mxu0 0.0
    %3652 = vmatprep.subr.mxu0 0.0
    %3653 = vmatpush2.msra.mxu0 0.0
    %3654 = vmatprep.subr.mxu0 0.0
    %3655 = vmatpush2.msra.mxu0 0.0
    %3656 = vmatprep.subr.mxu0 0.0
    %3657 = vmatpush2.msra.mxu0 0.0
    %3658 = vmatprep.subr.mxu0 0.0
    %3659 = vmatpush2.msra.mxu0 0.0
    %3660 = vmatprep.subr.mxu0 0.0
    %3661 = vmatpush2.msra.mxu0 0.0
    %3662 = vmatprep.subr.mxu0 0.0
    %3663 = vmatpush2.msra.mxu0 0.0
    %3664 = vmatprep.subr.mxu0 0.0
    %3665 = vmatpush2.msra.mxu0 0.0
    %3666 = vmatprep.subr.mxu0 0.0
    %3667 = vmatpush2.msra.mxu0 0.0
    %3668 = vmatprep.subr.mxu0 0.0
    %3669 = vmatpush2.msra.mxu0 0.0
    %3670 = vmatprep.mubr.f32.mxu0 0.0
    %3671 = vmatmul.mubr.f32.gmra.mxu0 %v3570
    %v3672 = vpop.f32.mrf.mxu0
    %v3673 = vadd.f32 %v3605, %v3672
    %v3674 = vpop.f32.mrf.mxu0
    %3675 = vmatprep.mubr.f32.mxu0 0.0
    %3676 = vmatmul.mubr.f32.gmra.mxu0 %v3571
    %v3677 = vpop.f32.mrf.mxu0
    %v3678 = vadd.f32 %v3605, %v3677
    %v3679 = vpop.f32.mrf.mxu0
    %3680 = vmatprep.mubr.f32.mxu0 0.0
    %3681 = vmatmul.mubr.f32.gmra.mxu0 %v3572
    %v3682 = vpop.f32.mrf.mxu0
    %v3683 = vadd.f32 %v3605, %v3682
    %v3684 = vpop.f32.mrf.mxu0
    %3685 = vmatprep.mubr.f32.mxu0 0.0
    %3686 = vmatmul.mubr.f32.gmra.mxu0 %v3573
    %v3687 = vpop.f32.mrf.mxu0
    %v3688 = vadd.f32 %v3605, %v3687
    %v3689 = vpop.f32.mrf.mxu0
    %3690 = vmatprep.mubr.f32.mxu0 0.0
    %3691 = vmatmul.mubr.f32.gmra.mxu0 %v3574
    %v3692 = vpop.f32.mrf.mxu0
    %v3693 = vadd.f32 %v3605, %v3692
    %v3694 = vpop.f32.mrf.mxu0
    %3695 = vmatprep.mubr.f32.mxu0 0.0
    %3696 = vmatmul.mubr.f32.gmra.mxu0 %v3575
    %v3697 = vpop.f32.mrf.mxu0
    %v3698 = vadd.f32 %v3605, %v3697
    %v3699 = vpop.f32.mrf.mxu0
    %3700 = vmatprep.mubr.f32.mxu0 0.0
    %3701 = vmatmul.mubr.f32.gmra.mxu0 %v3576
    %v3702 = vpop.f32.mrf.mxu0
    %v3703 = vadd.f32 %v3605, %v3702
    %v3704 = vpop.f32.mrf.mxu0
    %3705 = vmatprep.mubr.f32.mxu0 0.0
    %3706 = vmatmul.mubr.f32.gmra.mxu0 %v3577
    %v3707 = vpop.f32.mrf.mxu0
    %v3708 = vadd.f32 %v3605, %v3707
    %v3709 = vpop.f32.mrf.mxu0
    %3710 = vmatprep.mubr.f32.mxu0 0.0
    %3711 = vmatmul.mubr.f32.gmra.mxu0 %v3578
    %v3712 = vpop.f32.mrf.mxu0
    %v3713 = vadd.f32 %v3605, %v3712
    %v3714 = vpop.f32.mrf.mxu0
    %3715 = vmatprep.mubr.f32.mxu0 0.0
    %3716 = vmatmul.mubr.f32.gmra.mxu0 %v3579
    %v3717 = vpop.f32.mrf.mxu0
    %v3718 = vadd.f32 %v3605, %v3717
    %v3719 = vpop.f32.mrf.mxu0
    %3720 = vmatprep.mubr.f32.mxu0 0.0
    %3721 = vmatmul.mubr.f32.gmra.mxu0 %v3580
    %v3722 = vpop.f32.mrf.mxu0
    %v3723 = vadd.f32 %v3605, %v3722
    %v3724 = vpop.f32.mrf.mxu0
    %3725 = vmatprep.mubr.f32.mxu0 0.0
    %3726 = vmatmul.mubr.f32.gmra.mxu0 %v3581
    %v3727 = vpop.f32.mrf.mxu0
    %v3728 = vadd.f32 %v3605, %v3727
    %v3729 = vpop.f32.mrf.mxu0
    %3730 = vmatprep.mubr.f32.mxu0 0.0
    %3731 = vmatmul.mubr.f32.gmra.mxu0 %v3582
    %v3732 = vpop.f32.mrf.mxu0
    %v3733 = vadd.f32 %v3605, %v3732
    %v3734 = vpop.f32.mrf.mxu0
    %3735 = vmatprep.mubr.f32.mxu0 0.0
    %3736 = vmatmul.mubr.f32.gmra.mxu0 %v3583
    %v3737 = vpop.f32.mrf.mxu0
    %v3738 = vadd.f32 %v3605, %v3737
    %v3739 = vpop.f32.mrf.mxu0
    %3740 = vmatprep.mubr.f32.mxu0 0.0
    %3741 = vmatmul.mubr.f32.gmra.mxu0 %v3584
    %v3742 = vpop.f32.mrf.mxu0
    %v3743 = vadd.f32 %v3605, %v3742
    %v3744 = vpop.f32.mrf.mxu0
    %3745 = vmatprep.mubr.f32.mxu0 0.0
    %3746 = vmatmul.mubr.f32.gmra.mxu0 %v3585
    %v3747 = vpop.f32.mrf.mxu0
    %v3748 = vadd.f32 %v3605, %v3747
    %v3749 = vpop.f32.mrf.mxu0
    %3750 = vdwg.mxu0
    %v3751 = vadd.f32 %v3081, %v3673
    %v3752 = vadd.f32 %v3082, %v3678
    %v3753 = vadd.f32 %v3083, %v3683
    %v3754 = vadd.f32 %v3084, %v3688
    %v3755 = vadd.f32 %v3085, %v3693
    %v3756 = vadd.f32 %v3086, %v3698
    %v3757 = vadd.f32 %v3087, %v3703
    %v3758 = vadd.f32 %v3088, %v3708
    %v3759 = vadd.f32 %v3089, %v3713
    %v3760 = vadd.f32 %v3090, %v3718
    %v3761 = vadd.f32 %v3091, %v3723
    %v3762 = vadd.f32 %v3092, %v3728
    %v3763 = vadd.f32 %v3093, %v3733
    %v3764 = vadd.f32 %v3094, %v3738
    %v3765 = vadd.f32 %v3095, %v3743
    %v3766 = vadd.f32 %v3096, %v3748
    %3767 = vst.msk [vmem:[#allocation8] sm:$0xff] %vm83, %v3751
    %3768 = vst.msk [vmem:[#allocation8 + $0x8] sm:$0xff] %vm83, %v3752
    %3769 = vst.msk [vmem:[#allocation8 + $0x10] sm:$0xff] %vm83, %v3753
    %3770 = vst.msk [vmem:[#allocation8 + $0x18] sm:$0xff] %vm83, %v3754
    %3771 = vst.msk [vmem:[#allocation8 + $0x20] sm:$0xff] %vm83, %v3755
    %3772 = vst.msk [vmem:[#allocation8 + $0x28] sm:$0xff] %vm83, %v3756
    %3773 = vst.msk [vmem:[#allocation8 + $0x30] sm:$0xff] %vm83, %v3757
    %3774 = vst.msk [vmem:[#allocation8 + $0x38] sm:$0xff] %vm83, %v3758
    %3775 = vst.msk [vmem:[#allocation8 + $0x40] sm:$0xff] %vm83, %v3759
    %3776 = vst.msk [vmem:[#allocation8 + $0x48] sm:$0xff] %vm83, %v3760
    %3777 = vst.msk [vmem:[#allocation8 + $0x50] sm:$0xff] %vm83, %v3761
    %3778 = vst.msk [vmem:[#allocation8 + $0x58] sm:$0xff] %vm83, %v3762
    %3779 = vst.msk [vmem:[#allocation8 + $0x60] sm:$0xff] %vm83, %v3763
    %3780 = vst.msk [vmem:[#allocation8 + $0x68] sm:$0xff] %vm83, %v3764
    %3781 = vst.msk [vmem:[#allocation8 + $0x70] sm:$0xff] %vm83, %v3765
    %3782 = vst.msk [vmem:[#allocation8 + $0x78] sm:$0xff] %vm83, %v3766
    // Predicated region
    $region38: #{swin_block_forward.1} parent=1 // pred_check
      _
    $region39: #{swin_block_forward.1} parent=1 // pred_check_branch
      %3784 = sbr.rel (0) target = $region41
    $region40: #{swin_block_forward.1} parent=1 // pred_region
      %s3786 = ssub.s32 2048, 2048
      %3787 = vsyncadd [#allocation4], %s3786
      %s3788 = sshll.u32 [#allocation8], 4
      %s3789 = int_to_ptr.vmem [resolvable:$true] %s3788
      %3794 = dma.vmem_to_hbm [thread:$0]  %s3789, 2048, %s6, [#allocation4], 128, 128, 8
    $region41: #{swin_block_forward.1} parent=1 // pred_fallthru
      _
    // Predicated region
    $region42: #{swin_block_forward.1} parent=1 // pred_check
      _
    $region43: #{swin_block_forward.1} parent=1 // pred_check_branch
      %3796 = sbr.rel (0) target = $region45
    $region44: #{swin_block_forward.1} parent=1 // pred_region
      %3797 = dma.done [#allocation4], 2048
    $region45: #{swin_block_forward.1} parent=1 // pred_fallthru
      _
    %3798 = vsyncpa [#allocation3], 1
    %3799 = vsyncpa [#allocation6], 1
    %3800 = vsyncpa [#allocation4], 1

</llo_original>
